<compile_context>
chip_gen: v6e
topology: v6e:2x2x1
jax: 0.10.0
libtpu: 0.0.40
codegen_flags: <defaults>
</compile_context>

<pallas_src>
import numpy as np
import jax
import jax.numpy as jnp
from jax import lax
from jax.experimental import pallas as pl
from jax.experimental.pallas import tpu as pltpu

LANES = 128
NUM_CLASSES = 4


# ----------------------------- fused Pallas kernel ---------------------------

def fused_forward_kernel(x_ref, w1_ref, b1_ref, w2_ref, b2_ref,
                         wf_ref, bf_ref, wm_ref, bm_ref, o_ref):
    TN = x_ref.shape[1]          # batch tile (multiple of 8, lives on sublanes)
    K = 5

    # ---- conv1 (5x5, Cin=1) + ReLU on the MXU: 5 banded matmuls over the
    #      kernel rows.  Rows = (h_out, n); lanes = parity*128 + c*12 + w//2.
    acc1 = jnp.dot(x_ref[0:24, :, :].reshape(24 * TN, 32), w1_ref[0],
                   preferred_element_type=jnp.float32)
    for i in range(1, K):
        xi = x_ref[i:i + 24, :, :].reshape(24 * TN, 32)     # tile-granular slice + view
        acc1 = acc1 + jnp.dot(xi, w1_ref[i], preferred_element_type=jnp.float32)
    h1 = jnp.maximum(acc1 + b1_ref[...], 0.0)               # (24*TN, 256)

    # ---- maxpool 2x2 #1: w-pool = max of the two (lane-group aligned) parity
    #      blocks; h-pool = max of two leading-dim slices of a view reshape.
    h1w = jnp.maximum(h1[:, :128], h1[:, 128:])             # (24*TN, 128), lanes = c*12 + w
    t1 = h1w.reshape(12, 2, TN, 128)
    p1 = jnp.maximum(t1[:, 0], t1[:, 1])                    # (12, TN, 128)

    # ---- conv2 (5x5, 6->16) + ReLU: 5 banded matmuls, K = 128 (c*12 + w).
    acc2 = jnp.dot(p1[0:8].reshape(8 * TN, 128), w2_ref[0],
                   preferred_element_type=jnp.float32)
    for i in range(1, K):
        li = p1[i:i + 8].reshape(8 * TN, 128)
        acc2 = acc2 + jnp.dot(li, w2_ref[i], preferred_element_type=jnp.float32)
    h2 = jnp.maximum(acc2 + b2_ref[...], 0.0)               # lanes = parity*64 + co*4 + w//2

    # ---- maxpool 2x2 #2 (same two-slice scheme).
    h2w = jnp.maximum(h2[:, :64], h2[:, 64:])               # (8*TN, 64), lanes = co*4 + w
    t2 = h2w.reshape(4, 2, TN, 64)
    p2 = jnp.maximum(t2[:, 0], t2[:, 1])                    # (4, TN, 64)

    # ---- CNN fc1 (256 -> 100, lane-padded to 128) + ReLU: 4 accumulated
    #      matmuls over the pooled h index (absorbs PyTorch's NCHW flatten).
    hf = jnp.dot(p2[0], wf_ref[0], preferred_element_type=jnp.float32)
    for h in range(1, 4):
        hf = hf + jnp.dot(p2[h], wf_ref[h], preferred_element_type=jnp.float32)
    hf = jnp.maximum(hf + bf_ref[...], 0.0)                 # (TN, 128), 100 valid

    # ---- classifier head mlp (100 -> 4, lane-padded to 128), lane-dense store.
    out = jnp.dot(hf, wm_ref[...], preferred_element_type=jnp.float32) + bm_ref[...]
    o_ref[...] = out.astype(o_ref.dtype)                    # (TN, 128)


# ----------------------------- one-time weight repack ------------------------

def prepare_params(params):
    """Repack PyTorch-layout params into banded, lane-packed kernel matrices.

    Lane packings (parity-outermost so the 2x2 w-pool is a max of lane blocks):
      conv1 out lane = (w%2)*128 + c*12 + w//2        (256 lanes, c<6 valid)
      conv2 in  lane = c*12 + pooled_w                (128 lanes, 72 valid)
      conv2 out lane = (w%2)*64 + co*4 + w//2         (128 lanes, all valid)
      fc1  in  lane  = co*4 + pooled_w                (64 lanes)
    """
    w1, b1, w2, b2, wf, bf, wm, bm = [np.asarray(p, np.float32) for p in params]
    K = 5

    # conv1 banded weight: A[i, w_in, (w_out%2)*128 + c*12 + w_out//2] = w1[c,0,i,j]
    A = np.zeros((K, 32, 256), np.float32)
    b1p = np.zeros((1, 256), np.float32)
    for c in range(6):
        for w_out in range(24):
            col = (w_out % 2) * 128 + c * 12 + w_out // 2
            b1p[0, col] = b1[c]
            for i in range(K):
                for j in range(K):
                    A[i, w_out + j, col] = w1[c, 0, i, j]

    # conv2 banded weight: B[i, c*12 + (w_out+j), (w_out%2)*64 + co*4 + w_out//2]
    B = np.zeros((K, 128, 128), np.float32)
    b2p = np.zeros((1, 128), np.float32)
    for co in range(16):
        for w_out in range(8):
            col = (w_out % 2) * 64 + co * 4 + w_out // 2
            b2p[0, col] = b2[co]
            for c in range(6):
                for i in range(K):
                    for j in range(K):
                        B[i, c * 12 + (w_out + j), col] = w2[co, c, i, j]

    # fc1: rows indexed by the kernel's (co*4 + w) lanes, one matrix per pooled
    # h; absorbs PyTorch's NCHW flatten (c*16 + h*4 + w) and the wf transpose.
    Wf = np.zeros((4, 64, 128), np.float32)
    for h in range(4):
        for co in range(16):
            for w in range(4):
                Wf[h, co * 4 + w, :100] = wf[:, co * 16 + h * 4 + w]
    bfp = np.zeros((1, 128), np.float32)
    bfp[0, :100] = bf

    # mlp head (100 -> 4), padded to 128x128.
    Wm = np.zeros((128, 128), np.float32)
    Wm[:100, :NUM_CLASSES] = wm.T
    bmp = np.zeros((1, 128), np.float32)
    bmp[0, :NUM_CLASSES] = bm

    return tuple(jnp.asarray(a) for a in (A, b1p, B, b2p, Wf, bfp, Wm, bmp))


# ----------------------------- forward wrapper -------------------------------

@jax.jit
def four_class_forward(x_nchw, packed):
    n = x_nchw.shape[0]
    # Batch tile: multiple of 8 (fills sublane groups), capped at 64 so the
    # per-step working set stays small even on v7x's 64 MiB VMEM.
    tile_n = 8 * min(8, (n + 7) // 8)
    n_pad = ((n + tile_n - 1) // tile_n) * tile_n
    nb = n_pad // tile_n

    # NCHW (N,1,28,28) -> (H=28, N_pad, W_pad=32): batch on sublanes, w on
    # lanes; batch/lane padding is exact zeros so padded lanes stay zero.
    x_t = jnp.zeros((28, n_pad, 32), jnp.float32)
    x_t = x_t.at[:, :n, :28].set(jnp.transpose(x_nchw[:, 0, :, :], (1, 0, 2)))

    # VMEM limit derived from the actual per-step working set (blocks double-
    # buffered, resident weights with 2x headroom, largest intermediates x4).
    blk_bytes = 2 * 4 * (28 * tile_n * 32 + tile_n * LANES)
    wgt_bytes = 2 * 4 * sum(int(a.size) for a in packed)
    act_bytes = 4 * 4 * (24 * tile_n * 256 + 8 * tile_n * 128 + tile_n * 128)
    vmem_limit = int(min(96 << 20, max(8 << 20, blk_bytes + wgt_bytes + act_bytes)))

    out = pl.pallas_call(
        fused_forward_kernel,
        out_shape=jax.ShapeDtypeStruct((n_pad, LANES), jnp.float32),
        grid=(nb,),
        in_specs=[
            pl.BlockSpec((28, tile_n, 32), lambda b: (0, b, 0)),   # x (h, n, w)
            pl.BlockSpec((5, 32, 256), lambda b: (0, 0, 0)),       # conv1 banded weight
            pl.BlockSpec((1, 256), lambda b: (0, 0)),              # conv1 bias pattern
            pl.BlockSpec((5, 128, 128), lambda b: (0, 0, 0)),      # conv2 banded weight
            pl.BlockSpec((1, 128), lambda b: (0, 0)),              # conv2 bias pattern
            pl.BlockSpec((4, 64, 128), lambda b: (0, 0, 0)),       # fc1 weight (per pooled h)
            pl.BlockSpec((1, 128), lambda b: (0, 0)),              # fc1 bias
            pl.BlockSpec((128, 128), lambda b: (0, 0)),            # mlp weight
            pl.BlockSpec((1, 128), lambda b: (0, 0)),              # mlp bias
        ],
        out_specs=pl.BlockSpec((tile_n, LANES), lambda b: (b, 0)),
        compiler_params=pltpu.CompilerParams(
            dimension_semantics=("parallel",),
            vmem_limit_bytes=vmem_limit),
    )(x_t, *packed)

    return out[:n, :NUM_CLASSES]                 # trim batch and lane padding


# ----------------------------- pure-JAX reference ----------------------------

def reference_forward(x_nchw, params):
    w1, b1, w2, b2, wf, bf, wm, bm = params

    def conv_relu(x, w, b):
        y = lax.conv_general_dilated(
            x, jnp.transpose(w, (2, 3, 1, 0)), window_strides=(1, 1),
            padding="VALID", dimension_numbers=("NHWC", "HWIO", "NHWC"))
        return jax.nn.relu(y + b)

    def pool(x):
        return lax.reduce_window(x, -jnp.inf, lax.max,
                                 (1, 2, 2, 1), (1, 2, 2, 1), "VALID")

    x = jnp.transpose(x_nchw, (0, 2, 3, 1))
    x = pool(conv_relu(x, w1, b1))
    x = pool(conv_relu(x, w2, b2))
    x = jnp.transpose(x, (0, 3, 1, 2)).reshape(x.shape[0], -1)   # NCHW flatten
    x = jax.nn.relu(x @ wf.T + bf)                               # CNN output: 100
    return x @ wm.T + bm                                         # mlp: 4 logits


# ----------------------------- main -------------------------------------------

if __name__ == "__main__":
    key = jax.random.PRNGKey(0)
    ks = jax.random.split(key, 9)

    # mlp expects 100 CNN features -> assumed LeNet CNN needs (N, 1, 28, 28) input.
    x = jax.random.normal(ks[0], (2, 1, 28, 28), dtype=jnp.float32)

    def unif(k, shape, fan_in):
        bound = 1.0 / (fan_in ** 0.5)            # PyTorch default init range
        return jax.random.uniform(k, shape, jnp.float32, -bound, bound)

    w1 = unif(ks[1], (6, 1, 5, 5), 1 * 5 * 5)
    b1 = unif(ks[2], (6,), 1 * 5 * 5)
    w2 = unif(ks[3], (16, 6, 5, 5), 6 * 5 * 5)
    b2 = unif(ks[4], (16,), 6 * 5 * 5)
    wf = unif(ks[5], (100, 16 * 4 * 4), 16 * 4 * 4)
    bf = unif(ks[6], (100,), 16 * 4 * 4)
    wm = unif(ks[7], (4, 100), 100)
    bm = unif(ks[8], (4,), 100)
    params = (w1, b1, w2, b2, wf, bf, wm, bm)

    packed = prepare_params(params)              # one-time repack, off the hot path

    out = jax.block_until_ready(four_class_forward(x, packed))
    assert out.shape == (2, NUM_CLASSES), out.shape

    ref = reference_forward(x, params)
    if not jnp.allclose(out, ref, atol=2e-4, rtol=2e-4):
        raise AssertionError("Pallas Four_class_classifier output does not match reference")

    print("KERNEL_OK")
</pallas_src>

<mosaic_0001>
module attributes {stable_mosaic.version = 11 : i64} {
  func.func @fused_forward_kernel(%arg0: i32, %arg1: memref<28x8x32xf32, #tpu.memory_space<vmem>>, %arg2: memref<5x32x256xf32, #tpu.memory_space<vmem>>, %arg3: memref<1x256xf32, #tpu.memory_space<vmem>>, %arg4: memref<5x128x128xf32, #tpu.memory_space<vmem>>, %arg5: memref<1x128xf32, #tpu.memory_space<vmem>>, %arg6: memref<4x64x128xf32, #tpu.memory_space<vmem>>, %arg7: memref<1x128xf32, #tpu.memory_space<vmem>>, %arg8: memref<128x128xf32, #tpu.memory_space<vmem>>, %arg9: memref<1x128xf32, #tpu.memory_space<vmem>>, %arg10: memref<8x128xf32, #tpu.memory_space<vmem>>) attributes {dimension_semantics = [#tpu.dimension_semantics<parallel>], iteration_bounds = array<i64: 1>, scalar_prefetch = 0 : i64, scratch_operands = 0 : i64, tpu.core_type = #tpu.core_type<tc>, window_params = [{transform_indices = @transform_0, window_bounds = array<i64: 28, 8, 32>}, {pipeline_mode = #tpu.pipeline_mode<synchronous>, transform_indices = @transform_1, window_bounds = array<i64: 5, 32, 256>}, {pipeline_mode = #tpu.pipeline_mode<synchronous>, transform_indices = @transform_2, window_bounds = array<i64: 1, 256>}, {pipeline_mode = #tpu.pipeline_mode<synchronous>, transform_indices = @transform_3, window_bounds = array<i64: 5, 128, 128>}, {pipeline_mode = #tpu.pipeline_mode<synchronous>, transform_indices = @transform_4, window_bounds = array<i64: 1, 128>}, {pipeline_mode = #tpu.pipeline_mode<synchronous>, transform_indices = @transform_5, window_bounds = array<i64: 4, 64, 128>}, {pipeline_mode = #tpu.pipeline_mode<synchronous>, transform_indices = @transform_6, window_bounds = array<i64: 1, 128>}, {pipeline_mode = #tpu.pipeline_mode<synchronous>, transform_indices = @transform_7, window_bounds = array<i64: 128, 128>}, {pipeline_mode = #tpu.pipeline_mode<synchronous>, transform_indices = @transform_8, window_bounds = array<i64: 1, 128>}, {transform_indices = @transform_9, window_bounds = array<i64: 8, 128>}]} {
    %c0 = arith.constant 0 : index
    %c0_0 = arith.constant 0 : index
    %c0_1 = arith.constant 0 : index
    %0 = vector.load %arg1[%c0, %c0_0, %c0_1] : memref<28x8x32xf32, #tpu.memory_space<vmem>>, vector<24x8x32xf32>
    %1 = vector.shape_cast %0 : vector<24x8x32xf32> to vector<192x32xf32>
    %c0_2 = arith.constant 0 : index
    %c0_3 = arith.constant 0 : index
    %c0_4 = arith.constant 0 : index
    %2 = vector.load %arg2[%c0_2, %c0_3, %c0_4] : memref<5x32x256xf32, #tpu.memory_space<vmem>>, vector<1x32x256xf32>
    %3 = vector.shape_cast %2 : vector<1x32x256xf32> to vector<32x256xf32>
    %cst = arith.constant dense<0.000000e+00> : vector<192x256xf32>
    %4 = tpu.matmul %1, %3, %cst {dimension_numbers = #tpu.dot_dimension_numbers<[1], [0], [0], [1], [0, 0, 1, 1], [], []>} : vector<192x32xf32>, vector<32x256xf32>, vector<192x256xf32> -> vector<192x256xf32>
    %c1 = arith.constant 1 : index
    %c0_5 = arith.constant 0 : index
    %c0_6 = arith.constant 0 : index
    %5 = vector.load %arg1[%c1, %c0_5, %c0_6] : memref<28x8x32xf32, #tpu.memory_space<vmem>>, vector<24x8x32xf32>
    %6 = vector.shape_cast %5 : vector<24x8x32xf32> to vector<192x32xf32>
    %c1_7 = arith.constant 1 : index
    %c0_8 = arith.constant 0 : index
    %c0_9 = arith.constant 0 : index
    %7 = vector.load %arg2[%c1_7, %c0_8, %c0_9] : memref<5x32x256xf32, #tpu.memory_space<vmem>>, vector<1x32x256xf32>
    %8 = vector.shape_cast %7 : vector<1x32x256xf32> to vector<32x256xf32>
    %cst_10 = arith.constant dense<0.000000e+00> : vector<192x256xf32>
    %9 = tpu.matmul %6, %8, %cst_10 {dimension_numbers = #tpu.dot_dimension_numbers<[1], [0], [0], [1], [0, 0, 1, 1], [], []>} : vector<192x32xf32>, vector<32x256xf32>, vector<192x256xf32> -> vector<192x256xf32>
    %10 = arith.addf %4, %9 : vector<192x256xf32>
    %c2 = arith.constant 2 : index
    %c0_11 = arith.constant 0 : index
    %c0_12 = arith.constant 0 : index
    %11 = vector.load %arg1[%c2, %c0_11, %c0_12] : memref<28x8x32xf32, #tpu.memory_space<vmem>>, vector<24x8x32xf32>
    %12 = vector.shape_cast %11 : vector<24x8x32xf32> to vector<192x32xf32>
    %c2_13 = arith.constant 2 : index
    %c0_14 = arith.constant 0 : index
    %c0_15 = arith.constant 0 : index
    %13 = vector.load %arg2[%c2_13, %c0_14, %c0_15] : memref<5x32x256xf32, #tpu.memory_space<vmem>>, vector<1x32x256xf32>
    %14 = vector.shape_cast %13 : vector<1x32x256xf32> to vector<32x256xf32>
    %cst_16 = arith.constant dense<0.000000e+00> : vector<192x256xf32>
    %15 = tpu.matmul %12, %14, %cst_16 {dimension_numbers = #tpu.dot_dimension_numbers<[1], [0], [0], [1], [0, 0, 1, 1], [], []>} : vector<192x32xf32>, vector<32x256xf32>, vector<192x256xf32> -> vector<192x256xf32>
    %16 = arith.addf %10, %15 : vector<192x256xf32>
    %c3 = arith.constant 3 : index
    %c0_17 = arith.constant 0 : index
    %c0_18 = arith.constant 0 : index
    %17 = vector.load %arg1[%c3, %c0_17, %c0_18] : memref<28x8x32xf32, #tpu.memory_space<vmem>>, vector<24x8x32xf32>
    %18 = vector.shape_cast %17 : vector<24x8x32xf32> to vector<192x32xf32>
    %c3_19 = arith.constant 3 : index
    %c0_20 = arith.constant 0 : index
    %c0_21 = arith.constant 0 : index
    %19 = vector.load %arg2[%c3_19, %c0_20, %c0_21] : memref<5x32x256xf32, #tpu.memory_space<vmem>>, vector<1x32x256xf32>
    %20 = vector.shape_cast %19 : vector<1x32x256xf32> to vector<32x256xf32>
    %cst_22 = arith.constant dense<0.000000e+00> : vector<192x256xf32>
    %21 = tpu.matmul %18, %20, %cst_22 {dimension_numbers = #tpu.dot_dimension_numbers<[1], [0], [0], [1], [0, 0, 1, 1], [], []>} : vector<192x32xf32>, vector<32x256xf32>, vector<192x256xf32> -> vector<192x256xf32>
    %22 = arith.addf %16, %21 : vector<192x256xf32>
    %c4 = arith.constant 4 : index
    %c0_23 = arith.constant 0 : index
    %c0_24 = arith.constant 0 : index
    %23 = vector.load %arg1[%c4, %c0_23, %c0_24] : memref<28x8x32xf32, #tpu.memory_space<vmem>>, vector<24x8x32xf32>
    %24 = vector.shape_cast %23 : vector<24x8x32xf32> to vector<192x32xf32>
    %c4_25 = arith.constant 4 : index
    %c0_26 = arith.constant 0 : index
    %c0_27 = arith.constant 0 : index
    %25 = vector.load %arg2[%c4_25, %c0_26, %c0_27] : memref<5x32x256xf32, #tpu.memory_space<vmem>>, vector<1x32x256xf32>
    %26 = vector.shape_cast %25 : vector<1x32x256xf32> to vector<32x256xf32>
    %cst_28 = arith.constant dense<0.000000e+00> : vector<192x256xf32>
    %27 = tpu.matmul %24, %26, %cst_28 {dimension_numbers = #tpu.dot_dimension_numbers<[1], [0], [0], [1], [0, 0, 1, 1], [], []>} : vector<192x32xf32>, vector<32x256xf32>, vector<192x256xf32> -> vector<192x256xf32>
    %28 = arith.addf %22, %27 : vector<192x256xf32>
    %c0_29 = arith.constant 0 : index
    %c0_30 = arith.constant 0 : index
    %29 = vector.load %arg3[%c0_29, %c0_30] : memref<1x256xf32, #tpu.memory_space<vmem>>, vector<1x256xf32>
    %30 = vector.broadcast %29 : vector<1x256xf32> to vector<192x256xf32>
    %31 = arith.addf %28, %30 : vector<192x256xf32>
    %cst_31 = arith.constant 0.000000e+00 : f32
    %32 = vector.broadcast %cst_31 : f32 to vector<192x256xf32>
    %33 = arith.maximumf %31, %32 : vector<192x256xf32>
    %34 = vector.extract_strided_slice %33 {offsets = [0, 0], sizes = [192, 128], strides = [1, 1]} : vector<192x256xf32> to vector<192x128xf32>
    %35 = vector.extract_strided_slice %33 {offsets = [0, 128], sizes = [192, 128], strides = [1, 1]} : vector<192x256xf32> to vector<192x128xf32>
    %36 = arith.maximumf %34, %35 : vector<192x128xf32>
    %37 = vector.shape_cast %36 : vector<192x128xf32> to vector<12x2x8x128xf32>
    %38 = vector.extract_strided_slice %37 {offsets = [0, 0, 0, 0], sizes = [12, 1, 8, 128], strides = [1, 1, 1, 1]} : vector<12x2x8x128xf32> to vector<12x1x8x128xf32>
    %39 = vector.shape_cast %38 : vector<12x1x8x128xf32> to vector<12x8x128xf32>
    %40 = vector.extract_strided_slice %37 {offsets = [0, 1, 0, 0], sizes = [12, 1, 8, 128], strides = [1, 1, 1, 1]} : vector<12x2x8x128xf32> to vector<12x1x8x128xf32>
    %41 = vector.shape_cast %40 : vector<12x1x8x128xf32> to vector<12x8x128xf32>
    %42 = arith.maximumf %39, %41 : vector<12x8x128xf32>
    %43 = vector.extract_strided_slice %42 {offsets = [0, 0, 0], sizes = [8, 8, 128], strides = [1, 1, 1]} : vector<12x8x128xf32> to vector<8x8x128xf32>
    %44 = vector.shape_cast %43 : vector<8x8x128xf32> to vector<64x128xf32>
    %c0_32 = arith.constant 0 : index
    %c0_33 = arith.constant 0 : index
    %c0_34 = arith.constant 0 : index
    %45 = vector.load %arg4[%c0_32, %c0_33, %c0_34] : memref<5x128x128xf32, #tpu.memory_space<vmem>>, vector<1x128x128xf32>
    %46 = vector.shape_cast %45 : vector<1x128x128xf32> to vector<128x128xf32>
    %cst_35 = arith.constant dense<0.000000e+00> : vector<64x128xf32>
    %47 = tpu.matmul %44, %46, %cst_35 {dimension_numbers = #tpu.dot_dimension_numbers<[1], [0], [0], [1], [0, 0, 1, 1], [], []>} : vector<64x128xf32>, vector<128x128xf32>, vector<64x128xf32> -> vector<64x128xf32>
    %48 = vector.extract_strided_slice %42 {offsets = [1, 0, 0], sizes = [8, 8, 128], strides = [1, 1, 1]} : vector<12x8x128xf32> to vector<8x8x128xf32>
    %49 = vector.shape_cast %48 : vector<8x8x128xf32> to vector<64x128xf32>
    %c1_36 = arith.constant 1 : index
    %c0_37 = arith.constant 0 : index
    %c0_38 = arith.constant 0 : index
    %50 = vector.load %arg4[%c1_36, %c0_37, %c0_38] : memref<5x128x128xf32, #tpu.memory_space<vmem>>, vector<1x128x128xf32>
    %51 = vector.shape_cast %50 : vector<1x128x128xf32> to vector<128x128xf32>
    %cst_39 = arith.constant dense<0.000000e+00> : vector<64x128xf32>
    %52 = tpu.matmul %49, %51, %cst_39 {dimension_numbers = #tpu.dot_dimension_numbers<[1], [0], [0], [1], [0, 0, 1, 1], [], []>} : vector<64x128xf32>, vector<128x128xf32>, vector<64x128xf32> -> vector<64x128xf32>
    %53 = arith.addf %47, %52 : vector<64x128xf32>
    %54 = vector.extract_strided_slice %42 {offsets = [2, 0, 0], sizes = [8, 8, 128], strides = [1, 1, 1]} : vector<12x8x128xf32> to vector<8x8x128xf32>
    %55 = vector.shape_cast %54 : vector<8x8x128xf32> to vector<64x128xf32>
    %c2_40 = arith.constant 2 : index
    %c0_41 = arith.constant 0 : index
    %c0_42 = arith.constant 0 : index
    %56 = vector.load %arg4[%c2_40, %c0_41, %c0_42] : memref<5x128x128xf32, #tpu.memory_space<vmem>>, vector<1x128x128xf32>
    %57 = vector.shape_cast %56 : vector<1x128x128xf32> to vector<128x128xf32>
    %cst_43 = arith.constant dense<0.000000e+00> : vector<64x128xf32>
    %58 = tpu.matmul %55, %57, %cst_43 {dimension_numbers = #tpu.dot_dimension_numbers<[1], [0], [0], [1], [0, 0, 1, 1], [], []>} : vector<64x128xf32>, vector<128x128xf32>, vector<64x128xf32> -> vector<64x128xf32>
    %59 = arith.addf %53, %58 : vector<64x128xf32>
    %60 = vector.extract_strided_slice %42 {offsets = [3, 0, 0], sizes = [8, 8, 128], strides = [1, 1, 1]} : vector<12x8x128xf32> to vector<8x8x128xf32>
    %61 = vector.shape_cast %60 : vector<8x8x128xf32> to vector<64x128xf32>
    %c3_44 = arith.constant 3 : index
    %c0_45 = arith.constant 0 : index
    %c0_46 = arith.constant 0 : index
    %62 = vector.load %arg4[%c3_44, %c0_45, %c0_46] : memref<5x128x128xf32, #tpu.memory_space<vmem>>, vector<1x128x128xf32>
    %63 = vector.shape_cast %62 : vector<1x128x128xf32> to vector<128x128xf32>
    %cst_47 = arith.constant dense<0.000000e+00> : vector<64x128xf32>
    %64 = tpu.matmul %61, %63, %cst_47 {dimension_numbers = #tpu.dot_dimension_numbers<[1], [0], [0], [1], [0, 0, 1, 1], [], []>} : vector<64x128xf32>, vector<128x128xf32>, vector<64x128xf32> -> vector<64x128xf32>
    %65 = arith.addf %59, %64 : vector<64x128xf32>
    %66 = vector.extract_strided_slice %42 {offsets = [4, 0, 0], sizes = [8, 8, 128], strides = [1, 1, 1]} : vector<12x8x128xf32> to vector<8x8x128xf32>
    %67 = vector.shape_cast %66 : vector<8x8x128xf32> to vector<64x128xf32>
    %c4_48 = arith.constant 4 : index
    %c0_49 = arith.constant 0 : index
    %c0_50 = arith.constant 0 : index
    %68 = vector.load %arg4[%c4_48, %c0_49, %c0_50] : memref<5x128x128xf32, #tpu.memory_space<vmem>>, vector<1x128x128xf32>
    %69 = vector.shape_cast %68 : vector<1x128x128xf32> to vector<128x128xf32>
    %cst_51 = arith.constant dense<0.000000e+00> : vector<64x128xf32>
    %70 = tpu.matmul %67, %69, %cst_51 {dimension_numbers = #tpu.dot_dimension_numbers<[1], [0], [0], [1], [0, 0, 1, 1], [], []>} : vector<64x128xf32>, vector<128x128xf32>, vector<64x128xf32> -> vector<64x128xf32>
    %71 = arith.addf %65, %70 : vector<64x128xf32>
    %c0_52 = arith.constant 0 : index
    %c0_53 = arith.constant 0 : index
    %72 = vector.load %arg5[%c0_52, %c0_53] : memref<1x128xf32, #tpu.memory_space<vmem>>, vector<1x128xf32>
    %73 = vector.broadcast %72 : vector<1x128xf32> to vector<64x128xf32>
    %74 = arith.addf %71, %73 : vector<64x128xf32>
    %cst_54 = arith.constant 0.000000e+00 : f32
    %75 = vector.broadcast %cst_54 : f32 to vector<64x128xf32>
    %76 = arith.maximumf %74, %75 : vector<64x128xf32>
    %77 = vector.extract_strided_slice %76 {offsets = [0, 0], sizes = [64, 64], strides = [1, 1]} : vector<64x128xf32> to vector<64x64xf32>
    %78 = vector.extract_strided_slice %76 {offsets = [0, 64], sizes = [64, 64], strides = [1, 1]} : vector<64x128xf32> to vector<64x64xf32>
    %79 = arith.maximumf %77, %78 : vector<64x64xf32>
    %80 = vector.shape_cast %79 : vector<64x64xf32> to vector<4x2x8x64xf32>
    %81 = vector.extract_strided_slice %80 {offsets = [0, 0, 0, 0], sizes = [4, 1, 8, 64], strides = [1, 1, 1, 1]} : vector<4x2x8x64xf32> to vector<4x1x8x64xf32>
    %82 = vector.shape_cast %81 : vector<4x1x8x64xf32> to vector<4x8x64xf32>
    %83 = vector.extract_strided_slice %80 {offsets = [0, 1, 0, 0], sizes = [4, 1, 8, 64], strides = [1, 1, 1, 1]} : vector<4x2x8x64xf32> to vector<4x1x8x64xf32>
    %84 = vector.shape_cast %83 : vector<4x1x8x64xf32> to vector<4x8x64xf32>
    %85 = arith.maximumf %82, %84 : vector<4x8x64xf32>
    %86 = vector.extract_strided_slice %85 {offsets = [0, 0, 0], sizes = [1, 8, 64], strides = [1, 1, 1]} : vector<4x8x64xf32> to vector<1x8x64xf32>
    %87 = vector.shape_cast %86 : vector<1x8x64xf32> to vector<8x64xf32>
    %c0_55 = arith.constant 0 : index
    %c0_56 = arith.constant 0 : index
    %c0_57 = arith.constant 0 : index
    %88 = vector.load %arg6[%c0_55, %c0_56, %c0_57] : memref<4x64x128xf32, #tpu.memory_space<vmem>>, vector<1x64x128xf32>
    %89 = vector.shape_cast %88 : vector<1x64x128xf32> to vector<64x128xf32>
    %cst_58 = arith.constant dense<0.000000e+00> : vector<8x128xf32>
    %90 = tpu.matmul %87, %89, %cst_58 {dimension_numbers = #tpu.dot_dimension_numbers<[1], [0], [0], [1], [0, 0, 1, 1], [], []>} : vector<8x64xf32>, vector<64x128xf32>, vector<8x128xf32> -> vector<8x128xf32>
    %91 = vector.extract_strided_slice %85 {offsets = [1, 0, 0], sizes = [1, 8, 64], strides = [1, 1, 1]} : vector<4x8x64xf32> to vector<1x8x64xf32>
    %92 = vector.shape_cast %91 : vector<1x8x64xf32> to vector<8x64xf32>
    %c1_59 = arith.constant 1 : index
    %c0_60 = arith.constant 0 : index
    %c0_61 = arith.constant 0 : index
    %93 = vector.load %arg6[%c1_59, %c0_60, %c0_61] : memref<4x64x128xf32, #tpu.memory_space<vmem>>, vector<1x64x128xf32>
    %94 = vector.shape_cast %93 : vector<1x64x128xf32> to vector<64x128xf32>
    %cst_62 = arith.constant dense<0.000000e+00> : vector<8x128xf32>
    %95 = tpu.matmul %92, %94, %cst_62 {dimension_numbers = #tpu.dot_dimension_numbers<[1], [0], [0], [1], [0, 0, 1, 1], [], []>} : vector<8x64xf32>, vector<64x128xf32>, vector<8x128xf32> -> vector<8x128xf32>
    %96 = arith.addf %90, %95 : vector<8x128xf32>
    %97 = vector.extract_strided_slice %85 {offsets = [2, 0, 0], sizes = [1, 8, 64], strides = [1, 1, 1]} : vector<4x8x64xf32> to vector<1x8x64xf32>
    %98 = vector.shape_cast %97 : vector<1x8x64xf32> to vector<8x64xf32>
    %c2_63 = arith.constant 2 : index
    %c0_64 = arith.constant 0 : index
    %c0_65 = arith.constant 0 : index
    %99 = vector.load %arg6[%c2_63, %c0_64, %c0_65] : memref<4x64x128xf32, #tpu.memory_space<vmem>>, vector<1x64x128xf32>
    %100 = vector.shape_cast %99 : vector<1x64x128xf32> to vector<64x128xf32>
    %cst_66 = arith.constant dense<0.000000e+00> : vector<8x128xf32>
    %101 = tpu.matmul %98, %100, %cst_66 {dimension_numbers = #tpu.dot_dimension_numbers<[1], [0], [0], [1], [0, 0, 1, 1], [], []>} : vector<8x64xf32>, vector<64x128xf32>, vector<8x128xf32> -> vector<8x128xf32>
    %102 = arith.addf %96, %101 : vector<8x128xf32>
    %103 = vector.extract_strided_slice %85 {offsets = [3, 0, 0], sizes = [1, 8, 64], strides = [1, 1, 1]} : vector<4x8x64xf32> to vector<1x8x64xf32>
    %104 = vector.shape_cast %103 : vector<1x8x64xf32> to vector<8x64xf32>
    %c3_67 = arith.constant 3 : index
    %c0_68 = arith.constant 0 : index
    %c0_69 = arith.constant 0 : index
    %105 = vector.load %arg6[%c3_67, %c0_68, %c0_69] : memref<4x64x128xf32, #tpu.memory_space<vmem>>, vector<1x64x128xf32>
    %106 = vector.shape_cast %105 : vector<1x64x128xf32> to vector<64x128xf32>
    %cst_70 = arith.constant dense<0.000000e+00> : vector<8x128xf32>
    %107 = tpu.matmul %104, %106, %cst_70 {dimension_numbers = #tpu.dot_dimension_numbers<[1], [0], [0], [1], [0, 0, 1, 1], [], []>} : vector<8x64xf32>, vector<64x128xf32>, vector<8x128xf32> -> vector<8x128xf32>
    %108 = arith.addf %102, %107 : vector<8x128xf32>
    %c0_71 = arith.constant 0 : index
    %c0_72 = arith.constant 0 : index
    %109 = vector.load %arg7[%c0_71, %c0_72] : memref<1x128xf32, #tpu.memory_space<vmem>>, vector<1x128xf32>
    %110 = vector.broadcast %109 : vector<1x128xf32> to vector<8x128xf32>
    %111 = arith.addf %108, %110 : vector<8x128xf32>
    %cst_73 = arith.constant 0.000000e+00 : f32
    %112 = vector.broadcast %cst_73 : f32 to vector<8x128xf32>
    %113 = arith.maximumf %111, %112 : vector<8x128xf32>
    %c0_74 = arith.constant 0 : index
    %c0_75 = arith.constant 0 : index
    %114 = vector.load %arg8[%c0_74, %c0_75] : memref<128x128xf32, #tpu.memory_space<vmem>>, vector<128x128xf32>
    %cst_76 = arith.constant dense<0.000000e+00> : vector<8x128xf32>
    %115 = tpu.matmul %113, %114, %cst_76 {dimension_numbers = #tpu.dot_dimension_numbers<[1], [0], [0], [1], [0, 0, 1, 1], [], []>} : vector<8x128xf32>, vector<128x128xf32>, vector<8x128xf32> -> vector<8x128xf32>
    %c0_77 = arith.constant 0 : index
    %c0_78 = arith.constant 0 : index
    %116 = vector.load %arg9[%c0_77, %c0_78] : memref<1x128xf32, #tpu.memory_space<vmem>>, vector<1x128xf32>
    %117 = vector.broadcast %116 : vector<1x128xf32> to vector<8x128xf32>
    %118 = arith.addf %115, %117 : vector<8x128xf32>
    %c0_79 = arith.constant 0 : index
    %c0_80 = arith.constant 0 : index
    %119 = vector.load %arg10[%c0_79, %c0_80] : memref<8x128xf32, #tpu.memory_space<vmem>>, vector<8x128xf32>
    tpu.vector_store %arg10[%c0_79, %c0_80], %118 {strides = array<i32>} : memref<8x128xf32, #tpu.memory_space<vmem>>, vector<8x128xf32>,
    return
  }
  func.func @transform_0(%arg0: i32) -> (i32, i32, i32) {
    %c0_i32 = arith.constant 0 : i32
    %c0_i32_0 = arith.constant 0 : i32
    %c0_i32_1 = arith.constant 0 : i32
    return %c0_i32, %arg0, %c0_i32_0 : i32, i32, i32
  }
  func.func @transform_1(%arg0: i32) -> (i32, i32, i32) {
    %c0_i32 = arith.constant 0 : i32
    %c0_i32_0 = arith.constant 0 : i32
    %c0_i32_1 = arith.constant 0 : i32
    %c0_i32_2 = arith.constant 0 : i32
    return %c0_i32, %c0_i32_0, %c0_i32_1 : i32, i32, i32
  }
  func.func @transform_2(%arg0: i32) -> (i32, i32) {
    %c0_i32 = arith.constant 0 : i32
    %c0_i32_0 = arith.constant 0 : i32
    %c0_i32_1 = arith.constant 0 : i32
    return %c0_i32, %c0_i32_0 : i32, i32
  }
  func.func @transform_3(%arg0: i32) -> (i32, i32, i32) {
    %c0_i32 = arith.constant 0 : i32
    %c0_i32_0 = arith.constant 0 : i32
    %c0_i32_1 = arith.constant 0 : i32
    %c0_i32_2 = arith.constant 0 : i32
    return %c0_i32, %c0_i32_0, %c0_i32_1 : i32, i32, i32
  }
  func.func @transform_4(%arg0: i32) -> (i32, i32) {
    %c0_i32 = arith.constant 0 : i32
    %c0_i32_0 = arith.constant 0 : i32
    %c0_i32_1 = arith.constant 0 : i32
    return %c0_i32, %c0_i32_0 : i32, i32
  }
  func.func @transform_5(%arg0: i32) -> (i32, i32, i32) {
    %c0_i32 = arith.constant 0 : i32
    %c0_i32_0 = arith.constant 0 : i32
    %c0_i32_1 = arith.constant 0 : i32
    %c0_i32_2 = arith.constant 0 : i32
    return %c0_i32, %c0_i32_0, %c0_i32_1 : i32, i32, i32
  }
  func.func @transform_6(%arg0: i32) -> (i32, i32) {
    %c0_i32 = arith.constant 0 : i32
    %c0_i32_0 = arith.constant 0 : i32
    %c0_i32_1 = arith.constant 0 : i32
    return %c0_i32, %c0_i32_0 : i32, i32
  }
  func.func @transform_7(%arg0: i32) -> (i32, i32) {
    %c0_i32 = arith.constant 0 : i32
    %c0_i32_0 = arith.constant 0 : i32
    %c0_i32_1 = arith.constant 0 : i32
    return %c0_i32, %c0_i32_0 : i32, i32
  }
  func.func @transform_8(%arg0: i32) -> (i32, i32) {
    %c0_i32 = arith.constant 0 : i32
    %c0_i32_0 = arith.constant 0 : i32
    %c0_i32_1 = arith.constant 0 : i32
    return %c0_i32, %c0_i32_0 : i32, i32
  }
  func.func @transform_9(%arg0: i32) -> (i32, i32) {
    %c0_i32 = arith.constant 0 : i32
    %c0_i32_0 = arith.constant 0 : i32
    return %arg0, %c0_i32 : i32, i32
  }
}

</mosaic_0001>

<llo_original>
// kernel: four_class_forward.1
$region0: #{four_class_forward.1}
  #allocation0 [shape = 'u32[]', space=smem, size = 0x4, offset = 0x4, fixed_abs, tag = 'smem constant byte address 0x4 - core index']
  #allocation1 [shape = 'u32[144,128]{1,0:T(1,128)}', space=vmem, size = 0x12000, scoped, tag = 'internal scratch']
  %s0 = inlined_call_operand.vmem [shape: f32[28,8,32], index: 0, kind: input, shape index: {}]
  %s1 = inlined_call_operand.vmem [shape: f32[5,32,256], index: 1, kind: input, shape index: {}]
  %s2 = inlined_call_operand.vmem [shape: f32[1,256], index: 2, kind: input, shape index: {}]
  %s3 = inlined_call_operand.hbm [shape: f32[5,128,128], index: 3, kind: input, shape index: {}]
  %s4 = inlined_call_operand.vmem [shape: f32[1,128], index: 4, kind: input, shape index: {}]
  %s5 = inlined_call_operand.hbm [shape: f32[4,64,128], index: 5, kind: input, shape index: {}]
  %s6 = inlined_call_operand.vmem [shape: f32[1,128], index: 6, kind: input, shape index: {}]
  %s7 = inlined_call_operand.hbm [shape: f32[128,128], index: 7, kind: input, shape index: {}]
  %s8 = inlined_call_operand.vmem [shape: f32[1,128], index: 8, kind: input, shape index: {}]
  %s9 = inlined_call_operand.vmem [shape: f32[8,128], index: 9, kind: output, shape index: {}]
  %s10 = sld [smem:[#allocation0]]
  $region58: #{four_class_forward.1} parent=0
    _
  %s12 = ssub.s32 1, %s10
  %s13 = scalar_select 0, %s12, %s10
  $region1: #{four_class_forward.1} parent=0
    #allocation2 [shape = 'u8[327680]{0}', space=vmem, size = 0x50000, scoped, tag = 'input window, operand 3, single buffered']
    #allocation3 [shape = 's32[1]{0}', space=sflag, size = 0x4, scoped, tag = 'scoped memory for four_class_forward.1']
    #allocation4 [shape = 'u8[131072]{0}', space=vmem, size = 0x20000, scoped, tag = 'input window, operand 5, single buffered']
    #allocation5 [shape = 's32[1]{0}', space=sflag, size = 0x4, scoped, tag = 'scoped memory for four_class_forward.1']
    #allocation6 [shape = 'u8[65536]{0}', space=vmem, size = 0x10000, scoped, tag = 'input window, operand 7, single buffered']
    %14 = vsyncpa [#allocation3], 0
    %15 = vsyncpa [#allocation5], 0
    // Predicated region
    $region2: #{four_class_forward.1} parent=1 // pred_check
      _
    $region3: #{four_class_forward.1} parent=1 // pred_check_branch
      %17 = sbr.rel (0) target = $region5
    $region4: #{four_class_forward.1} parent=1 // pred_region
      _
    $region5: #{four_class_forward.1} parent=1 // pred_fallthru
      _
    // Predicated region
    $region6: #{four_class_forward.1} parent=1 // pred_check
      _
    $region7: #{four_class_forward.1} parent=1 // pred_check_branch
      %19 = sbr.rel (0) target = $region9
    $region8: #{four_class_forward.1} parent=1 // pred_region
      _
    $region9: #{four_class_forward.1} parent=1 // pred_fallthru
      _
    // Predicated region
    $region10: #{four_class_forward.1} parent=1 // pred_check
      _
    $region11: #{four_class_forward.1} parent=1 // pred_check_branch
      %21 = sbr.rel (0) target = $region13
    $region12: #{four_class_forward.1} parent=1 // pred_region
      _
    $region13: #{four_class_forward.1} parent=1 // pred_fallthru
      _
    // Predicated region
    $region14: #{four_class_forward.1} parent=1 // pred_check
      _
    $region15: #{four_class_forward.1} parent=1 // pred_check_branch
      %23 = sbr.rel (0) target = $region17
    $region16: #{four_class_forward.1} parent=1 // pred_region
      %s25 = ssub.s32 10240, 10240
      %26 = vsyncadd [#allocation3], %s25
      %s27 = sshll.u32 [#allocation2], 4
      %s28 = int_to_ptr.vmem [resolvable:$true] %s27
      %33 = dma.hbm_to_vmem [thread:$0]  %s3, 10240, %s28, [#allocation3], 128, 128, 8
    $region17: #{four_class_forward.1} parent=1 // pred_fallthru
      _
    // Predicated region
    $region18: #{four_class_forward.1} parent=1 // pred_check
      _
    $region19: #{four_class_forward.1} parent=1 // pred_check_branch
      %35 = sbr.rel (0) target = $region21
    $region20: #{four_class_forward.1} parent=1 // pred_region
      _
    $region21: #{four_class_forward.1} parent=1 // pred_fallthru
      _
    // Predicated region
    $region22: #{four_class_forward.1} parent=1 // pred_check
      _
    $region23: #{four_class_forward.1} parent=1 // pred_check_branch
      %37 = sbr.rel (0) target = $region25
    $region24: #{four_class_forward.1} parent=1 // pred_region
      %s39 = ssub.s32 4096, 4096
      %40 = vsyncadd [#allocation5], %s39
      %s41 = sshll.u32 [#allocation4], 4
      %s42 = int_to_ptr.vmem [resolvable:$true] %s41
      %47 = dma.hbm_to_vmem [thread:$0]  %s5, 4096, %s42, [#allocation5], 128, 128, 8
    $region25: #{four_class_forward.1} parent=1 // pred_fallthru
      _
    // Predicated region
    $region26: #{four_class_forward.1} parent=1 // pred_check
      _
    $region27: #{four_class_forward.1} parent=1 // pred_check_branch
      %49 = sbr.rel (0) target = $region29
    $region28: #{four_class_forward.1} parent=1 // pred_region
      _
    $region29: #{four_class_forward.1} parent=1 // pred_fallthru
      _
    // Predicated region
    $region30: #{four_class_forward.1} parent=1 // pred_check
      _
    $region31: #{four_class_forward.1} parent=1 // pred_check_branch
      %51 = sbr.rel (0) target = $region33
    $region32: #{four_class_forward.1} parent=1 // pred_region
      %s53 = ssub.s32 2048, 2048
      %54 = vsyncadd [#allocation5], %s53
      %s55 = sshll.u32 [#allocation6], 4
      %s56 = int_to_ptr.vmem [resolvable:$true] %s55
      %61 = dma.hbm_to_vmem [thread:$0]  %s7, 2048, %s56, [#allocation5], 128, 128, 8
    $region33: #{four_class_forward.1} parent=1 // pred_fallthru
      _
    // Predicated region
    $region34: #{four_class_forward.1} parent=1 // pred_check
      _
    $region35: #{four_class_forward.1} parent=1 // pred_check_branch
      %63 = sbr.rel (0) target = $region37
    $region36: #{four_class_forward.1} parent=1 // pred_region
      _
    $region37: #{four_class_forward.1} parent=1 // pred_fallthru
      _
    // Predicated region
    $region38: #{four_class_forward.1} parent=1 // pred_check
      _
    $region39: #{four_class_forward.1} parent=1 // pred_check_branch
      %65 = sbr.rel (0) target = $region41
    $region40: #{four_class_forward.1} parent=1 // pred_region
      %66 = dma.done [#allocation3], 10240
    $region41: #{four_class_forward.1} parent=1 // pred_fallthru
      _
    // Predicated region
    $region42: #{four_class_forward.1} parent=1 // pred_check
      _
    $region43: #{four_class_forward.1} parent=1 // pred_check_branch
      %68 = sbr.rel (0) target = $region45
    $region44: #{four_class_forward.1} parent=1 // pred_region
      %69 = dma.done [#allocation5], 4096
    $region45: #{four_class_forward.1} parent=1 // pred_fallthru
      _
    // Predicated region
    $region46: #{four_class_forward.1} parent=1 // pred_check
      _
    $region47: #{four_class_forward.1} parent=1 // pred_check_branch
      %71 = sbr.rel (0) target = $region49
    $region48: #{four_class_forward.1} parent=1 // pred_region
      %72 = dma.done [#allocation5], 2048
    $region49: #{four_class_forward.1} parent=1 // pred_fallthru
      _
    %v73 = vld [vmem:[%s0] sm:$0xff]
    %v74 = vld [vmem:[%s0 + $0x8] sm:$0xff]
    %v75 = vld [vmem:[%s0 + $0x10] sm:$0xff]
    %v76 = vld [vmem:[%s0 + $0x18] sm:$0xff]
    %v77 = vld [vmem:[%s0 + $0x20] sm:$0xff]
    %v78 = vld [vmem:[%s0 + $0x28] sm:$0xff]
    %v79 = vld [vmem:[%s0 + $0x30] sm:$0xff]
    %v80 = vld [vmem:[%s0 + $0x38] sm:$0xff]
    %v81 = vld [vmem:[%s0 + $0x40] sm:$0xff]
    %v82 = vld [vmem:[%s0 + $0x48] sm:$0xff]
    %v83 = vld [vmem:[%s0 + $0x50] sm:$0xff]
    %v84 = vld [vmem:[%s0 + $0x58] sm:$0xff]
    %v85 = vld [vmem:[%s0 + $0x60] sm:$0xff]
    %v86 = vld [vmem:[%s0 + $0x68] sm:$0xff]
    %v87 = vld [vmem:[%s0 + $0x70] sm:$0xff]
    %v88 = vld [vmem:[%s0 + $0x78] sm:$0xff]
    %v89 = vld [vmem:[%s0 + $0x80] sm:$0xff]
    %v90 = vld [vmem:[%s0 + $0x88] sm:$0xff]
    %v91 = vld [vmem:[%s0 + $0x90] sm:$0xff]
    %v92 = vld [vmem:[%s0 + $0x98] sm:$0xff]
    %v93 = vld [vmem:[%s0 + $0xa0] sm:$0xff]
    %v94 = vld [vmem:[%s0 + $0xa8] sm:$0xff]
    %v95 = vld [vmem:[%s0 + $0xb0] sm:$0xff]
    %v96 = vld [vmem:[%s0 + $0xb8] sm:$0xff]
    %v97 = vld [vmem:[%s1] sm:$0xff]
    %v98 = vld [vmem:[%s1 + $0x8] sm:$0xff]
    %v99 = vld [vmem:[%s1 + $0x10] sm:$0xff]
    %v100 = vld [vmem:[%s1 + $0x18] sm:$0xff]
    %v101 = vld [vmem:[%s1 + $0x20] sm:$0xff]
    %v102 = vld [vmem:[%s1 + $0x28] sm:$0xff]
    %v103 = vld [vmem:[%s1 + $0x30] sm:$0xff]
    %v104 = vld [vmem:[%s1 + $0x38] sm:$0xff]
    %s105 = scalar_lea.vmem %s0, 8
    %v106 = vld [vmem:[%s105] sm:$0xff]
    %v107 = vld [vmem:[%s105 + $0x8] sm:$0xff]
    %v108 = vld [vmem:[%s105 + $0x10] sm:$0xff]
    %v109 = vld [vmem:[%s105 + $0x18] sm:$0xff]
    %v110 = vld [vmem:[%s105 + $0x20] sm:$0xff]
    %v111 = vld [vmem:[%s105 + $0x28] sm:$0xff]
    %v112 = vld [vmem:[%s105 + $0x30] sm:$0xff]
    %v113 = vld [vmem:[%s105 + $0x38] sm:$0xff]
    %v114 = vld [vmem:[%s105 + $0x40] sm:$0xff]
    %v115 = vld [vmem:[%s105 + $0x48] sm:$0xff]
    %v116 = vld [vmem:[%s105 + $0x50] sm:$0xff]
    %v117 = vld [vmem:[%s105 + $0x58] sm:$0xff]
    %v118 = vld [vmem:[%s105 + $0x60] sm:$0xff]
    %v119 = vld [vmem:[%s105 + $0x68] sm:$0xff]
    %v120 = vld [vmem:[%s105 + $0x70] sm:$0xff]
    %v121 = vld [vmem:[%s105 + $0x78] sm:$0xff]
    %v122 = vld [vmem:[%s105 + $0x80] sm:$0xff]
    %v123 = vld [vmem:[%s105 + $0x88] sm:$0xff]
    %v124 = vld [vmem:[%s105 + $0x90] sm:$0xff]
    %v125 = vld [vmem:[%s105 + $0x98] sm:$0xff]
    %v126 = vld [vmem:[%s105 + $0xa0] sm:$0xff]
    %v127 = vld [vmem:[%s105 + $0xa8] sm:$0xff]
    %v128 = vld [vmem:[%s105 + $0xb0] sm:$0xff]
    %v129 = vld [vmem:[%s105 + $0xb8] sm:$0xff]
    %s130 = scalar_lea.vmem %s1, 64
    %v131 = vld [vmem:[%s130] sm:$0xff]
    %v132 = vld [vmem:[%s130 + $0x8] sm:$0xff]
    %v133 = vld [vmem:[%s130 + $0x10] sm:$0xff]
    %v134 = vld [vmem:[%s130 + $0x18] sm:$0xff]
    %v135 = vld [vmem:[%s130 + $0x20] sm:$0xff]
    %v136 = vld [vmem:[%s130 + $0x28] sm:$0xff]
    %v137 = vld [vmem:[%s130 + $0x30] sm:$0xff]
    %v138 = vld [vmem:[%s130 + $0x38] sm:$0xff]
    %vm139 = vcmask 261120
    %v141 = vsel %vm139, %v106, 0
    %v144 = vsel %vm139, %v107, 0
    %v147 = vsel %vm139, %v108, 0
    %v150 = vsel %vm139, %v109, 0
    %v153 = vsel %vm139, %v110, 0
    %v156 = vsel %vm139, %v111, 0
    %v159 = vsel %vm139, %v112, 0
    %v162 = vsel %vm139, %v113, 0
    %v165 = vsel %vm139, %v114, 0
    %v168 = vsel %vm139, %v115, 0
    %v171 = vsel %vm139, %v116, 0
    %v174 = vsel %vm139, %v117, 0
    %v177 = vsel %vm139, %v118, 0
    %v180 = vsel %vm139, %v119, 0
    %v183 = vsel %vm139, %v120, 0
    %v186 = vsel %vm139, %v121, 0
    %v189 = vsel %vm139, %v122, 0
    %v192 = vsel %vm139, %v123, 0
    %v195 = vsel %vm139, %v124, 0
    %v198 = vsel %vm139, %v125, 0
    %v201 = vsel %vm139, %v126, 0
    %v204 = vsel %vm139, %v127, 0
    %v207 = vsel %vm139, %v128, 0
    %v210 = vsel %vm139, %v129, 0
    %212 = vmatprep.subr.mxu0 0.0
    %213 = vmatpush1.msra.mxu0 0.0
    %214 = vmatprep.subr.mxu0 0.0
    %215 = vmatpush1.msra.mxu0 0.0
    %216 = vmatprep.subr.mxu0 0.0
    %217 = vmatpush1.msra.mxu0 0.0
    %218 = vmatprep.subr.mxu0 0.0
    %219 = vmatpush1.msra.mxu0 0.0
    %220 = vmatprep.subr.mxu0 0.0
    %221 = vmatpush1.msra.mxu0 0.0
    %222 = vmatprep.subr.mxu0 0.0
    %223 = vmatpush1.msra.mxu0 0.0
    %224 = vmatprep.subr.mxu0 0.0
    %225 = vmatpush1.msra.mxu0 0.0
    %226 = vmatprep.subr.mxu0 0.0
    %227 = vmatpush1.msra.mxu0 0.0
    %228 = vmatprep.subr.mxu0 0.0
    %229 = vmatpush1.msra.mxu0 0.0
    %230 = vmatprep.subr.mxu0 0.0
    %231 = vmatpush1.msra.mxu0 0.0
    %232 = vmatprep.subr.mxu0 0.0
    %233 = vmatpush1.msra.mxu0 0.0
    %234 = vmatprep.subr.mxu0 0.0
    %235 = vmatpush1.msra.mxu0 0.0
    %236 = vmatprep.subr.mxu0 %v138
    %237 = vmatpush1.msra.mxu0 %v137
    %238 = vmatprep.subr.mxu0 %v136
    %239 = vmatpush1.msra.mxu0 %v135
    %240 = vmatprep.subr.mxu0 %v134
    %241 = vmatpush1.msra.mxu0 %v133
    %242 = vmatprep.subr.mxu0 %v132
    %243 = vmatpush1.msra.mxu0 %v131
    %244 = vmatprep.subr.mxu0 0.0
    %245 = vmatpush2.msra.mxu0 0.0
    %246 = vmatprep.subr.mxu0 0.0
    %247 = vmatpush2.msra.mxu0 0.0
    %248 = vmatprep.subr.mxu0 0.0
    %249 = vmatpush2.msra.mxu0 0.0
    %250 = vmatprep.subr.mxu0 0.0
    %251 = vmatpush2.msra.mxu0 0.0
    %252 = vmatprep.subr.mxu0 0.0
    %253 = vmatpush2.msra.mxu0 0.0
    %254 = vmatprep.subr.mxu0 0.0
    %255 = vmatpush2.msra.mxu0 0.0
    %256 = vmatprep.subr.mxu0 0.0
    %257 = vmatpush2.msra.mxu0 0.0
    %258 = vmatprep.subr.mxu0 0.0
    %259 = vmatpush2.msra.mxu0 0.0
    %260 = vmatprep.subr.mxu0 0.0
    %261 = vmatpush2.msra.mxu0 0.0
    %262 = vmatprep.subr.mxu0 0.0
    %263 = vmatpush2.msra.mxu0 0.0
    %264 = vmatprep.subr.mxu0 0.0
    %265 = vmatpush2.msra.mxu0 0.0
    %266 = vmatprep.subr.mxu0 0.0
    %267 = vmatpush2.msra.mxu0 0.0
    %268 = vmatprep.subr.mxu0 0.0
    %269 = vmatpush2.msra.mxu0 0.0
    %270 = vmatprep.subr.mxu0 0.0
    %271 = vmatpush2.msra.mxu0 0.0
    %272 = vmatprep.subr.mxu0 0.0
    %273 = vmatpush2.msra.mxu0 0.0
    %274 = vmatprep.subr.mxu0 0.0
    %275 = vmatpush2.msra.mxu0 0.0
    %276 = vmatprep.mubr.f32.mxu0 0.0
    %277 = vmatmul.mubr.f32.gmra.mxu0 %v141
    %v278 = vpop.f32.mrf.mxu0
    %v279 = vadd.f32 0.0, %v278
    %v280 = vpop.f32.mrf.mxu0
    %v281 = vadd.f32 0.0, %v280
    %282 = vmatprep.mubr.f32.mxu0 0.0
    %283 = vmatmul.mubr.f32.gmra.mxu0 %v144
    %v284 = vpop.f32.mrf.mxu0
    %v285 = vadd.f32 0.0, %v284
    %v286 = vpop.f32.mrf.mxu0
    %v287 = vadd.f32 0.0, %v286
    %288 = vmatprep.mubr.f32.mxu0 0.0
    %289 = vmatmul.mubr.f32.gmra.mxu0 %v147
    %v290 = vpop.f32.mrf.mxu0
    %v291 = vadd.f32 0.0, %v290
    %v292 = vpop.f32.mrf.mxu0
    %v293 = vadd.f32 0.0, %v292
    %294 = vmatprep.mubr.f32.mxu0 0.0
    %295 = vmatmul.mubr.f32.gmra.mxu0 %v150
    %v296 = vpop.f32.mrf.mxu0
    %v297 = vadd.f32 0.0, %v296
    %v298 = vpop.f32.mrf.mxu0
    %v299 = vadd.f32 0.0, %v298
    %300 = vmatprep.mubr.f32.mxu0 0.0
    %301 = vmatmul.mubr.f32.gmra.mxu0 %v153
    %v302 = vpop.f32.mrf.mxu0
    %v303 = vadd.f32 0.0, %v302
    %v304 = vpop.f32.mrf.mxu0
    %v305 = vadd.f32 0.0, %v304
    %306 = vmatprep.mubr.f32.mxu0 0.0
    %307 = vmatmul.mubr.f32.gmra.mxu0 %v156
    %v308 = vpop.f32.mrf.mxu0
    %v309 = vadd.f32 0.0, %v308
    %v310 = vpop.f32.mrf.mxu0
    %v311 = vadd.f32 0.0, %v310
    %312 = vmatprep.mubr.f32.mxu0 0.0
    %313 = vmatmul.mubr.f32.gmra.mxu0 %v159
    %v314 = vpop.f32.mrf.mxu0
    %v315 = vadd.f32 0.0, %v314
    %v316 = vpop.f32.mrf.mxu0
    %v317 = vadd.f32 0.0, %v316
    %318 = vmatprep.mubr.f32.mxu0 0.0
    %319 = vmatmul.mubr.f32.gmra.mxu0 %v162
    %v320 = vpop.f32.mrf.mxu0
    %v321 = vadd.f32 0.0, %v320
    %v322 = vpop.f32.mrf.mxu0
    %v323 = vadd.f32 0.0, %v322
    %324 = vmatprep.mubr.f32.mxu0 0.0
    %325 = vmatmul.mubr.f32.gmra.mxu0 %v165
    %v326 = vpop.f32.mrf.mxu0
    %v327 = vadd.f32 0.0, %v326
    %v328 = vpop.f32.mrf.mxu0
    %v329 = vadd.f32 0.0, %v328
    %330 = vmatprep.mubr.f32.mxu0 0.0
    %331 = vmatmul.mubr.f32.gmra.mxu0 %v168
    %v332 = vpop.f32.mrf.mxu0
    %v333 = vadd.f32 0.0, %v332
    %v334 = vpop.f32.mrf.mxu0
    %v335 = vadd.f32 0.0, %v334
    %336 = vmatprep.mubr.f32.mxu0 0.0
    %337 = vmatmul.mubr.f32.gmra.mxu0 %v171
    %v338 = vpop.f32.mrf.mxu0
    %v339 = vadd.f32 0.0, %v338
    %v340 = vpop.f32.mrf.mxu0
    %v341 = vadd.f32 0.0, %v340
    %342 = vmatprep.mubr.f32.mxu0 0.0
    %343 = vmatmul.mubr.f32.gmra.mxu0 %v174
    %v344 = vpop.f32.mrf.mxu0
    %v345 = vadd.f32 0.0, %v344
    %v346 = vpop.f32.mrf.mxu0
    %v347 = vadd.f32 0.0, %v346
    %348 = vmatprep.mubr.f32.mxu0 0.0
    %349 = vmatmul.mubr.f32.gmra.mxu0 %v177
    %v350 = vpop.f32.mrf.mxu0
    %v351 = vadd.f32 0.0, %v350
    %v352 = vpop.f32.mrf.mxu0
    %v353 = vadd.f32 0.0, %v352
    %354 = vmatprep.mubr.f32.mxu0 0.0
    %355 = vmatmul.mubr.f32.gmra.mxu0 %v180
    %v356 = vpop.f32.mrf.mxu0
    %v357 = vadd.f32 0.0, %v356
    %v358 = vpop.f32.mrf.mxu0
    %v359 = vadd.f32 0.0, %v358
    %360 = vmatprep.mubr.f32.mxu0 0.0
    %361 = vmatmul.mubr.f32.gmra.mxu0 %v183
    %v362 = vpop.f32.mrf.mxu0
    %v363 = vadd.f32 0.0, %v362
    %v364 = vpop.f32.mrf.mxu0
    %v365 = vadd.f32 0.0, %v364
    %366 = vmatprep.mubr.f32.mxu0 0.0
    %367 = vmatmul.mubr.f32.gmra.mxu0 %v186
    %v368 = vpop.f32.mrf.mxu0
    %v369 = vadd.f32 0.0, %v368
    %v370 = vpop.f32.mrf.mxu0
    %v371 = vadd.f32 0.0, %v370
    %372 = vmatprep.mubr.f32.mxu0 0.0
    %373 = vmatmul.mubr.f32.gmra.mxu0 %v189
    %v374 = vpop.f32.mrf.mxu0
    %v375 = vadd.f32 0.0, %v374
    %v376 = vpop.f32.mrf.mxu0
    %v377 = vadd.f32 0.0, %v376
    %378 = vmatprep.mubr.f32.mxu0 0.0
    %379 = vmatmul.mubr.f32.gmra.mxu0 %v192
    %v380 = vpop.f32.mrf.mxu0
    %v381 = vadd.f32 0.0, %v380
    %v382 = vpop.f32.mrf.mxu0
    %v383 = vadd.f32 0.0, %v382
    %384 = vmatprep.mubr.f32.mxu0 0.0
    %385 = vmatmul.mubr.f32.gmra.mxu0 %v195
    %v386 = vpop.f32.mrf.mxu0
    %v387 = vadd.f32 0.0, %v386
    %v388 = vpop.f32.mrf.mxu0
    %v389 = vadd.f32 0.0, %v388
    %390 = vmatprep.mubr.f32.mxu0 0.0
    %391 = vmatmul.mubr.f32.gmra.mxu0 %v198
    %v392 = vpop.f32.mrf.mxu0
    %v393 = vadd.f32 0.0, %v392
    %v394 = vpop.f32.mrf.mxu0
    %v395 = vadd.f32 0.0, %v394
    %396 = vmatprep.mubr.f32.mxu0 0.0
    %397 = vmatmul.mubr.f32.gmra.mxu0 %v201
    %v398 = vpop.f32.mrf.mxu0
    %v399 = vadd.f32 0.0, %v398
    %v400 = vpop.f32.mrf.mxu0
    %v401 = vadd.f32 0.0, %v400
    %402 = vmatprep.mubr.f32.mxu0 0.0
    %403 = vmatmul.mubr.f32.gmra.mxu0 %v204
    %v404 = vpop.f32.mrf.mxu0
    %v405 = vadd.f32 0.0, %v404
    %v406 = vpop.f32.mrf.mxu0
    %v407 = vadd.f32 0.0, %v406
    %408 = vmatprep.mubr.f32.mxu0 0.0
    %409 = vmatmul.mubr.f32.gmra.mxu0 %v207
    %v410 = vpop.f32.mrf.mxu0
    %v411 = vadd.f32 0.0, %v410
    %v412 = vpop.f32.mrf.mxu0
    %v413 = vadd.f32 0.0, %v412
    %414 = vmatprep.mubr.f32.mxu0 0.0
    %415 = vmatmul.mubr.f32.gmra.mxu0 %v210
    %v416 = vpop.f32.mrf.mxu0
    %v417 = vadd.f32 0.0, %v416
    %v418 = vpop.f32.mrf.mxu0
    %v419 = vadd.f32 0.0, %v418
    %420 = vdwg.mxu0
    %v422 = vsel %vm139, %v73, 0
    %v425 = vsel %vm139, %v74, 0
    %v428 = vsel %vm139, %v75, 0
    %v431 = vsel %vm139, %v76, 0
    %v434 = vsel %vm139, %v77, 0
    %v437 = vsel %vm139, %v78, 0
    %v440 = vsel %vm139, %v79, 0
    %v443 = vsel %vm139, %v80, 0
    %v446 = vsel %vm139, %v81, 0
    %v449 = vsel %vm139, %v82, 0
    %v452 = vsel %vm139, %v83, 0
    %v455 = vsel %vm139, %v84, 0
    %v458 = vsel %vm139, %v85, 0
    %v461 = vsel %vm139, %v86, 0
    %v464 = vsel %vm139, %v87, 0
    %v467 = vsel %vm139, %v88, 0
    %v470 = vsel %vm139, %v89, 0
    %v473 = vsel %vm139, %v90, 0
    %v476 = vsel %vm139, %v91, 0
    %v479 = vsel %vm139, %v92, 0
    %v482 = vsel %vm139, %v93, 0
    %v485 = vsel %vm139, %v94, 0
    %v488 = vsel %vm139, %v95, 0
    %v491 = vsel %vm139, %v96, 0
    %493 = vmatprep.subr.mxu0 0.0
    %494 = vmatpush1.msra.mxu0 0.0
    %495 = vmatprep.subr.mxu0 0.0
    %496 = vmatpush1.msra.mxu0 0.0
    %497 = vmatprep.subr.mxu0 0.0
    %498 = vmatpush1.msra.mxu0 0.0
    %499 = vmatprep.subr.mxu0 0.0
    %500 = vmatpush1.msra.mxu0 0.0
    %501 = vmatprep.subr.mxu0 0.0
    %502 = vmatpush1.msra.mxu0 0.0
    %503 = vmatprep.subr.mxu0 0.0
    %504 = vmatpush1.msra.mxu0 0.0
    %505 = vmatprep.subr.mxu0 0.0
    %506 = vmatpush1.msra.mxu0 0.0
    %507 = vmatprep.subr.mxu0 0.0
    %508 = vmatpush1.msra.mxu0 0.0
    %509 = vmatprep.subr.mxu0 0.0
    %510 = vmatpush1.msra.mxu0 0.0
    %511 = vmatprep.subr.mxu0 0.0
    %512 = vmatpush1.msra.mxu0 0.0
    %513 = vmatprep.subr.mxu0 0.0
    %514 = vmatpush1.msra.mxu0 0.0
    %515 = vmatprep.subr.mxu0 0.0
    %516 = vmatpush1.msra.mxu0 0.0
    %517 = vmatprep.subr.mxu0 %v104
    %518 = vmatpush1.msra.mxu0 %v103
    %519 = vmatprep.subr.mxu0 %v102
    %520 = vmatpush1.msra.mxu0 %v101
    %521 = vmatprep.subr.mxu0 %v100
    %522 = vmatpush1.msra.mxu0 %v99
    %523 = vmatprep.subr.mxu0 %v98
    %524 = vmatpush1.msra.mxu0 %v97
    %525 = vmatprep.subr.mxu0 0.0
    %526 = vmatpush2.msra.mxu0 0.0
    %527 = vmatprep.subr.mxu0 0.0
    %528 = vmatpush2.msra.mxu0 0.0
    %529 = vmatprep.subr.mxu0 0.0
    %530 = vmatpush2.msra.mxu0 0.0
    %531 = vmatprep.subr.mxu0 0.0
    %532 = vmatpush2.msra.mxu0 0.0
    %533 = vmatprep.subr.mxu0 0.0
    %534 = vmatpush2.msra.mxu0 0.0
    %535 = vmatprep.subr.mxu0 0.0
    %536 = vmatpush2.msra.mxu0 0.0
    %537 = vmatprep.subr.mxu0 0.0
    %538 = vmatpush2.msra.mxu0 0.0
    %539 = vmatprep.subr.mxu0 0.0
    %540 = vmatpush2.msra.mxu0 0.0
    %541 = vmatprep.subr.mxu0 0.0
    %542 = vmatpush2.msra.mxu0 0.0
    %543 = vmatprep.subr.mxu0 0.0
    %544 = vmatpush2.msra.mxu0 0.0
    %545 = vmatprep.subr.mxu0 0.0
    %546 = vmatpush2.msra.mxu0 0.0
    %547 = vmatprep.subr.mxu0 0.0
    %548 = vmatpush2.msra.mxu0 0.0
    %549 = vmatprep.subr.mxu0 0.0
    %550 = vmatpush2.msra.mxu0 0.0
    %551 = vmatprep.subr.mxu0 0.0
    %552 = vmatpush2.msra.mxu0 0.0
    %553 = vmatprep.subr.mxu0 0.0
    %554 = vmatpush2.msra.mxu0 0.0
    %555 = vmatprep.subr.mxu0 0.0
    %556 = vmatpush2.msra.mxu0 0.0
    %557 = vmatprep.mubr.f32.mxu0 0.0
    %558 = vmatmul.mubr.f32.gmra.mxu0 %v422
    %v559 = vpop.f32.mrf.mxu0
    %v560 = vadd.f32 %v279, %v559
    %v561 = vpop.f32.mrf.mxu0
    %v562 = vadd.f32 %v281, %v561
    %563 = vmatprep.mubr.f32.mxu0 0.0
    %564 = vmatmul.mubr.f32.gmra.mxu0 %v425
    %v565 = vpop.f32.mrf.mxu0
    %v566 = vadd.f32 %v285, %v565
    %v567 = vpop.f32.mrf.mxu0
    %v568 = vadd.f32 %v287, %v567
    %569 = vmatprep.mubr.f32.mxu0 0.0
    %570 = vmatmul.mubr.f32.gmra.mxu0 %v428
    %v571 = vpop.f32.mrf.mxu0
    %v572 = vadd.f32 %v291, %v571
    %v573 = vpop.f32.mrf.mxu0
    %v574 = vadd.f32 %v293, %v573
    %575 = vmatprep.mubr.f32.mxu0 0.0
    %576 = vmatmul.mubr.f32.gmra.mxu0 %v431
    %v577 = vpop.f32.mrf.mxu0
    %v578 = vadd.f32 %v297, %v577
    %v579 = vpop.f32.mrf.mxu0
    %v580 = vadd.f32 %v299, %v579
    %581 = vmatprep.mubr.f32.mxu0 0.0
    %582 = vmatmul.mubr.f32.gmra.mxu0 %v434
    %v583 = vpop.f32.mrf.mxu0
    %v584 = vadd.f32 %v303, %v583
    %v585 = vpop.f32.mrf.mxu0
    %v586 = vadd.f32 %v305, %v585
    %587 = vmatprep.mubr.f32.mxu0 0.0
    %588 = vmatmul.mubr.f32.gmra.mxu0 %v437
    %v589 = vpop.f32.mrf.mxu0
    %v590 = vadd.f32 %v309, %v589
    %v591 = vpop.f32.mrf.mxu0
    %v592 = vadd.f32 %v311, %v591
    %593 = vmatprep.mubr.f32.mxu0 0.0
    %594 = vmatmul.mubr.f32.gmra.mxu0 %v440
    %v595 = vpop.f32.mrf.mxu0
    %v596 = vadd.f32 %v315, %v595
    %v597 = vpop.f32.mrf.mxu0
    %v598 = vadd.f32 %v317, %v597
    %599 = vmatprep.mubr.f32.mxu0 0.0
    %600 = vmatmul.mubr.f32.gmra.mxu0 %v443
    %v601 = vpop.f32.mrf.mxu0
    %v602 = vadd.f32 %v321, %v601
    %v603 = vpop.f32.mrf.mxu0
    %v604 = vadd.f32 %v323, %v603
    %605 = vmatprep.mubr.f32.mxu0 0.0
    %606 = vmatmul.mubr.f32.gmra.mxu0 %v446
    %v607 = vpop.f32.mrf.mxu0
    %v608 = vadd.f32 %v327, %v607
    %v609 = vpop.f32.mrf.mxu0
    %v610 = vadd.f32 %v329, %v609
    %611 = vmatprep.mubr.f32.mxu0 0.0
    %612 = vmatmul.mubr.f32.gmra.mxu0 %v449
    %v613 = vpop.f32.mrf.mxu0
    %v614 = vadd.f32 %v333, %v613
    %v615 = vpop.f32.mrf.mxu0
    %v616 = vadd.f32 %v335, %v615
    %617 = vmatprep.mubr.f32.mxu0 0.0
    %618 = vmatmul.mubr.f32.gmra.mxu0 %v452
    %v619 = vpop.f32.mrf.mxu0
    %v620 = vadd.f32 %v339, %v619
    %v621 = vpop.f32.mrf.mxu0
    %v622 = vadd.f32 %v341, %v621
    %623 = vmatprep.mubr.f32.mxu0 0.0
    %624 = vmatmul.mubr.f32.gmra.mxu0 %v455
    %v625 = vpop.f32.mrf.mxu0
    %v626 = vadd.f32 %v345, %v625
    %v627 = vpop.f32.mrf.mxu0
    %v628 = vadd.f32 %v347, %v627
    %629 = vmatprep.mubr.f32.mxu0 0.0
    %630 = vmatmul.mubr.f32.gmra.mxu0 %v458
    %v631 = vpop.f32.mrf.mxu0
    %v632 = vadd.f32 %v351, %v631
    %v633 = vpop.f32.mrf.mxu0
    %v634 = vadd.f32 %v353, %v633
    %635 = vmatprep.mubr.f32.mxu0 0.0
    %636 = vmatmul.mubr.f32.gmra.mxu0 %v461
    %v637 = vpop.f32.mrf.mxu0
    %v638 = vadd.f32 %v357, %v637
    %v639 = vpop.f32.mrf.mxu0
    %v640 = vadd.f32 %v359, %v639
    %641 = vmatprep.mubr.f32.mxu0 0.0
    %642 = vmatmul.mubr.f32.gmra.mxu0 %v464
    %v643 = vpop.f32.mrf.mxu0
    %v644 = vadd.f32 %v363, %v643
    %v645 = vpop.f32.mrf.mxu0
    %v646 = vadd.f32 %v365, %v645
    %647 = vmatprep.mubr.f32.mxu0 0.0
    %648 = vmatmul.mubr.f32.gmra.mxu0 %v467
    %v649 = vpop.f32.mrf.mxu0
    %v650 = vadd.f32 %v369, %v649
    %v651 = vpop.f32.mrf.mxu0
    %v652 = vadd.f32 %v371, %v651
    %653 = vmatprep.mubr.f32.mxu0 0.0
    %654 = vmatmul.mubr.f32.gmra.mxu0 %v470
    %v655 = vpop.f32.mrf.mxu0
    %v656 = vadd.f32 %v375, %v655
    %v657 = vpop.f32.mrf.mxu0
    %v658 = vadd.f32 %v377, %v657
    %659 = vmatprep.mubr.f32.mxu0 0.0
    %660 = vmatmul.mubr.f32.gmra.mxu0 %v473
    %v661 = vpop.f32.mrf.mxu0
    %v662 = vadd.f32 %v381, %v661
    %v663 = vpop.f32.mrf.mxu0
    %v664 = vadd.f32 %v383, %v663
    %665 = vmatprep.mubr.f32.mxu0 0.0
    %666 = vmatmul.mubr.f32.gmra.mxu0 %v476
    %v667 = vpop.f32.mrf.mxu0
    %v668 = vadd.f32 %v387, %v667
    %v669 = vpop.f32.mrf.mxu0
    %v670 = vadd.f32 %v389, %v669
    %671 = vmatprep.mubr.f32.mxu0 0.0
    %672 = vmatmul.mubr.f32.gmra.mxu0 %v479
    %v673 = vpop.f32.mrf.mxu0
    %v674 = vadd.f32 %v393, %v673
    %v675 = vpop.f32.mrf.mxu0
    %v676 = vadd.f32 %v395, %v675
    %677 = vmatprep.mubr.f32.mxu0 0.0
    %678 = vmatmul.mubr.f32.gmra.mxu0 %v482
    %v679 = vpop.f32.mrf.mxu0
    %v680 = vadd.f32 %v399, %v679
    %v681 = vpop.f32.mrf.mxu0
    %v682 = vadd.f32 %v401, %v681
    %683 = vmatprep.mubr.f32.mxu0 0.0
    %684 = vmatmul.mubr.f32.gmra.mxu0 %v485
    %v685 = vpop.f32.mrf.mxu0
    %v686 = vadd.f32 %v405, %v685
    %v687 = vpop.f32.mrf.mxu0
    %v688 = vadd.f32 %v407, %v687
    %689 = vmatprep.mubr.f32.mxu0 0.0
    %690 = vmatmul.mubr.f32.gmra.mxu0 %v488
    %v691 = vpop.f32.mrf.mxu0
    %v692 = vadd.f32 %v411, %v691
    %v693 = vpop.f32.mrf.mxu0
    %v694 = vadd.f32 %v413, %v693
    %695 = vmatprep.mubr.f32.mxu0 0.0
    %696 = vmatmul.mubr.f32.gmra.mxu0 %v491
    %v697 = vpop.f32.mrf.mxu0
    %v698 = vadd.f32 %v417, %v697
    %v699 = vpop.f32.mrf.mxu0
    %v700 = vadd.f32 %v419, %v699
    %701 = vdwg.mxu0
    %s702 = scalar_lea.vmem %s0, 16
    %v703 = vld [vmem:[%s702] sm:$0xff]
    %v704 = vld [vmem:[%s702 + $0x8] sm:$0xff]
    %v705 = vld [vmem:[%s702 + $0x10] sm:$0xff]
    %v706 = vld [vmem:[%s702 + $0x18] sm:$0xff]
    %v707 = vld [vmem:[%s702 + $0x20] sm:$0xff]
    %v708 = vld [vmem:[%s702 + $0x28] sm:$0xff]
    %v709 = vld [vmem:[%s702 + $0x30] sm:$0xff]
    %v710 = vld [vmem:[%s702 + $0x38] sm:$0xff]
    %v711 = vld [vmem:[%s702 + $0x40] sm:$0xff]
    %v712 = vld [vmem:[%s702 + $0x48] sm:$0xff]
    %v713 = vld [vmem:[%s702 + $0x50] sm:$0xff]
    %v714 = vld [vmem:[%s702 + $0x58] sm:$0xff]
    %v715 = vld [vmem:[%s702 + $0x60] sm:$0xff]
    %v716 = vld [vmem:[%s702 + $0x68] sm:$0xff]
    %v717 = vld [vmem:[%s702 + $0x70] sm:$0xff]
    %v718 = vld [vmem:[%s702 + $0x78] sm:$0xff]
    %v719 = vld [vmem:[%s702 + $0x80] sm:$0xff]
    %v720 = vld [vmem:[%s702 + $0x88] sm:$0xff]
    %v721 = vld [vmem:[%s702 + $0x90] sm:$0xff]
    %v722 = vld [vmem:[%s702 + $0x98] sm:$0xff]
    %v723 = vld [vmem:[%s702 + $0xa0] sm:$0xff]
    %v724 = vld [vmem:[%s702 + $0xa8] sm:$0xff]
    %v725 = vld [vmem:[%s702 + $0xb0] sm:$0xff]
    %v726 = vld [vmem:[%s702 + $0xb8] sm:$0xff]
    %s727 = scalar_lea.vmem %s1, 128
    %v728 = vld [vmem:[%s727] sm:$0xff]
    %v729 = vld [vmem:[%s727 + $0x8] sm:$0xff]
    %v730 = vld [vmem:[%s727 + $0x10] sm:$0xff]
    %v731 = vld [vmem:[%s727 + $0x18] sm:$0xff]
    %v732 = vld [vmem:[%s727 + $0x20] sm:$0xff]
    %v733 = vld [vmem:[%s727 + $0x28] sm:$0xff]
    %v734 = vld [vmem:[%s727 + $0x30] sm:$0xff]
    %v735 = vld [vmem:[%s727 + $0x38] sm:$0xff]
    %v737 = vsel %vm139, %v703, 0
    %v740 = vsel %vm139, %v704, 0
    %v743 = vsel %vm139, %v705, 0
    %v746 = vsel %vm139, %v706, 0
    %v749 = vsel %vm139, %v707, 0
    %v752 = vsel %vm139, %v708, 0
    %v755 = vsel %vm139, %v709, 0
    %v758 = vsel %vm139, %v710, 0
    %v761 = vsel %vm139, %v711, 0
    %v764 = vsel %vm139, %v712, 0
    %v767 = vsel %vm139, %v713, 0
    %v770 = vsel %vm139, %v714, 0
    %v773 = vsel %vm139, %v715, 0
    %v776 = vsel %vm139, %v716, 0
    %v779 = vsel %vm139, %v717, 0
    %v782 = vsel %vm139, %v718, 0
    %v785 = vsel %vm139, %v719, 0
    %v788 = vsel %vm139, %v720, 0
    %v791 = vsel %vm139, %v721, 0
    %v794 = vsel %vm139, %v722, 0
    %v797 = vsel %vm139, %v723, 0
    %v800 = vsel %vm139, %v724, 0
    %v803 = vsel %vm139, %v725, 0
    %v806 = vsel %vm139, %v726, 0
    %808 = vmatprep.subr.mxu0 0.0
    %809 = vmatpush1.msra.mxu0 0.0
    %810 = vmatprep.subr.mxu0 0.0
    %811 = vmatpush1.msra.mxu0 0.0
    %812 = vmatprep.subr.mxu0 0.0
    %813 = vmatpush1.msra.mxu0 0.0
    %814 = vmatprep.subr.mxu0 0.0
    %815 = vmatpush1.msra.mxu0 0.0
    %816 = vmatprep.subr.mxu0 0.0
    %817 = vmatpush1.msra.mxu0 0.0
    %818 = vmatprep.subr.mxu0 0.0
    %819 = vmatpush1.msra.mxu0 0.0
    %820 = vmatprep.subr.mxu0 0.0
    %821 = vmatpush1.msra.mxu0 0.0
    %822 = vmatprep.subr.mxu0 0.0
    %823 = vmatpush1.msra.mxu0 0.0
    %824 = vmatprep.subr.mxu0 0.0
    %825 = vmatpush1.msra.mxu0 0.0
    %826 = vmatprep.subr.mxu0 0.0
    %827 = vmatpush1.msra.mxu0 0.0
    %828 = vmatprep.subr.mxu0 0.0
    %829 = vmatpush1.msra.mxu0 0.0
    %830 = vmatprep.subr.mxu0 0.0
    %831 = vmatpush1.msra.mxu0 0.0
    %832 = vmatprep.subr.mxu0 %v735
    %833 = vmatpush1.msra.mxu0 %v734
    %834 = vmatprep.subr.mxu0 %v733
    %835 = vmatpush1.msra.mxu0 %v732
    %836 = vmatprep.subr.mxu0 %v731
    %837 = vmatpush1.msra.mxu0 %v730
    %838 = vmatprep.subr.mxu0 %v729
    %839 = vmatpush1.msra.mxu0 %v728
    %840 = vmatprep.subr.mxu0 0.0
    %841 = vmatpush2.msra.mxu0 0.0
    %842 = vmatprep.subr.mxu0 0.0
    %843 = vmatpush2.msra.mxu0 0.0
    %844 = vmatprep.subr.mxu0 0.0
    %845 = vmatpush2.msra.mxu0 0.0
    %846 = vmatprep.subr.mxu0 0.0
    %847 = vmatpush2.msra.mxu0 0.0
    %848 = vmatprep.subr.mxu0 0.0
    %849 = vmatpush2.msra.mxu0 0.0
    %850 = vmatprep.subr.mxu0 0.0
    %851 = vmatpush2.msra.mxu0 0.0
    %852 = vmatprep.subr.mxu0 0.0
    %853 = vmatpush2.msra.mxu0 0.0
    %854 = vmatprep.subr.mxu0 0.0
    %855 = vmatpush2.msra.mxu0 0.0
    %856 = vmatprep.subr.mxu0 0.0
    %857 = vmatpush2.msra.mxu0 0.0
    %858 = vmatprep.subr.mxu0 0.0
    %859 = vmatpush2.msra.mxu0 0.0
    %860 = vmatprep.subr.mxu0 0.0
    %861 = vmatpush2.msra.mxu0 0.0
    %862 = vmatprep.subr.mxu0 0.0
    %863 = vmatpush2.msra.mxu0 0.0
    %864 = vmatprep.subr.mxu0 0.0
    %865 = vmatpush2.msra.mxu0 0.0
    %866 = vmatprep.subr.mxu0 0.0
    %867 = vmatpush2.msra.mxu0 0.0
    %868 = vmatprep.subr.mxu0 0.0
    %869 = vmatpush2.msra.mxu0 0.0
    %870 = vmatprep.subr.mxu0 0.0
    %871 = vmatpush2.msra.mxu0 0.0
    %872 = vmatprep.mubr.f32.mxu0 0.0
    %873 = vmatmul.mubr.f32.gmra.mxu0 %v737
    %v874 = vpop.f32.mrf.mxu0
    %v875 = vadd.f32 0.0, %v874
    %v876 = vpop.f32.mrf.mxu0
    %v877 = vadd.f32 0.0, %v876
    %878 = vmatprep.mubr.f32.mxu0 0.0
    %879 = vmatmul.mubr.f32.gmra.mxu0 %v740
    %v880 = vpop.f32.mrf.mxu0
    %v881 = vadd.f32 0.0, %v880
    %v882 = vpop.f32.mrf.mxu0
    %v883 = vadd.f32 0.0, %v882
    %884 = vmatprep.mubr.f32.mxu0 0.0
    %885 = vmatmul.mubr.f32.gmra.mxu0 %v743
    %v886 = vpop.f32.mrf.mxu0
    %v887 = vadd.f32 0.0, %v886
    %v888 = vpop.f32.mrf.mxu0
    %v889 = vadd.f32 0.0, %v888
    %890 = vmatprep.mubr.f32.mxu0 0.0
    %891 = vmatmul.mubr.f32.gmra.mxu0 %v746
    %v892 = vpop.f32.mrf.mxu0
    %v893 = vadd.f32 0.0, %v892
    %v894 = vpop.f32.mrf.mxu0
    %v895 = vadd.f32 0.0, %v894
    %896 = vmatprep.mubr.f32.mxu0 0.0
    %897 = vmatmul.mubr.f32.gmra.mxu0 %v749
    %v898 = vpop.f32.mrf.mxu0
    %v899 = vadd.f32 0.0, %v898
    %v900 = vpop.f32.mrf.mxu0
    %v901 = vadd.f32 0.0, %v900
    %902 = vmatprep.mubr.f32.mxu0 0.0
    %903 = vmatmul.mubr.f32.gmra.mxu0 %v752
    %v904 = vpop.f32.mrf.mxu0
    %v905 = vadd.f32 0.0, %v904
    %v906 = vpop.f32.mrf.mxu0
    %v907 = vadd.f32 0.0, %v906
    %908 = vmatprep.mubr.f32.mxu0 0.0
    %909 = vmatmul.mubr.f32.gmra.mxu0 %v755
    %v910 = vpop.f32.mrf.mxu0
    %v911 = vadd.f32 0.0, %v910
    %v912 = vpop.f32.mrf.mxu0
    %v913 = vadd.f32 0.0, %v912
    %914 = vmatprep.mubr.f32.mxu0 0.0
    %915 = vmatmul.mubr.f32.gmra.mxu0 %v758
    %v916 = vpop.f32.mrf.mxu0
    %v917 = vadd.f32 0.0, %v916
    %v918 = vpop.f32.mrf.mxu0
    %v919 = vadd.f32 0.0, %v918
    %920 = vmatprep.mubr.f32.mxu0 0.0
    %921 = vmatmul.mubr.f32.gmra.mxu0 %v761
    %v922 = vpop.f32.mrf.mxu0
    %v923 = vadd.f32 0.0, %v922
    %v924 = vpop.f32.mrf.mxu0
    %v925 = vadd.f32 0.0, %v924
    %926 = vmatprep.mubr.f32.mxu0 0.0
    %927 = vmatmul.mubr.f32.gmra.mxu0 %v764
    %v928 = vpop.f32.mrf.mxu0
    %v929 = vadd.f32 0.0, %v928
    %v930 = vpop.f32.mrf.mxu0
    %v931 = vadd.f32 0.0, %v930
    %932 = vmatprep.mubr.f32.mxu0 0.0
    %933 = vmatmul.mubr.f32.gmra.mxu0 %v767
    %v934 = vpop.f32.mrf.mxu0
    %v935 = vadd.f32 0.0, %v934
    %v936 = vpop.f32.mrf.mxu0
    %v937 = vadd.f32 0.0, %v936
    %938 = vmatprep.mubr.f32.mxu0 0.0
    %939 = vmatmul.mubr.f32.gmra.mxu0 %v770
    %v940 = vpop.f32.mrf.mxu0
    %v941 = vadd.f32 0.0, %v940
    %v942 = vpop.f32.mrf.mxu0
    %v943 = vadd.f32 0.0, %v942
    %944 = vmatprep.mubr.f32.mxu0 0.0
    %945 = vmatmul.mubr.f32.gmra.mxu0 %v773
    %v946 = vpop.f32.mrf.mxu0
    %v947 = vadd.f32 0.0, %v946
    %v948 = vpop.f32.mrf.mxu0
    %v949 = vadd.f32 0.0, %v948
    %950 = vmatprep.mubr.f32.mxu0 0.0
    %951 = vmatmul.mubr.f32.gmra.mxu0 %v776
    %v952 = vpop.f32.mrf.mxu0
    %v953 = vadd.f32 0.0, %v952
    %v954 = vpop.f32.mrf.mxu0
    %v955 = vadd.f32 0.0, %v954
    %956 = vmatprep.mubr.f32.mxu0 0.0
    %957 = vmatmul.mubr.f32.gmra.mxu0 %v779
    %v958 = vpop.f32.mrf.mxu0
    %v959 = vadd.f32 0.0, %v958
    %v960 = vpop.f32.mrf.mxu0
    %v961 = vadd.f32 0.0, %v960
    %962 = vmatprep.mubr.f32.mxu0 0.0
    %963 = vmatmul.mubr.f32.gmra.mxu0 %v782
    %v964 = vpop.f32.mrf.mxu0
    %v965 = vadd.f32 0.0, %v964
    %v966 = vpop.f32.mrf.mxu0
    %v967 = vadd.f32 0.0, %v966
    %968 = vmatprep.mubr.f32.mxu0 0.0
    %969 = vmatmul.mubr.f32.gmra.mxu0 %v785
    %v970 = vpop.f32.mrf.mxu0
    %v971 = vadd.f32 0.0, %v970
    %v972 = vpop.f32.mrf.mxu0
    %v973 = vadd.f32 0.0, %v972
    %974 = vmatprep.mubr.f32.mxu0 0.0
    %975 = vmatmul.mubr.f32.gmra.mxu0 %v788
    %v976 = vpop.f32.mrf.mxu0
    %v977 = vadd.f32 0.0, %v976
    %v978 = vpop.f32.mrf.mxu0
    %v979 = vadd.f32 0.0, %v978
    %980 = vmatprep.mubr.f32.mxu0 0.0
    %981 = vmatmul.mubr.f32.gmra.mxu0 %v791
    %v982 = vpop.f32.mrf.mxu0
    %v983 = vadd.f32 0.0, %v982
    %v984 = vpop.f32.mrf.mxu0
    %v985 = vadd.f32 0.0, %v984
    %986 = vmatprep.mubr.f32.mxu0 0.0
    %987 = vmatmul.mubr.f32.gmra.mxu0 %v794
    %v988 = vpop.f32.mrf.mxu0
    %v989 = vadd.f32 0.0, %v988
    %v990 = vpop.f32.mrf.mxu0
    %v991 = vadd.f32 0.0, %v990
    %992 = vmatprep.mubr.f32.mxu0 0.0
    %993 = vmatmul.mubr.f32.gmra.mxu0 %v797
    %v994 = vpop.f32.mrf.mxu0
    %v995 = vadd.f32 0.0, %v994
    %v996 = vpop.f32.mrf.mxu0
    %v997 = vadd.f32 0.0, %v996
    %998 = vmatprep.mubr.f32.mxu0 0.0
    %999 = vmatmul.mubr.f32.gmra.mxu0 %v800
    %v1000 = vpop.f32.mrf.mxu0
    %v1001 = vadd.f32 0.0, %v1000
    %v1002 = vpop.f32.mrf.mxu0
    %v1003 = vadd.f32 0.0, %v1002
    %1004 = vmatprep.mubr.f32.mxu0 0.0
    %1005 = vmatmul.mubr.f32.gmra.mxu0 %v803
    %v1006 = vpop.f32.mrf.mxu0
    %v1007 = vadd.f32 0.0, %v1006
    %v1008 = vpop.f32.mrf.mxu0
    %v1009 = vadd.f32 0.0, %v1008
    %1010 = vmatprep.mubr.f32.mxu0 0.0
    %1011 = vmatmul.mubr.f32.gmra.mxu0 %v806
    %v1012 = vpop.f32.mrf.mxu0
    %v1013 = vadd.f32 0.0, %v1012
    %v1014 = vpop.f32.mrf.mxu0
    %v1015 = vadd.f32 0.0, %v1014
    %1016 = vdwg.mxu0
    %v1017 = vadd.f32 %v560, %v875
    %v1018 = vadd.f32 %v562, %v877
    %v1019 = vadd.f32 %v566, %v881
    %v1020 = vadd.f32 %v568, %v883
    %v1021 = vadd.f32 %v572, %v887
    %v1022 = vadd.f32 %v574, %v889
    %v1023 = vadd.f32 %v578, %v893
    %v1024 = vadd.f32 %v580, %v895
    %v1025 = vadd.f32 %v584, %v899
    %v1026 = vadd.f32 %v586, %v901
    %v1027 = vadd.f32 %v590, %v905
    %v1028 = vadd.f32 %v592, %v907
    %v1029 = vadd.f32 %v596, %v911
    %v1030 = vadd.f32 %v598, %v913
    %v1031 = vadd.f32 %v602, %v917
    %v1032 = vadd.f32 %v604, %v919
    %v1033 = vadd.f32 %v608, %v923
    %v1034 = vadd.f32 %v610, %v925
    %v1035 = vadd.f32 %v614, %v929
    %v1036 = vadd.f32 %v616, %v931
    %v1037 = vadd.f32 %v620, %v935
    %v1038 = vadd.f32 %v622, %v937
    %v1039 = vadd.f32 %v626, %v941
    %v1040 = vadd.f32 %v628, %v943
    %v1041 = vadd.f32 %v632, %v947
    %v1042 = vadd.f32 %v634, %v949
    %v1043 = vadd.f32 %v638, %v953
    %v1044 = vadd.f32 %v640, %v955
    %v1045 = vadd.f32 %v644, %v959
    %v1046 = vadd.f32 %v646, %v961
    %v1047 = vadd.f32 %v650, %v965
    %v1048 = vadd.f32 %v652, %v967
    %v1049 = vadd.f32 %v656, %v971
    %v1050 = vadd.f32 %v658, %v973
    %v1051 = vadd.f32 %v662, %v977
    %v1052 = vadd.f32 %v664, %v979
    %v1053 = vadd.f32 %v668, %v983
    %v1054 = vadd.f32 %v670, %v985
    %v1055 = vadd.f32 %v674, %v989
    %v1056 = vadd.f32 %v676, %v991
    %v1057 = vadd.f32 %v680, %v995
    %v1058 = vadd.f32 %v682, %v997
    %v1059 = vadd.f32 %v686, %v1001
    %v1060 = vadd.f32 %v688, %v1003
    %v1061 = vadd.f32 %v692, %v1007
    %v1062 = vadd.f32 %v694, %v1009
    %v1063 = vadd.f32 %v698, %v1013
    %v1064 = vadd.f32 %v700, %v1015
    %s1065 = scalar_lea.vmem %s0, 24
    %v1066 = vld [vmem:[%s1065] sm:$0xff]
    %v1067 = vld [vmem:[%s1065 + $0x8] sm:$0xff]
    %v1068 = vld [vmem:[%s1065 + $0x10] sm:$0xff]
    %v1069 = vld [vmem:[%s1065 + $0x18] sm:$0xff]
    %v1070 = vld [vmem:[%s1065 + $0x20] sm:$0xff]
    %v1071 = vld [vmem:[%s1065 + $0x28] sm:$0xff]
    %v1072 = vld [vmem:[%s1065 + $0x30] sm:$0xff]
    %v1073 = vld [vmem:[%s1065 + $0x38] sm:$0xff]
    %v1074 = vld [vmem:[%s1065 + $0x40] sm:$0xff]
    %v1075 = vld [vmem:[%s1065 + $0x48] sm:$0xff]
    %v1076 = vld [vmem:[%s1065 + $0x50] sm:$0xff]
    %v1077 = vld [vmem:[%s1065 + $0x58] sm:$0xff]
    %v1078 = vld [vmem:[%s1065 + $0x60] sm:$0xff]
    %v1079 = vld [vmem:[%s1065 + $0x68] sm:$0xff]
    %v1080 = vld [vmem:[%s1065 + $0x70] sm:$0xff]
    %v1081 = vld [vmem:[%s1065 + $0x78] sm:$0xff]
    %v1082 = vld [vmem:[%s1065 + $0x80] sm:$0xff]
    %v1083 = vld [vmem:[%s1065 + $0x88] sm:$0xff]
    %v1084 = vld [vmem:[%s1065 + $0x90] sm:$0xff]
    %v1085 = vld [vmem:[%s1065 + $0x98] sm:$0xff]
    %v1086 = vld [vmem:[%s1065 + $0xa0] sm:$0xff]
    %v1087 = vld [vmem:[%s1065 + $0xa8] sm:$0xff]
    %v1088 = vld [vmem:[%s1065 + $0xb0] sm:$0xff]
    %v1089 = vld [vmem:[%s1065 + $0xb8] sm:$0xff]
    %s1090 = scalar_lea.vmem %s1, 192
    %v1091 = vld [vmem:[%s1090] sm:$0xff]
    %v1092 = vld [vmem:[%s1090 + $0x8] sm:$0xff]
    %v1093 = vld [vmem:[%s1090 + $0x10] sm:$0xff]
    %v1094 = vld [vmem:[%s1090 + $0x18] sm:$0xff]
    %v1095 = vld [vmem:[%s1090 + $0x20] sm:$0xff]
    %v1096 = vld [vmem:[%s1090 + $0x28] sm:$0xff]
    %v1097 = vld [vmem:[%s1090 + $0x30] sm:$0xff]
    %v1098 = vld [vmem:[%s1090 + $0x38] sm:$0xff]
    %v1100 = vsel %vm139, %v1066, 0
    %v1103 = vsel %vm139, %v1067, 0
    %v1106 = vsel %vm139, %v1068, 0
    %v1109 = vsel %vm139, %v1069, 0
    %v1112 = vsel %vm139, %v1070, 0
    %v1115 = vsel %vm139, %v1071, 0
    %v1118 = vsel %vm139, %v1072, 0
    %v1121 = vsel %vm139, %v1073, 0
    %v1124 = vsel %vm139, %v1074, 0
    %v1127 = vsel %vm139, %v1075, 0
    %v1130 = vsel %vm139, %v1076, 0
    %v1133 = vsel %vm139, %v1077, 0
    %v1136 = vsel %vm139, %v1078, 0
    %v1139 = vsel %vm139, %v1079, 0
    %v1142 = vsel %vm139, %v1080, 0
    %v1145 = vsel %vm139, %v1081, 0
    %v1148 = vsel %vm139, %v1082, 0
    %v1151 = vsel %vm139, %v1083, 0
    %v1154 = vsel %vm139, %v1084, 0
    %v1157 = vsel %vm139, %v1085, 0
    %v1160 = vsel %vm139, %v1086, 0
    %v1163 = vsel %vm139, %v1087, 0
    %v1166 = vsel %vm139, %v1088, 0
    %v1169 = vsel %vm139, %v1089, 0
    %1171 = vmatprep.subr.mxu0 0.0
    %1172 = vmatpush1.msra.mxu0 0.0
    %1173 = vmatprep.subr.mxu0 0.0
    %1174 = vmatpush1.msra.mxu0 0.0
    %1175 = vmatprep.subr.mxu0 0.0
    %1176 = vmatpush1.msra.mxu0 0.0
    %1177 = vmatprep.subr.mxu0 0.0
    %1178 = vmatpush1.msra.mxu0 0.0
    %1179 = vmatprep.subr.mxu0 0.0
    %1180 = vmatpush1.msra.mxu0 0.0
    %1181 = vmatprep.subr.mxu0 0.0
    %1182 = vmatpush1.msra.mxu0 0.0
    %1183 = vmatprep.subr.mxu0 0.0
    %1184 = vmatpush1.msra.mxu0 0.0
    %1185 = vmatprep.subr.mxu0 0.0
    %1186 = vmatpush1.msra.mxu0 0.0
    %1187 = vmatprep.subr.mxu0 0.0
    %1188 = vmatpush1.msra.mxu0 0.0
    %1189 = vmatprep.subr.mxu0 0.0
    %1190 = vmatpush1.msra.mxu0 0.0
    %1191 = vmatprep.subr.mxu0 0.0
    %1192 = vmatpush1.msra.mxu0 0.0
    %1193 = vmatprep.subr.mxu0 0.0
    %1194 = vmatpush1.msra.mxu0 0.0
    %1195 = vmatprep.subr.mxu0 %v1098
    %1196 = vmatpush1.msra.mxu0 %v1097
    %1197 = vmatprep.subr.mxu0 %v1096
    %1198 = vmatpush1.msra.mxu0 %v1095
    %1199 = vmatprep.subr.mxu0 %v1094
    %1200 = vmatpush1.msra.mxu0 %v1093
    %1201 = vmatprep.subr.mxu0 %v1092
    %1202 = vmatpush1.msra.mxu0 %v1091
    %1203 = vmatprep.subr.mxu0 0.0
    %1204 = vmatpush2.msra.mxu0 0.0
    %1205 = vmatprep.subr.mxu0 0.0
    %1206 = vmatpush2.msra.mxu0 0.0
    %1207 = vmatprep.subr.mxu0 0.0
    %1208 = vmatpush2.msra.mxu0 0.0
    %1209 = vmatprep.subr.mxu0 0.0
    %1210 = vmatpush2.msra.mxu0 0.0
    %1211 = vmatprep.subr.mxu0 0.0
    %1212 = vmatpush2.msra.mxu0 0.0
    %1213 = vmatprep.subr.mxu0 0.0
    %1214 = vmatpush2.msra.mxu0 0.0
    %1215 = vmatprep.subr.mxu0 0.0
    %1216 = vmatpush2.msra.mxu0 0.0
    %1217 = vmatprep.subr.mxu0 0.0
    %1218 = vmatpush2.msra.mxu0 0.0
    %1219 = vmatprep.subr.mxu0 0.0
    %1220 = vmatpush2.msra.mxu0 0.0
    %1221 = vmatprep.subr.mxu0 0.0
    %1222 = vmatpush2.msra.mxu0 0.0
    %1223 = vmatprep.subr.mxu0 0.0
    %1224 = vmatpush2.msra.mxu0 0.0
    %1225 = vmatprep.subr.mxu0 0.0
    %1226 = vmatpush2.msra.mxu0 0.0
    %1227 = vmatprep.subr.mxu0 0.0
    %1228 = vmatpush2.msra.mxu0 0.0
    %1229 = vmatprep.subr.mxu0 0.0
    %1230 = vmatpush2.msra.mxu0 0.0
    %1231 = vmatprep.subr.mxu0 0.0
    %1232 = vmatpush2.msra.mxu0 0.0
    %1233 = vmatprep.subr.mxu0 0.0
    %1234 = vmatpush2.msra.mxu0 0.0
    %1235 = vmatprep.mubr.f32.mxu0 0.0
    %1236 = vmatmul.mubr.f32.gmra.mxu0 %v1100
    %v1237 = vpop.f32.mrf.mxu0
    %v1238 = vadd.f32 0.0, %v1237
    %v1239 = vpop.f32.mrf.mxu0
    %v1240 = vadd.f32 0.0, %v1239
    %1241 = vmatprep.mubr.f32.mxu0 0.0
    %1242 = vmatmul.mubr.f32.gmra.mxu0 %v1103
    %v1243 = vpop.f32.mrf.mxu0
    %v1244 = vadd.f32 0.0, %v1243
    %v1245 = vpop.f32.mrf.mxu0
    %v1246 = vadd.f32 0.0, %v1245
    %1247 = vmatprep.mubr.f32.mxu0 0.0
    %1248 = vmatmul.mubr.f32.gmra.mxu0 %v1106
    %v1249 = vpop.f32.mrf.mxu0
    %v1250 = vadd.f32 0.0, %v1249
    %v1251 = vpop.f32.mrf.mxu0
    %v1252 = vadd.f32 0.0, %v1251
    %1253 = vmatprep.mubr.f32.mxu0 0.0
    %1254 = vmatmul.mubr.f32.gmra.mxu0 %v1109
    %v1255 = vpop.f32.mrf.mxu0
    %v1256 = vadd.f32 0.0, %v1255
    %v1257 = vpop.f32.mrf.mxu0
    %v1258 = vadd.f32 0.0, %v1257
    %1259 = vmatprep.mubr.f32.mxu0 0.0
    %1260 = vmatmul.mubr.f32.gmra.mxu0 %v1112
    %v1261 = vpop.f32.mrf.mxu0
    %v1262 = vadd.f32 0.0, %v1261
    %v1263 = vpop.f32.mrf.mxu0
    %v1264 = vadd.f32 0.0, %v1263
    %1265 = vmatprep.mubr.f32.mxu0 0.0
    %1266 = vmatmul.mubr.f32.gmra.mxu0 %v1115
    %v1267 = vpop.f32.mrf.mxu0
    %v1268 = vadd.f32 0.0, %v1267
    %v1269 = vpop.f32.mrf.mxu0
    %v1270 = vadd.f32 0.0, %v1269
    %1271 = vmatprep.mubr.f32.mxu0 0.0
    %1272 = vmatmul.mubr.f32.gmra.mxu0 %v1118
    %v1273 = vpop.f32.mrf.mxu0
    %v1274 = vadd.f32 0.0, %v1273
    %v1275 = vpop.f32.mrf.mxu0
    %v1276 = vadd.f32 0.0, %v1275
    %1277 = vmatprep.mubr.f32.mxu0 0.0
    %1278 = vmatmul.mubr.f32.gmra.mxu0 %v1121
    %v1279 = vpop.f32.mrf.mxu0
    %v1280 = vadd.f32 0.0, %v1279
    %v1281 = vpop.f32.mrf.mxu0
    %v1282 = vadd.f32 0.0, %v1281
    %1283 = vmatprep.mubr.f32.mxu0 0.0
    %1284 = vmatmul.mubr.f32.gmra.mxu0 %v1124
    %v1285 = vpop.f32.mrf.mxu0
    %v1286 = vadd.f32 0.0, %v1285
    %v1287 = vpop.f32.mrf.mxu0
    %v1288 = vadd.f32 0.0, %v1287
    %1289 = vmatprep.mubr.f32.mxu0 0.0
    %1290 = vmatmul.mubr.f32.gmra.mxu0 %v1127
    %v1291 = vpop.f32.mrf.mxu0
    %v1292 = vadd.f32 0.0, %v1291
    %v1293 = vpop.f32.mrf.mxu0
    %v1294 = vadd.f32 0.0, %v1293
    %1295 = vmatprep.mubr.f32.mxu0 0.0
    %1296 = vmatmul.mubr.f32.gmra.mxu0 %v1130
    %v1297 = vpop.f32.mrf.mxu0
    %v1298 = vadd.f32 0.0, %v1297
    %v1299 = vpop.f32.mrf.mxu0
    %v1300 = vadd.f32 0.0, %v1299
    %1301 = vmatprep.mubr.f32.mxu0 0.0
    %1302 = vmatmul.mubr.f32.gmra.mxu0 %v1133
    %v1303 = vpop.f32.mrf.mxu0
    %v1304 = vadd.f32 0.0, %v1303
    %v1305 = vpop.f32.mrf.mxu0
    %v1306 = vadd.f32 0.0, %v1305
    %1307 = vmatprep.mubr.f32.mxu0 0.0
    %1308 = vmatmul.mubr.f32.gmra.mxu0 %v1136
    %v1309 = vpop.f32.mrf.mxu0
    %v1310 = vadd.f32 0.0, %v1309
    %v1311 = vpop.f32.mrf.mxu0
    %v1312 = vadd.f32 0.0, %v1311
    %1313 = vmatprep.mubr.f32.mxu0 0.0
    %1314 = vmatmul.mubr.f32.gmra.mxu0 %v1139
    %v1315 = vpop.f32.mrf.mxu0
    %v1316 = vadd.f32 0.0, %v1315
    %v1317 = vpop.f32.mrf.mxu0
    %v1318 = vadd.f32 0.0, %v1317
    %1319 = vmatprep.mubr.f32.mxu0 0.0
    %1320 = vmatmul.mubr.f32.gmra.mxu0 %v1142
    %v1321 = vpop.f32.mrf.mxu0
    %v1322 = vadd.f32 0.0, %v1321
    %v1323 = vpop.f32.mrf.mxu0
    %v1324 = vadd.f32 0.0, %v1323
    %1325 = vmatprep.mubr.f32.mxu0 0.0
    %1326 = vmatmul.mubr.f32.gmra.mxu0 %v1145
    %v1327 = vpop.f32.mrf.mxu0
    %v1328 = vadd.f32 0.0, %v1327
    %v1329 = vpop.f32.mrf.mxu0
    %v1330 = vadd.f32 0.0, %v1329
    %1331 = vmatprep.mubr.f32.mxu0 0.0
    %1332 = vmatmul.mubr.f32.gmra.mxu0 %v1148
    %v1333 = vpop.f32.mrf.mxu0
    %v1334 = vadd.f32 0.0, %v1333
    %v1335 = vpop.f32.mrf.mxu0
    %v1336 = vadd.f32 0.0, %v1335
    %1337 = vmatprep.mubr.f32.mxu0 0.0
    %1338 = vmatmul.mubr.f32.gmra.mxu0 %v1151
    %v1339 = vpop.f32.mrf.mxu0
    %v1340 = vadd.f32 0.0, %v1339
    %v1341 = vpop.f32.mrf.mxu0
    %v1342 = vadd.f32 0.0, %v1341
    %1343 = vmatprep.mubr.f32.mxu0 0.0
    %1344 = vmatmul.mubr.f32.gmra.mxu0 %v1154
    %v1345 = vpop.f32.mrf.mxu0
    %v1346 = vadd.f32 0.0, %v1345
    %v1347 = vpop.f32.mrf.mxu0
    %v1348 = vadd.f32 0.0, %v1347
    %1349 = vmatprep.mubr.f32.mxu0 0.0
    %1350 = vmatmul.mubr.f32.gmra.mxu0 %v1157
    %v1351 = vpop.f32.mrf.mxu0
    %v1352 = vadd.f32 0.0, %v1351
    %v1353 = vpop.f32.mrf.mxu0
    %v1354 = vadd.f32 0.0, %v1353
    %1355 = vmatprep.mubr.f32.mxu0 0.0
    %1356 = vmatmul.mubr.f32.gmra.mxu0 %v1160
    %v1357 = vpop.f32.mrf.mxu0
    %v1358 = vadd.f32 0.0, %v1357
    %v1359 = vpop.f32.mrf.mxu0
    %v1360 = vadd.f32 0.0, %v1359
    %1361 = vmatprep.mubr.f32.mxu0 0.0
    %1362 = vmatmul.mubr.f32.gmra.mxu0 %v1163
    %v1363 = vpop.f32.mrf.mxu0
    %v1364 = vadd.f32 0.0, %v1363
    %v1365 = vpop.f32.mrf.mxu0
    %v1366 = vadd.f32 0.0, %v1365
    %1367 = vmatprep.mubr.f32.mxu0 0.0
    %1368 = vmatmul.mubr.f32.gmra.mxu0 %v1166
    %v1369 = vpop.f32.mrf.mxu0
    %v1370 = vadd.f32 0.0, %v1369
    %v1371 = vpop.f32.mrf.mxu0
    %v1372 = vadd.f32 0.0, %v1371
    %1373 = vmatprep.mubr.f32.mxu0 0.0
    %1374 = vmatmul.mubr.f32.gmra.mxu0 %v1169
    %v1375 = vpop.f32.mrf.mxu0
    %v1376 = vadd.f32 0.0, %v1375
    %v1377 = vpop.f32.mrf.mxu0
    %v1378 = vadd.f32 0.0, %v1377
    %1379 = vdwg.mxu0
    %v1380 = vadd.f32 %v1017, %v1238
    %v1381 = vadd.f32 %v1018, %v1240
    %v1382 = vadd.f32 %v1019, %v1244
    %v1383 = vadd.f32 %v1020, %v1246
    %v1384 = vadd.f32 %v1021, %v1250
    %v1385 = vadd.f32 %v1022, %v1252
    %v1386 = vadd.f32 %v1023, %v1256
    %v1387 = vadd.f32 %v1024, %v1258
    %v1388 = vadd.f32 %v1025, %v1262
    %v1389 = vadd.f32 %v1026, %v1264
    %v1390 = vadd.f32 %v1027, %v1268
    %v1391 = vadd.f32 %v1028, %v1270
    %v1392 = vadd.f32 %v1029, %v1274
    %v1393 = vadd.f32 %v1030, %v1276
    %v1394 = vadd.f32 %v1031, %v1280
    %v1395 = vadd.f32 %v1032, %v1282
    %v1396 = vadd.f32 %v1033, %v1286
    %v1397 = vadd.f32 %v1034, %v1288
    %v1398 = vadd.f32 %v1035, %v1292
    %v1399 = vadd.f32 %v1036, %v1294
    %v1400 = vadd.f32 %v1037, %v1298
    %v1401 = vadd.f32 %v1038, %v1300
    %v1402 = vadd.f32 %v1039, %v1304
    %v1403 = vadd.f32 %v1040, %v1306
    %v1404 = vadd.f32 %v1041, %v1310
    %v1405 = vadd.f32 %v1042, %v1312
    %v1406 = vadd.f32 %v1043, %v1316
    %v1407 = vadd.f32 %v1044, %v1318
    %v1408 = vadd.f32 %v1045, %v1322
    %v1409 = vadd.f32 %v1046, %v1324
    %v1410 = vadd.f32 %v1047, %v1328
    %v1411 = vadd.f32 %v1048, %v1330
    %v1412 = vadd.f32 %v1049, %v1334
    %v1413 = vadd.f32 %v1050, %v1336
    %v1414 = vadd.f32 %v1051, %v1340
    %v1415 = vadd.f32 %v1052, %v1342
    %v1416 = vadd.f32 %v1053, %v1346
    %v1417 = vadd.f32 %v1054, %v1348
    %v1418 = vadd.f32 %v1055, %v1352
    %v1419 = vadd.f32 %v1056, %v1354
    %v1420 = vadd.f32 %v1057, %v1358
    %v1421 = vadd.f32 %v1058, %v1360
    %v1422 = vadd.f32 %v1059, %v1364
    %v1423 = vadd.f32 %v1060, %v1366
    %v1424 = vadd.f32 %v1061, %v1370
    %v1425 = vadd.f32 %v1062, %v1372
    %v1426 = vadd.f32 %v1063, %v1376
    %v1427 = vadd.f32 %v1064, %v1378
    %s1428 = scalar_lea.vmem %s0, 32
    %v1429 = vld [vmem:[%s1428] sm:$0xff]
    %v1430 = vld [vmem:[%s1428 + $0x8] sm:$0xff]
    %v1431 = vld [vmem:[%s1428 + $0x10] sm:$0xff]
    %v1432 = vld [vmem:[%s1428 + $0x18] sm:$0xff]
    %v1433 = vld [vmem:[%s1428 + $0x20] sm:$0xff]
    %v1434 = vld [vmem:[%s1428 + $0x28] sm:$0xff]
    %v1435 = vld [vmem:[%s1428 + $0x30] sm:$0xff]
    %v1436 = vld [vmem:[%s1428 + $0x38] sm:$0xff]
    %v1437 = vld [vmem:[%s1428 + $0x40] sm:$0xff]
    %v1438 = vld [vmem:[%s1428 + $0x48] sm:$0xff]
    %v1439 = vld [vmem:[%s1428 + $0x50] sm:$0xff]
    %v1440 = vld [vmem:[%s1428 + $0x58] sm:$0xff]
    %v1441 = vld [vmem:[%s1428 + $0x60] sm:$0xff]
    %v1442 = vld [vmem:[%s1428 + $0x68] sm:$0xff]
    %v1443 = vld [vmem:[%s1428 + $0x70] sm:$0xff]
    %v1444 = vld [vmem:[%s1428 + $0x78] sm:$0xff]
    %v1445 = vld [vmem:[%s1428 + $0x80] sm:$0xff]
    %v1446 = vld [vmem:[%s1428 + $0x88] sm:$0xff]
    %v1447 = vld [vmem:[%s1428 + $0x90] sm:$0xff]
    %v1448 = vld [vmem:[%s1428 + $0x98] sm:$0xff]
    %v1449 = vld [vmem:[%s1428 + $0xa0] sm:$0xff]
    %v1450 = vld [vmem:[%s1428 + $0xa8] sm:$0xff]
    %v1451 = vld [vmem:[%s1428 + $0xb0] sm:$0xff]
    %v1452 = vld [vmem:[%s1428 + $0xb8] sm:$0xff]
    %s1453 = scalar_lea.vmem %s1, 256
    %v1454 = vld [vmem:[%s1453] sm:$0xff]
    %v1455 = vld [vmem:[%s1453 + $0x8] sm:$0xff]
    %v1456 = vld [vmem:[%s1453 + $0x10] sm:$0xff]
    %v1457 = vld [vmem:[%s1453 + $0x18] sm:$0xff]
    %v1458 = vld [vmem:[%s1453 + $0x20] sm:$0xff]
    %v1459 = vld [vmem:[%s1453 + $0x28] sm:$0xff]
    %v1460 = vld [vmem:[%s1453 + $0x30] sm:$0xff]
    %v1461 = vld [vmem:[%s1453 + $0x38] sm:$0xff]
    %v1463 = vsel %vm139, %v1429, 0
    %v1466 = vsel %vm139, %v1430, 0
    %v1469 = vsel %vm139, %v1431, 0
    %v1472 = vsel %vm139, %v1432, 0
    %v1475 = vsel %vm139, %v1433, 0
    %v1478 = vsel %vm139, %v1434, 0
    %v1481 = vsel %vm139, %v1435, 0
    %v1484 = vsel %vm139, %v1436, 0
    %v1487 = vsel %vm139, %v1437, 0
    %v1490 = vsel %vm139, %v1438, 0
    %v1493 = vsel %vm139, %v1439, 0
    %v1496 = vsel %vm139, %v1440, 0
    %v1499 = vsel %vm139, %v1441, 0
    %v1502 = vsel %vm139, %v1442, 0
    %v1505 = vsel %vm139, %v1443, 0
    %v1508 = vsel %vm139, %v1444, 0
    %v1511 = vsel %vm139, %v1445, 0
    %v1514 = vsel %vm139, %v1446, 0
    %v1517 = vsel %vm139, %v1447, 0
    %v1520 = vsel %vm139, %v1448, 0
    %v1523 = vsel %vm139, %v1449, 0
    %v1526 = vsel %vm139, %v1450, 0
    %v1529 = vsel %vm139, %v1451, 0
    %v1532 = vsel %vm139, %v1452, 0
    %1534 = vmatprep.subr.mxu0 0.0
    %1535 = vmatpush1.msra.mxu0 0.0
    %1536 = vmatprep.subr.mxu0 0.0
    %1537 = vmatpush1.msra.mxu0 0.0
    %1538 = vmatprep.subr.mxu0 0.0
    %1539 = vmatpush1.msra.mxu0 0.0
    %1540 = vmatprep.subr.mxu0 0.0
    %1541 = vmatpush1.msra.mxu0 0.0
    %1542 = vmatprep.subr.mxu0 0.0
    %1543 = vmatpush1.msra.mxu0 0.0
    %1544 = vmatprep.subr.mxu0 0.0
    %1545 = vmatpush1.msra.mxu0 0.0
    %1546 = vmatprep.subr.mxu0 0.0
    %1547 = vmatpush1.msra.mxu0 0.0
    %1548 = vmatprep.subr.mxu0 0.0
    %1549 = vmatpush1.msra.mxu0 0.0
    %1550 = vmatprep.subr.mxu0 0.0
    %1551 = vmatpush1.msra.mxu0 0.0
    %1552 = vmatprep.subr.mxu0 0.0
    %1553 = vmatpush1.msra.mxu0 0.0
    %1554 = vmatprep.subr.mxu0 0.0
    %1555 = vmatpush1.msra.mxu0 0.0
    %1556 = vmatprep.subr.mxu0 0.0
    %1557 = vmatpush1.msra.mxu0 0.0
    %1558 = vmatprep.subr.mxu0 %v1461
    %1559 = vmatpush1.msra.mxu0 %v1460
    %1560 = vmatprep.subr.mxu0 %v1459
    %1561 = vmatpush1.msra.mxu0 %v1458
    %1562 = vmatprep.subr.mxu0 %v1457
    %1563 = vmatpush1.msra.mxu0 %v1456
    %1564 = vmatprep.subr.mxu0 %v1455
    %1565 = vmatpush1.msra.mxu0 %v1454
    %1566 = vmatprep.subr.mxu0 0.0
    %1567 = vmatpush2.msra.mxu0 0.0
    %1568 = vmatprep.subr.mxu0 0.0
    %1569 = vmatpush2.msra.mxu0 0.0
    %1570 = vmatprep.subr.mxu0 0.0
    %1571 = vmatpush2.msra.mxu0 0.0
    %1572 = vmatprep.subr.mxu0 0.0
    %1573 = vmatpush2.msra.mxu0 0.0
    %1574 = vmatprep.subr.mxu0 0.0
    %1575 = vmatpush2.msra.mxu0 0.0
    %1576 = vmatprep.subr.mxu0 0.0
    %1577 = vmatpush2.msra.mxu0 0.0
    %1578 = vmatprep.subr.mxu0 0.0
    %1579 = vmatpush2.msra.mxu0 0.0
    %1580 = vmatprep.subr.mxu0 0.0
    %1581 = vmatpush2.msra.mxu0 0.0
    %1582 = vmatprep.subr.mxu0 0.0
    %1583 = vmatpush2.msra.mxu0 0.0
    %1584 = vmatprep.subr.mxu0 0.0
    %1585 = vmatpush2.msra.mxu0 0.0
    %1586 = vmatprep.subr.mxu0 0.0
    %1587 = vmatpush2.msra.mxu0 0.0
    %1588 = vmatprep.subr.mxu0 0.0
    %1589 = vmatpush2.msra.mxu0 0.0
    %1590 = vmatprep.subr.mxu0 0.0
    %1591 = vmatpush2.msra.mxu0 0.0
    %1592 = vmatprep.subr.mxu0 0.0
    %1593 = vmatpush2.msra.mxu0 0.0
    %1594 = vmatprep.subr.mxu0 0.0
    %1595 = vmatpush2.msra.mxu0 0.0
    %1596 = vmatprep.subr.mxu0 0.0
    %1597 = vmatpush2.msra.mxu0 0.0
    %1598 = vmatprep.mubr.f32.mxu0 0.0
    %1599 = vmatmul.mubr.f32.gmra.mxu0 %v1463
    %v1600 = vpop.f32.mrf.mxu0
    %v1601 = vadd.f32 0.0, %v1600
    %v1602 = vpop.f32.mrf.mxu0
    %v1603 = vadd.f32 0.0, %v1602
    %1604 = vmatprep.mubr.f32.mxu0 0.0
    %1605 = vmatmul.mubr.f32.gmra.mxu0 %v1466
    %v1606 = vpop.f32.mrf.mxu0
    %v1607 = vadd.f32 0.0, %v1606
    %v1608 = vpop.f32.mrf.mxu0
    %v1609 = vadd.f32 0.0, %v1608
    %1610 = vmatprep.mubr.f32.mxu0 0.0
    %1611 = vmatmul.mubr.f32.gmra.mxu0 %v1469
    %v1612 = vpop.f32.mrf.mxu0
    %v1613 = vadd.f32 0.0, %v1612
    %v1614 = vpop.f32.mrf.mxu0
    %v1615 = vadd.f32 0.0, %v1614
    %1616 = vmatprep.mubr.f32.mxu0 0.0
    %1617 = vmatmul.mubr.f32.gmra.mxu0 %v1472
    %v1618 = vpop.f32.mrf.mxu0
    %v1619 = vadd.f32 0.0, %v1618
    %v1620 = vpop.f32.mrf.mxu0
    %v1621 = vadd.f32 0.0, %v1620
    %1622 = vmatprep.mubr.f32.mxu0 0.0
    %1623 = vmatmul.mubr.f32.gmra.mxu0 %v1475
    %v1624 = vpop.f32.mrf.mxu0
    %v1625 = vadd.f32 0.0, %v1624
    %v1626 = vpop.f32.mrf.mxu0
    %v1627 = vadd.f32 0.0, %v1626
    %1628 = vmatprep.mubr.f32.mxu0 0.0
    %1629 = vmatmul.mubr.f32.gmra.mxu0 %v1478
    %v1630 = vpop.f32.mrf.mxu0
    %v1631 = vadd.f32 0.0, %v1630
    %v1632 = vpop.f32.mrf.mxu0
    %v1633 = vadd.f32 0.0, %v1632
    %1634 = vmatprep.mubr.f32.mxu0 0.0
    %1635 = vmatmul.mubr.f32.gmra.mxu0 %v1481
    %v1636 = vpop.f32.mrf.mxu0
    %v1637 = vadd.f32 0.0, %v1636
    %v1638 = vpop.f32.mrf.mxu0
    %v1639 = vadd.f32 0.0, %v1638
    %1640 = vmatprep.mubr.f32.mxu0 0.0
    %1641 = vmatmul.mubr.f32.gmra.mxu0 %v1484
    %v1642 = vpop.f32.mrf.mxu0
    %v1643 = vadd.f32 0.0, %v1642
    %v1644 = vpop.f32.mrf.mxu0
    %v1645 = vadd.f32 0.0, %v1644
    %1646 = vmatprep.mubr.f32.mxu0 0.0
    %1647 = vmatmul.mubr.f32.gmra.mxu0 %v1487
    %v1648 = vpop.f32.mrf.mxu0
    %v1649 = vadd.f32 0.0, %v1648
    %v1650 = vpop.f32.mrf.mxu0
    %v1651 = vadd.f32 0.0, %v1650
    %1652 = vmatprep.mubr.f32.mxu0 0.0
    %1653 = vmatmul.mubr.f32.gmra.mxu0 %v1490
    %v1654 = vpop.f32.mrf.mxu0
    %v1655 = vadd.f32 0.0, %v1654
    %v1656 = vpop.f32.mrf.mxu0
    %v1657 = vadd.f32 0.0, %v1656
    %1658 = vmatprep.mubr.f32.mxu0 0.0
    %1659 = vmatmul.mubr.f32.gmra.mxu0 %v1493
    %v1660 = vpop.f32.mrf.mxu0
    %v1661 = vadd.f32 0.0, %v1660
    %v1662 = vpop.f32.mrf.mxu0
    %v1663 = vadd.f32 0.0, %v1662
    %1664 = vmatprep.mubr.f32.mxu0 0.0
    %1665 = vmatmul.mubr.f32.gmra.mxu0 %v1496
    %v1666 = vpop.f32.mrf.mxu0
    %v1667 = vadd.f32 0.0, %v1666
    %v1668 = vpop.f32.mrf.mxu0
    %v1669 = vadd.f32 0.0, %v1668
    %1670 = vmatprep.mubr.f32.mxu0 0.0
    %1671 = vmatmul.mubr.f32.gmra.mxu0 %v1499
    %v1672 = vpop.f32.mrf.mxu0
    %v1673 = vadd.f32 0.0, %v1672
    %v1674 = vpop.f32.mrf.mxu0
    %v1675 = vadd.f32 0.0, %v1674
    %1676 = vmatprep.mubr.f32.mxu0 0.0
    %1677 = vmatmul.mubr.f32.gmra.mxu0 %v1502
    %v1678 = vpop.f32.mrf.mxu0
    %v1679 = vadd.f32 0.0, %v1678
    %v1680 = vpop.f32.mrf.mxu0
    %v1681 = vadd.f32 0.0, %v1680
    %1682 = vmatprep.mubr.f32.mxu0 0.0
    %1683 = vmatmul.mubr.f32.gmra.mxu0 %v1505
    %v1684 = vpop.f32.mrf.mxu0
    %v1685 = vadd.f32 0.0, %v1684
    %v1686 = vpop.f32.mrf.mxu0
    %v1687 = vadd.f32 0.0, %v1686
    %1688 = vmatprep.mubr.f32.mxu0 0.0
    %1689 = vmatmul.mubr.f32.gmra.mxu0 %v1508
    %v1690 = vpop.f32.mrf.mxu0
    %v1691 = vadd.f32 0.0, %v1690
    %v1692 = vpop.f32.mrf.mxu0
    %v1693 = vadd.f32 0.0, %v1692
    %1694 = vmatprep.mubr.f32.mxu0 0.0
    %1695 = vmatmul.mubr.f32.gmra.mxu0 %v1511
    %v1696 = vpop.f32.mrf.mxu0
    %v1697 = vadd.f32 0.0, %v1696
    %v1698 = vpop.f32.mrf.mxu0
    %v1699 = vadd.f32 0.0, %v1698
    %1700 = vmatprep.mubr.f32.mxu0 0.0
    %1701 = vmatmul.mubr.f32.gmra.mxu0 %v1514
    %v1702 = vpop.f32.mrf.mxu0
    %v1703 = vadd.f32 0.0, %v1702
    %v1704 = vpop.f32.mrf.mxu0
    %v1705 = vadd.f32 0.0, %v1704
    %1706 = vmatprep.mubr.f32.mxu0 0.0
    %1707 = vmatmul.mubr.f32.gmra.mxu0 %v1517
    %v1708 = vpop.f32.mrf.mxu0
    %v1709 = vadd.f32 0.0, %v1708
    %v1710 = vpop.f32.mrf.mxu0
    %v1711 = vadd.f32 0.0, %v1710
    %1712 = vmatprep.mubr.f32.mxu0 0.0
    %1713 = vmatmul.mubr.f32.gmra.mxu0 %v1520
    %v1714 = vpop.f32.mrf.mxu0
    %v1715 = vadd.f32 0.0, %v1714
    %v1716 = vpop.f32.mrf.mxu0
    %v1717 = vadd.f32 0.0, %v1716
    %1718 = vmatprep.mubr.f32.mxu0 0.0
    %1719 = vmatmul.mubr.f32.gmra.mxu0 %v1523
    %v1720 = vpop.f32.mrf.mxu0
    %v1721 = vadd.f32 0.0, %v1720
    %v1722 = vpop.f32.mrf.mxu0
    %v1723 = vadd.f32 0.0, %v1722
    %1724 = vmatprep.mubr.f32.mxu0 0.0
    %1725 = vmatmul.mubr.f32.gmra.mxu0 %v1526
    %v1726 = vpop.f32.mrf.mxu0
    %v1727 = vadd.f32 0.0, %v1726
    %v1728 = vpop.f32.mrf.mxu0
    %v1729 = vadd.f32 0.0, %v1728
    %1730 = vmatprep.mubr.f32.mxu0 0.0
    %1731 = vmatmul.mubr.f32.gmra.mxu0 %v1529
    %v1732 = vpop.f32.mrf.mxu0
    %v1733 = vadd.f32 0.0, %v1732
    %v1734 = vpop.f32.mrf.mxu0
    %v1735 = vadd.f32 0.0, %v1734
    %1736 = vmatprep.mubr.f32.mxu0 0.0
    %1737 = vmatmul.mubr.f32.gmra.mxu0 %v1532
    %v1738 = vpop.f32.mrf.mxu0
    %v1739 = vadd.f32 0.0, %v1738
    %v1740 = vpop.f32.mrf.mxu0
    %v1741 = vadd.f32 0.0, %v1740
    %1742 = vdwg.mxu0
    %v1743 = vadd.f32 %v1380, %v1601
    %v1744 = vadd.f32 %v1381, %v1603
    %v1745 = vadd.f32 %v1382, %v1607
    %v1746 = vadd.f32 %v1383, %v1609
    %v1747 = vadd.f32 %v1384, %v1613
    %v1748 = vadd.f32 %v1385, %v1615
    %v1749 = vadd.f32 %v1386, %v1619
    %v1750 = vadd.f32 %v1387, %v1621
    %v1751 = vadd.f32 %v1388, %v1625
    %v1752 = vadd.f32 %v1389, %v1627
    %v1753 = vadd.f32 %v1390, %v1631
    %v1754 = vadd.f32 %v1391, %v1633
    %v1755 = vadd.f32 %v1392, %v1637
    %v1756 = vadd.f32 %v1393, %v1639
    %v1757 = vadd.f32 %v1394, %v1643
    %v1758 = vadd.f32 %v1395, %v1645
    %v1759 = vadd.f32 %v1396, %v1649
    %v1760 = vadd.f32 %v1397, %v1651
    %v1761 = vadd.f32 %v1398, %v1655
    %v1762 = vadd.f32 %v1399, %v1657
    %v1763 = vadd.f32 %v1400, %v1661
    %v1764 = vadd.f32 %v1401, %v1663
    %v1765 = vadd.f32 %v1402, %v1667
    %v1766 = vadd.f32 %v1403, %v1669
    %v1767 = vadd.f32 %v1404, %v1673
    %v1768 = vadd.f32 %v1405, %v1675
    %v1769 = vadd.f32 %v1406, %v1679
    %v1770 = vadd.f32 %v1407, %v1681
    %v1771 = vadd.f32 %v1408, %v1685
    %v1772 = vadd.f32 %v1409, %v1687
    %v1773 = vadd.f32 %v1410, %v1691
    %v1774 = vadd.f32 %v1411, %v1693
    %v1775 = vadd.f32 %v1412, %v1697
    %v1776 = vadd.f32 %v1413, %v1699
    %v1777 = vadd.f32 %v1414, %v1703
    %v1778 = vadd.f32 %v1415, %v1705
    %v1779 = vadd.f32 %v1416, %v1709
    %v1780 = vadd.f32 %v1417, %v1711
    %v1781 = vadd.f32 %v1418, %v1715
    %v1782 = vadd.f32 %v1419, %v1717
    %v1783 = vadd.f32 %v1420, %v1721
    %v1784 = vadd.f32 %v1421, %v1723
    %v1785 = vadd.f32 %v1422, %v1727
    %v1786 = vadd.f32 %v1423, %v1729
    %v1787 = vadd.f32 %v1424, %v1733
    %v1788 = vadd.f32 %v1425, %v1735
    %v1789 = vadd.f32 %v1426, %v1739
    %v1790 = vadd.f32 %v1427, %v1741
    %v1791 = vld [vmem:[%s2] sm:$0x3]
    %v1793 = vlaneseq
    %v1794 = vshrl.u32 %v1793, 7
    %v1795 = vsub.s32 0, %v1794
    %v1796 = vrot.slane %v1791, %v1795
    %v1797 = vlaneseq
    %v1798 = vshrl.u32 %v1797, 7
    %v1799 = vsub.s32 1, %v1798
    %v1800 = vrot.slane %v1791, %v1799
    %v1803 = vadd.f32 %v1743, %v1796
    %v1804 = vadd.f32 %v1744, %v1800
    %v1805 = vadd.f32 %v1745, %v1796
    %v1806 = vadd.f32 %v1746, %v1800
    %v1807 = vadd.f32 %v1747, %v1796
    %v1808 = vadd.f32 %v1748, %v1800
    %v1809 = vadd.f32 %v1749, %v1796
    %v1810 = vadd.f32 %v1750, %v1800
    %v1811 = vadd.f32 %v1751, %v1796
    %v1812 = vadd.f32 %v1752, %v1800
    %v1813 = vadd.f32 %v1753, %v1796
    %v1814 = vadd.f32 %v1754, %v1800
    %v1815 = vadd.f32 %v1755, %v1796
    %v1816 = vadd.f32 %v1756, %v1800
    %v1817 = vadd.f32 %v1757, %v1796
    %v1818 = vadd.f32 %v1758, %v1800
    %v1819 = vadd.f32 %v1759, %v1796
    %v1820 = vadd.f32 %v1760, %v1800
    %v1821 = vadd.f32 %v1761, %v1796
    %v1822 = vadd.f32 %v1762, %v1800
    %v1823 = vadd.f32 %v1763, %v1796
    %v1824 = vadd.f32 %v1764, %v1800
    %v1825 = vadd.f32 %v1765, %v1796
    %v1826 = vadd.f32 %v1766, %v1800
    %v1827 = vadd.f32 %v1767, %v1796
    %v1828 = vadd.f32 %v1768, %v1800
    %v1829 = vadd.f32 %v1769, %v1796
    %v1830 = vadd.f32 %v1770, %v1800
    %v1831 = vadd.f32 %v1771, %v1796
    %v1832 = vadd.f32 %v1772, %v1800
    %v1833 = vadd.f32 %v1773, %v1796
    %v1834 = vadd.f32 %v1774, %v1800
    %v1835 = vadd.f32 %v1775, %v1796
    %v1836 = vadd.f32 %v1776, %v1800
    %v1837 = vadd.f32 %v1777, %v1796
    %v1838 = vadd.f32 %v1778, %v1800
    %v1839 = vadd.f32 %v1779, %v1796
    %v1840 = vadd.f32 %v1780, %v1800
    %v1841 = vadd.f32 %v1781, %v1796
    %v1842 = vadd.f32 %v1782, %v1800
    %v1843 = vadd.f32 %v1783, %v1796
    %v1844 = vadd.f32 %v1784, %v1800
    %v1845 = vadd.f32 %v1785, %v1796
    %v1846 = vadd.f32 %v1786, %v1800
    %v1847 = vadd.f32 %v1787, %v1796
    %v1848 = vadd.f32 %v1788, %v1800
    %v1849 = vadd.f32 %v1789, %v1796
    %v1850 = vadd.f32 %v1790, %v1800
    %v1851 = vmax.f32 %v1803, 0.0
    %v1852 = vmax.f32 %v1804, 0.0
    %v1853 = vmax.f32 %v1805, 0.0
    %v1854 = vmax.f32 %v1806, 0.0
    %v1855 = vmax.f32 %v1807, 0.0
    %v1856 = vmax.f32 %v1808, 0.0
    %v1857 = vmax.f32 %v1809, 0.0
    %v1858 = vmax.f32 %v1810, 0.0
    %v1859 = vmax.f32 %v1811, 0.0
    %v1860 = vmax.f32 %v1812, 0.0
    %v1861 = vmax.f32 %v1813, 0.0
    %v1862 = vmax.f32 %v1814, 0.0
    %v1863 = vmax.f32 %v1815, 0.0
    %v1864 = vmax.f32 %v1816, 0.0
    %v1865 = vmax.f32 %v1817, 0.0
    %v1866 = vmax.f32 %v1818, 0.0
    %v1867 = vmax.f32 %v1819, 0.0
    %v1868 = vmax.f32 %v1820, 0.0
    %v1869 = vmax.f32 %v1821, 0.0
    %v1870 = vmax.f32 %v1822, 0.0
    %v1871 = vmax.f32 %v1823, 0.0
    %v1872 = vmax.f32 %v1824, 0.0
    %v1873 = vmax.f32 %v1825, 0.0
    %v1874 = vmax.f32 %v1826, 0.0
    %v1875 = vmax.f32 %v1827, 0.0
    %v1876 = vmax.f32 %v1828, 0.0
    %v1877 = vmax.f32 %v1829, 0.0
    %v1878 = vmax.f32 %v1830, 0.0
    %v1879 = vmax.f32 %v1831, 0.0
    %v1880 = vmax.f32 %v1832, 0.0
    %v1881 = vmax.f32 %v1833, 0.0
    %v1882 = vmax.f32 %v1834, 0.0
    %v1883 = vmax.f32 %v1835, 0.0
    %v1884 = vmax.f32 %v1836, 0.0
    %v1885 = vmax.f32 %v1837, 0.0
    %v1886 = vmax.f32 %v1838, 0.0
    %v1887 = vmax.f32 %v1839, 0.0
    %v1888 = vmax.f32 %v1840, 0.0
    %v1889 = vmax.f32 %v1841, 0.0
    %v1890 = vmax.f32 %v1842, 0.0
    %v1891 = vmax.f32 %v1843, 0.0
    %v1892 = vmax.f32 %v1844, 0.0
    %v1893 = vmax.f32 %v1845, 0.0
    %v1894 = vmax.f32 %v1846, 0.0
    %v1895 = vmax.f32 %v1847, 0.0
    %v1896 = vmax.f32 %v1848, 0.0
    %v1897 = vmax.f32 %v1849, 0.0
    %v1898 = vmax.f32 %v1850, 0.0
    %v1899 = vmax.f32 %v1851, %v1852
    %v1900 = vmax.f32 %v1853, %v1854
    %v1901 = vmax.f32 %v1855, %v1856
    %v1902 = vmax.f32 %v1857, %v1858
    %v1903 = vmax.f32 %v1859, %v1860
    %v1904 = vmax.f32 %v1861, %v1862
    %v1905 = vmax.f32 %v1863, %v1864
    %v1906 = vmax.f32 %v1865, %v1866
    %v1907 = vmax.f32 %v1867, %v1868
    %v1908 = vmax.f32 %v1869, %v1870
    %v1909 = vmax.f32 %v1871, %v1872
    %v1910 = vmax.f32 %v1873, %v1874
    %v1911 = vmax.f32 %v1875, %v1876
    %v1912 = vmax.f32 %v1877, %v1878
    %v1913 = vmax.f32 %v1879, %v1880
    %v1914 = vmax.f32 %v1881, %v1882
    %v1915 = vmax.f32 %v1883, %v1884
    %v1916 = vmax.f32 %v1885, %v1886
    %v1917 = vmax.f32 %v1887, %v1888
    %v1918 = vmax.f32 %v1889, %v1890
    %v1919 = vmax.f32 %v1891, %v1892
    %v1920 = vmax.f32 %v1893, %v1894
    %v1921 = vmax.f32 %v1895, %v1896
    %v1922 = vmax.f32 %v1897, %v1898
    %v1923 = vmax.f32 %v1899, %v1900
    %v1924 = vmax.f32 %v1901, %v1902
    %v1925 = vmax.f32 %v1903, %v1904
    %v1926 = vmax.f32 %v1905, %v1906
    %v1927 = vmax.f32 %v1907, %v1908
    %v1928 = vmax.f32 %v1909, %v1910
    %v1929 = vmax.f32 %v1911, %v1912
    %v1930 = vmax.f32 %v1913, %v1914
    %v1931 = vmax.f32 %v1915, %v1916
    %v1932 = vmax.f32 %v1917, %v1918
    %v1933 = vmax.f32 %v1919, %v1920
    %v1934 = vmax.f32 %v1921, %v1922
    %v1935 = vld [vmem:[#allocation2] sm:$0xff]
    %v1936 = vld [vmem:[#allocation2 + $0x8] sm:$0xff]
    %v1937 = vld [vmem:[#allocation2 + $0x10] sm:$0xff]
    %v1938 = vld [vmem:[#allocation2 + $0x18] sm:$0xff]
    %v1939 = vld [vmem:[#allocation2 + $0x20] sm:$0xff]
    %v1940 = vld [vmem:[#allocation2 + $0x28] sm:$0xff]
    %v1941 = vld [vmem:[#allocation2 + $0x30] sm:$0xff]
    %v1942 = vld [vmem:[#allocation2 + $0x38] sm:$0xff]
    %v1943 = vld [vmem:[#allocation2 + $0x40] sm:$0xff]
    %v1944 = vld [vmem:[#allocation2 + $0x48] sm:$0xff]
    %v1945 = vld [vmem:[#allocation2 + $0x50] sm:$0xff]
    %v1946 = vld [vmem:[#allocation2 + $0x58] sm:$0xff]
    %v1947 = vld [vmem:[#allocation2 + $0x60] sm:$0xff]
    %v1948 = vld [vmem:[#allocation2 + $0x68] sm:$0xff]
    %v1949 = vld [vmem:[#allocation2 + $0x70] sm:$0xff]
    %v1950 = vld [vmem:[#allocation2 + $0x78] sm:$0xff]
    %s1951 = scalar_lea.vmem [#allocation2], 128
    %v1952 = vld [vmem:[%s1951] sm:$0xff]
    %v1953 = vld [vmem:[%s1951 + $0x8] sm:$0xff]
    %v1954 = vld [vmem:[%s1951 + $0x10] sm:$0xff]
    %v1955 = vld [vmem:[%s1951 + $0x18] sm:$0xff]
    %v1956 = vld [vmem:[%s1951 + $0x20] sm:$0xff]
    %v1957 = vld [vmem:[%s1951 + $0x28] sm:$0xff]
    %v1958 = vld [vmem:[%s1951 + $0x30] sm:$0xff]
    %v1959 = vld [vmem:[%s1951 + $0x38] sm:$0xff]
    %v1960 = vld [vmem:[%s1951 + $0x40] sm:$0xff]
    %v1961 = vld [vmem:[%s1951 + $0x48] sm:$0xff]
    %v1962 = vld [vmem:[%s1951 + $0x50] sm:$0xff]
    %v1963 = vld [vmem:[%s1951 + $0x58] sm:$0xff]
    %v1964 = vld [vmem:[%s1951 + $0x60] sm:$0xff]
    %v1965 = vld [vmem:[%s1951 + $0x68] sm:$0xff]
    %v1966 = vld [vmem:[%s1951 + $0x70] sm:$0xff]
    %v1967 = vld [vmem:[%s1951 + $0x78] sm:$0xff]
    %1968 = vmatprep.subr.mxu0 0.0
    %1969 = vmatpush1.msra.mxu0 %v1967
    %1970 = vmatprep.subr.mxu0 0.0
    %1971 = vmatpush1.msra.mxu0 %v1966
    %1972 = vmatprep.subr.mxu0 0.0
    %1973 = vmatpush1.msra.mxu0 %v1965
    %1974 = vmatprep.subr.mxu0 0.0
    %1975 = vmatpush1.msra.mxu0 %v1964
    %1976 = vmatprep.subr.mxu0 0.0
    %1977 = vmatpush1.msra.mxu0 %v1963
    %1978 = vmatprep.subr.mxu0 0.0
    %1979 = vmatpush1.msra.mxu0 %v1962
    %1980 = vmatprep.subr.mxu0 0.0
    %1981 = vmatpush1.msra.mxu0 %v1961
    %1982 = vmatprep.subr.mxu0 0.0
    %1983 = vmatpush1.msra.mxu0 %v1960
    %1984 = vmatprep.subr.mxu0 0.0
    %1985 = vmatpush1.msra.mxu0 %v1959
    %1986 = vmatprep.subr.mxu0 0.0
    %1987 = vmatpush1.msra.mxu0 %v1958
    %1988 = vmatprep.subr.mxu0 0.0
    %1989 = vmatpush1.msra.mxu0 %v1957
    %1990 = vmatprep.subr.mxu0 0.0
    %1991 = vmatpush1.msra.mxu0 %v1956
    %1992 = vmatprep.subr.mxu0 0.0
    %1993 = vmatpush1.msra.mxu0 %v1955
    %1994 = vmatprep.subr.mxu0 0.0
    %1995 = vmatpush1.msra.mxu0 %v1954
    %1996 = vmatprep.subr.mxu0 0.0
    %1997 = vmatpush1.msra.mxu0 %v1953
    %1998 = vmatprep.subr.mxu0 0.0
    %1999 = vmatpush1.msra.mxu0 %v1952
    %2000 = vmatprep.subr.mxu0 0.0
    %2001 = vmatpush2.msra.mxu0 0.0
    %2002 = vmatprep.subr.mxu0 0.0
    %2003 = vmatpush2.msra.mxu0 0.0
    %2004 = vmatprep.subr.mxu0 0.0
    %2005 = vmatpush2.msra.mxu0 0.0
    %2006 = vmatprep.subr.mxu0 0.0
    %2007 = vmatpush2.msra.mxu0 0.0
    %2008 = vmatprep.subr.mxu0 0.0
    %2009 = vmatpush2.msra.mxu0 0.0
    %2010 = vmatprep.subr.mxu0 0.0
    %2011 = vmatpush2.msra.mxu0 0.0
    %2012 = vmatprep.subr.mxu0 0.0
    %2013 = vmatpush2.msra.mxu0 0.0
    %2014 = vmatprep.subr.mxu0 0.0
    %2015 = vmatpush2.msra.mxu0 0.0
    %2016 = vmatprep.subr.mxu0 0.0
    %2017 = vmatpush2.msra.mxu0 0.0
    %2018 = vmatprep.subr.mxu0 0.0
    %2019 = vmatpush2.msra.mxu0 0.0
    %2020 = vmatprep.subr.mxu0 0.0
    %2021 = vmatpush2.msra.mxu0 0.0
    %2022 = vmatprep.subr.mxu0 0.0
    %2023 = vmatpush2.msra.mxu0 0.0
    %2024 = vmatprep.subr.mxu0 0.0
    %2025 = vmatpush2.msra.mxu0 0.0
    %2026 = vmatprep.subr.mxu0 0.0
    %2027 = vmatpush2.msra.mxu0 0.0
    %2028 = vmatprep.subr.mxu0 0.0
    %2029 = vmatpush2.msra.mxu0 0.0
    %2030 = vmatprep.subr.mxu0 0.0
    %2031 = vmatpush2.msra.mxu0 0.0
    %2032 = vmatprep.mubr.f32.mxu0 0.0
    %2033 = vmatmul.mubr.f32.gmra.mxu0 %v1924
    %v2034 = vpop.f32.mrf.mxu0
    %v2035 = vadd.f32 0.0, %v2034
    %v2036 = vpop.f32.mrf.mxu0
    %2037 = vmatprep.mubr.f32.mxu0 0.0
    %2038 = vmatmul.mubr.f32.gmra.mxu0 %v1925
    %v2039 = vpop.f32.mrf.mxu0
    %v2040 = vadd.f32 0.0, %v2039
    %v2041 = vpop.f32.mrf.mxu0
    %2042 = vmatprep.mubr.f32.mxu0 0.0
    %2043 = vmatmul.mubr.f32.gmra.mxu0 %v1926
    %v2044 = vpop.f32.mrf.mxu0
    %v2045 = vadd.f32 0.0, %v2044
    %v2046 = vpop.f32.mrf.mxu0
    %2047 = vmatprep.mubr.f32.mxu0 0.0
    %2048 = vmatmul.mubr.f32.gmra.mxu0 %v1927
    %v2049 = vpop.f32.mrf.mxu0
    %v2050 = vadd.f32 0.0, %v2049
    %v2051 = vpop.f32.mrf.mxu0
    %2052 = vmatprep.mubr.f32.mxu0 0.0
    %2053 = vmatmul.mubr.f32.gmra.mxu0 %v1928
    %v2054 = vpop.f32.mrf.mxu0
    %v2055 = vadd.f32 0.0, %v2054
    %v2056 = vpop.f32.mrf.mxu0
    %2057 = vmatprep.mubr.f32.mxu0 0.0
    %2058 = vmatmul.mubr.f32.gmra.mxu0 %v1929
    %v2059 = vpop.f32.mrf.mxu0
    %v2060 = vadd.f32 0.0, %v2059
    %v2061 = vpop.f32.mrf.mxu0
    %2062 = vmatprep.mubr.f32.mxu0 0.0
    %2063 = vmatmul.mubr.f32.gmra.mxu0 %v1930
    %v2064 = vpop.f32.mrf.mxu0
    %v2065 = vadd.f32 0.0, %v2064
    %v2066 = vpop.f32.mrf.mxu0
    %2067 = vmatprep.mubr.f32.mxu0 0.0
    %2068 = vmatmul.mubr.f32.gmra.mxu0 %v1931
    %v2069 = vpop.f32.mrf.mxu0
    %v2070 = vadd.f32 0.0, %v2069
    %v2071 = vpop.f32.mrf.mxu0
    %2072 = vdwg.mxu0
    %2073 = vmatprep.subr.mxu0 0.0
    %2074 = vmatpush1.msra.mxu0 %v1950
    %2075 = vmatprep.subr.mxu0 0.0
    %2076 = vmatpush1.msra.mxu0 %v1949
    %2077 = vmatprep.subr.mxu0 0.0
    %2078 = vmatpush1.msra.mxu0 %v1948
    %2079 = vmatprep.subr.mxu0 0.0
    %2080 = vmatpush1.msra.mxu0 %v1947
    %2081 = vmatprep.subr.mxu0 0.0
    %2082 = vmatpush1.msra.mxu0 %v1946
    %2083 = vmatprep.subr.mxu0 0.0
    %2084 = vmatpush1.msra.mxu0 %v1945
    %2085 = vmatprep.subr.mxu0 0.0
    %2086 = vmatpush1.msra.mxu0 %v1944
    %2087 = vmatprep.subr.mxu0 0.0
    %2088 = vmatpush1.msra.mxu0 %v1943
    %2089 = vmatprep.subr.mxu0 0.0
    %2090 = vmatpush1.msra.mxu0 %v1942
    %2091 = vmatprep.subr.mxu0 0.0
    %2092 = vmatpush1.msra.mxu0 %v1941
    %2093 = vmatprep.subr.mxu0 0.0
    %2094 = vmatpush1.msra.mxu0 %v1940
    %2095 = vmatprep.subr.mxu0 0.0
    %2096 = vmatpush1.msra.mxu0 %v1939
    %2097 = vmatprep.subr.mxu0 0.0
    %2098 = vmatpush1.msra.mxu0 %v1938
    %2099 = vmatprep.subr.mxu0 0.0
    %2100 = vmatpush1.msra.mxu0 %v1937
    %2101 = vmatprep.subr.mxu0 0.0
    %2102 = vmatpush1.msra.mxu0 %v1936
    %2103 = vmatprep.subr.mxu0 0.0
    %2104 = vmatpush1.msra.mxu0 %v1935
    %2105 = vmatprep.subr.mxu0 0.0
    %2106 = vmatpush2.msra.mxu0 0.0
    %2107 = vmatprep.subr.mxu0 0.0
    %2108 = vmatpush2.msra.mxu0 0.0
    %2109 = vmatprep.subr.mxu0 0.0
    %2110 = vmatpush2.msra.mxu0 0.0
    %2111 = vmatprep.subr.mxu0 0.0
    %2112 = vmatpush2.msra.mxu0 0.0
    %2113 = vmatprep.subr.mxu0 0.0
    %2114 = vmatpush2.msra.mxu0 0.0
    %2115 = vmatprep.subr.mxu0 0.0
    %2116 = vmatpush2.msra.mxu0 0.0
    %2117 = vmatprep.subr.mxu0 0.0
    %2118 = vmatpush2.msra.mxu0 0.0
    %2119 = vmatprep.subr.mxu0 0.0
    %2120 = vmatpush2.msra.mxu0 0.0
    %2121 = vmatprep.subr.mxu0 0.0
    %2122 = vmatpush2.msra.mxu0 0.0
    %2123 = vmatprep.subr.mxu0 0.0
    %2124 = vmatpush2.msra.mxu0 0.0
    %2125 = vmatprep.subr.mxu0 0.0
    %2126 = vmatpush2.msra.mxu0 0.0
    %2127 = vmatprep.subr.mxu0 0.0
    %2128 = vmatpush2.msra.mxu0 0.0
    %2129 = vmatprep.subr.mxu0 0.0
    %2130 = vmatpush2.msra.mxu0 0.0
    %2131 = vmatprep.subr.mxu0 0.0
    %2132 = vmatpush2.msra.mxu0 0.0
    %2133 = vmatprep.subr.mxu0 0.0
    %2134 = vmatpush2.msra.mxu0 0.0
    %2135 = vmatprep.subr.mxu0 0.0
    %2136 = vmatpush2.msra.mxu0 0.0
    %2137 = vmatprep.mubr.f32.mxu0 0.0
    %2138 = vmatmul.mubr.f32.gmra.mxu0 %v1923
    %v2139 = vpop.f32.mrf.mxu0
    %v2140 = vadd.f32 %v2035, %v2139
    %v2141 = vpop.f32.mrf.mxu0
    %2142 = vmatprep.mubr.f32.mxu0 0.0
    %2143 = vmatmul.mubr.f32.gmra.mxu0 %v1924
    %v2144 = vpop.f32.mrf.mxu0
    %v2145 = vadd.f32 %v2040, %v2144
    %v2146 = vpop.f32.mrf.mxu0
    %2147 = vmatprep.mubr.f32.mxu0 0.0
    %2148 = vmatmul.mubr.f32.gmra.mxu0 %v1925
    %v2149 = vpop.f32.mrf.mxu0
    %v2150 = vadd.f32 %v2045, %v2149
    %v2151 = vpop.f32.mrf.mxu0
    %2152 = vmatprep.mubr.f32.mxu0 0.0
    %2153 = vmatmul.mubr.f32.gmra.mxu0 %v1926
    %v2154 = vpop.f32.mrf.mxu0
    %v2155 = vadd.f32 %v2050, %v2154
    %v2156 = vpop.f32.mrf.mxu0
    %2157 = vmatprep.mubr.f32.mxu0 0.0
    %2158 = vmatmul.mubr.f32.gmra.mxu0 %v1927
    %v2159 = vpop.f32.mrf.mxu0
    %v2160 = vadd.f32 %v2055, %v2159
    %v2161 = vpop.f32.mrf.mxu0
    %2162 = vmatprep.mubr.f32.mxu0 0.0
    %2163 = vmatmul.mubr.f32.gmra.mxu0 %v1928
    %v2164 = vpop.f32.mrf.mxu0
    %v2165 = vadd.f32 %v2060, %v2164
    %v2166 = vpop.f32.mrf.mxu0
    %2167 = vmatprep.mubr.f32.mxu0 0.0
    %2168 = vmatmul.mubr.f32.gmra.mxu0 %v1929
    %v2169 = vpop.f32.mrf.mxu0
    %v2170 = vadd.f32 %v2065, %v2169
    %v2171 = vpop.f32.mrf.mxu0
    %2172 = vmatprep.mubr.f32.mxu0 0.0
    %2173 = vmatmul.mubr.f32.gmra.mxu0 %v1930
    %v2174 = vpop.f32.mrf.mxu0
    %v2175 = vadd.f32 %v2070, %v2174
    %v2176 = vpop.f32.mrf.mxu0
    %2177 = vdwg.mxu0
    %s2178 = scalar_lea.vmem [#allocation2], 256
    %v2179 = vld [vmem:[%s2178] sm:$0xff]
    %v2180 = vld [vmem:[%s2178 + $0x8] sm:$0xff]
    %v2181 = vld [vmem:[%s2178 + $0x10] sm:$0xff]
    %v2182 = vld [vmem:[%s2178 + $0x18] sm:$0xff]
    %v2183 = vld [vmem:[%s2178 + $0x20] sm:$0xff]
    %v2184 = vld [vmem:[%s2178 + $0x28] sm:$0xff]
    %v2185 = vld [vmem:[%s2178 + $0x30] sm:$0xff]
    %v2186 = vld [vmem:[%s2178 + $0x38] sm:$0xff]
    %v2187 = vld [vmem:[%s2178 + $0x40] sm:$0xff]
    %v2188 = vld [vmem:[%s2178 + $0x48] sm:$0xff]
    %v2189 = vld [vmem:[%s2178 + $0x50] sm:$0xff]
    %v2190 = vld [vmem:[%s2178 + $0x58] sm:$0xff]
    %v2191 = vld [vmem:[%s2178 + $0x60] sm:$0xff]
    %v2192 = vld [vmem:[%s2178 + $0x68] sm:$0xff]
    %v2193 = vld [vmem:[%s2178 + $0x70] sm:$0xff]
    %v2194 = vld [vmem:[%s2178 + $0x78] sm:$0xff]
    %2195 = vmatprep.subr.mxu0 0.0
    %2196 = vmatpush1.msra.mxu0 %v2194
    %2197 = vmatprep.subr.mxu0 0.0
    %2198 = vmatpush1.msra.mxu0 %v2193
    %2199 = vmatprep.subr.mxu0 0.0
    %2200 = vmatpush1.msra.mxu0 %v2192
    %2201 = vmatprep.subr.mxu0 0.0
    %2202 = vmatpush1.msra.mxu0 %v2191
    %2203 = vmatprep.subr.mxu0 0.0
    %2204 = vmatpush1.msra.mxu0 %v2190
    %2205 = vmatprep.subr.mxu0 0.0
    %2206 = vmatpush1.msra.mxu0 %v2189
    %2207 = vmatprep.subr.mxu0 0.0
    %2208 = vmatpush1.msra.mxu0 %v2188
    %2209 = vmatprep.subr.mxu0 0.0
    %2210 = vmatpush1.msra.mxu0 %v2187
    %2211 = vmatprep.subr.mxu0 0.0
    %2212 = vmatpush1.msra.mxu0 %v2186
    %2213 = vmatprep.subr.mxu0 0.0
    %2214 = vmatpush1.msra.mxu0 %v2185
    %2215 = vmatprep.subr.mxu0 0.0
    %2216 = vmatpush1.msra.mxu0 %v2184
    %2217 = vmatprep.subr.mxu0 0.0
    %2218 = vmatpush1.msra.mxu0 %v2183
    %2219 = vmatprep.subr.mxu0 0.0
    %2220 = vmatpush1.msra.mxu0 %v2182
    %2221 = vmatprep.subr.mxu0 0.0
    %2222 = vmatpush1.msra.mxu0 %v2181
    %2223 = vmatprep.subr.mxu0 0.0
    %2224 = vmatpush1.msra.mxu0 %v2180
    %2225 = vmatprep.subr.mxu0 0.0
    %2226 = vmatpush1.msra.mxu0 %v2179
    %2227 = vmatprep.subr.mxu0 0.0
    %2228 = vmatpush2.msra.mxu0 0.0
    %2229 = vmatprep.subr.mxu0 0.0
    %2230 = vmatpush2.msra.mxu0 0.0
    %2231 = vmatprep.subr.mxu0 0.0
    %2232 = vmatpush2.msra.mxu0 0.0
    %2233 = vmatprep.subr.mxu0 0.0
    %2234 = vmatpush2.msra.mxu0 0.0
    %2235 = vmatprep.subr.mxu0 0.0
    %2236 = vmatpush2.msra.mxu0 0.0
    %2237 = vmatprep.subr.mxu0 0.0
    %2238 = vmatpush2.msra.mxu0 0.0
    %2239 = vmatprep.subr.mxu0 0.0
    %2240 = vmatpush2.msra.mxu0 0.0
    %2241 = vmatprep.subr.mxu0 0.0
    %2242 = vmatpush2.msra.mxu0 0.0
    %2243 = vmatprep.subr.mxu0 0.0
    %2244 = vmatpush2.msra.mxu0 0.0
    %2245 = vmatprep.subr.mxu0 0.0
    %2246 = vmatpush2.msra.mxu0 0.0
    %2247 = vmatprep.subr.mxu0 0.0
    %2248 = vmatpush2.msra.mxu0 0.0
    %2249 = vmatprep.subr.mxu0 0.0
    %2250 = vmatpush2.msra.mxu0 0.0
    %2251 = vmatprep.subr.mxu0 0.0
    %2252 = vmatpush2.msra.mxu0 0.0
    %2253 = vmatprep.subr.mxu0 0.0
    %2254 = vmatpush2.msra.mxu0 0.0
    %2255 = vmatprep.subr.mxu0 0.0
    %2256 = vmatpush2.msra.mxu0 0.0
    %2257 = vmatprep.subr.mxu0 0.0
    %2258 = vmatpush2.msra.mxu0 0.0
    %2259 = vmatprep.mubr.f32.mxu0 0.0
    %2260 = vmatmul.mubr.f32.gmra.mxu0 %v1925
    %v2261 = vpop.f32.mrf.mxu0
    %v2262 = vadd.f32 0.0, %v2261
    %v2263 = vpop.f32.mrf.mxu0
    %2264 = vmatprep.mubr.f32.mxu0 0.0
    %2265 = vmatmul.mubr.f32.gmra.mxu0 %v1926
    %v2266 = vpop.f32.mrf.mxu0
    %v2267 = vadd.f32 0.0, %v2266
    %v2268 = vpop.f32.mrf.mxu0
    %2269 = vmatprep.mubr.f32.mxu0 0.0
    %2270 = vmatmul.mubr.f32.gmra.mxu0 %v1927
    %v2271 = vpop.f32.mrf.mxu0
    %v2272 = vadd.f32 0.0, %v2271
    %v2273 = vpop.f32.mrf.mxu0
    %2274 = vmatprep.mubr.f32.mxu0 0.0
    %2275 = vmatmul.mubr.f32.gmra.mxu0 %v1928
    %v2276 = vpop.f32.mrf.mxu0
    %v2277 = vadd.f32 0.0, %v2276
    %v2278 = vpop.f32.mrf.mxu0
    %2279 = vmatprep.mubr.f32.mxu0 0.0
    %2280 = vmatmul.mubr.f32.gmra.mxu0 %v1929
    %v2281 = vpop.f32.mrf.mxu0
    %v2282 = vadd.f32 0.0, %v2281
    %v2283 = vpop.f32.mrf.mxu0
    %2284 = vmatprep.mubr.f32.mxu0 0.0
    %2285 = vmatmul.mubr.f32.gmra.mxu0 %v1930
    %v2286 = vpop.f32.mrf.mxu0
    %v2287 = vadd.f32 0.0, %v2286
    %v2288 = vpop.f32.mrf.mxu0
    %2289 = vmatprep.mubr.f32.mxu0 0.0
    %2290 = vmatmul.mubr.f32.gmra.mxu0 %v1931
    %v2291 = vpop.f32.mrf.mxu0
    %v2292 = vadd.f32 0.0, %v2291
    %v2293 = vpop.f32.mrf.mxu0
    %2294 = vmatprep.mubr.f32.mxu0 0.0
    %2295 = vmatmul.mubr.f32.gmra.mxu0 %v1932
    %v2296 = vpop.f32.mrf.mxu0
    %v2297 = vadd.f32 0.0, %v2296
    %v2298 = vpop.f32.mrf.mxu0
    %2299 = vdwg.mxu0
    %v2300 = vadd.f32 %v2140, %v2262
    %v2301 = vadd.f32 %v2145, %v2267
    %v2302 = vadd.f32 %v2150, %v2272
    %v2303 = vadd.f32 %v2155, %v2277
    %v2304 = vadd.f32 %v2160, %v2282
    %v2305 = vadd.f32 %v2165, %v2287
    %v2306 = vadd.f32 %v2170, %v2292
    %v2307 = vadd.f32 %v2175, %v2297
    %s2308 = scalar_lea.vmem [#allocation2], 384
    %v2309 = vld [vmem:[%s2308] sm:$0xff]
    %v2310 = vld [vmem:[%s2308 + $0x8] sm:$0xff]
    %v2311 = vld [vmem:[%s2308 + $0x10] sm:$0xff]
    %v2312 = vld [vmem:[%s2308 + $0x18] sm:$0xff]
    %v2313 = vld [vmem:[%s2308 + $0x20] sm:$0xff]
    %v2314 = vld [vmem:[%s2308 + $0x28] sm:$0xff]
    %v2315 = vld [vmem:[%s2308 + $0x30] sm:$0xff]
    %v2316 = vld [vmem:[%s2308 + $0x38] sm:$0xff]
    %v2317 = vld [vmem:[%s2308 + $0x40] sm:$0xff]
    %v2318 = vld [vmem:[%s2308 + $0x48] sm:$0xff]
    %v2319 = vld [vmem:[%s2308 + $0x50] sm:$0xff]
    %v2320 = vld [vmem:[%s2308 + $0x58] sm:$0xff]
    %v2321 = vld [vmem:[%s2308 + $0x60] sm:$0xff]
    %v2322 = vld [vmem:[%s2308 + $0x68] sm:$0xff]
    %v2323 = vld [vmem:[%s2308 + $0x70] sm:$0xff]
    %v2324 = vld [vmem:[%s2308 + $0x78] sm:$0xff]
    %2325 = vmatprep.subr.mxu0 0.0
    %2326 = vmatpush1.msra.mxu0 %v2324
    %2327 = vmatprep.subr.mxu0 0.0
    %2328 = vmatpush1.msra.mxu0 %v2323
    %2329 = vmatprep.subr.mxu0 0.0
    %2330 = vmatpush1.msra.mxu0 %v2322
    %2331 = vmatprep.subr.mxu0 0.0
    %2332 = vmatpush1.msra.mxu0 %v2321
    %2333 = vmatprep.subr.mxu0 0.0
    %2334 = vmatpush1.msra.mxu0 %v2320
    %2335 = vmatprep.subr.mxu0 0.0
    %2336 = vmatpush1.msra.mxu0 %v2319
    %2337 = vmatprep.subr.mxu0 0.0
    %2338 = vmatpush1.msra.mxu0 %v2318
    %2339 = vmatprep.subr.mxu0 0.0
    %2340 = vmatpush1.msra.mxu0 %v2317
    %2341 = vmatprep.subr.mxu0 0.0
    %2342 = vmatpush1.msra.mxu0 %v2316
    %2343 = vmatprep.subr.mxu0 0.0
    %2344 = vmatpush1.msra.mxu0 %v2315
    %2345 = vmatprep.subr.mxu0 0.0
    %2346 = vmatpush1.msra.mxu0 %v2314
    %2347 = vmatprep.subr.mxu0 0.0
    %2348 = vmatpush1.msra.mxu0 %v2313
    %2349 = vmatprep.subr.mxu0 0.0
    %2350 = vmatpush1.msra.mxu0 %v2312
    %2351 = vmatprep.subr.mxu0 0.0
    %2352 = vmatpush1.msra.mxu0 %v2311
    %2353 = vmatprep.subr.mxu0 0.0
    %2354 = vmatpush1.msra.mxu0 %v2310
    %2355 = vmatprep.subr.mxu0 0.0
    %2356 = vmatpush1.msra.mxu0 %v2309
    %2357 = vmatprep.subr.mxu0 0.0
    %2358 = vmatpush2.msra.mxu0 0.0
    %2359 = vmatprep.subr.mxu0 0.0
    %2360 = vmatpush2.msra.mxu0 0.0
    %2361 = vmatprep.subr.mxu0 0.0
    %2362 = vmatpush2.msra.mxu0 0.0
    %2363 = vmatprep.subr.mxu0 0.0
    %2364 = vmatpush2.msra.mxu0 0.0
    %2365 = vmatprep.subr.mxu0 0.0
    %2366 = vmatpush2.msra.mxu0 0.0
    %2367 = vmatprep.subr.mxu0 0.0
    %2368 = vmatpush2.msra.mxu0 0.0
    %2369 = vmatprep.subr.mxu0 0.0
    %2370 = vmatpush2.msra.mxu0 0.0
    %2371 = vmatprep.subr.mxu0 0.0
    %2372 = vmatpush2.msra.mxu0 0.0
    %2373 = vmatprep.subr.mxu0 0.0
    %2374 = vmatpush2.msra.mxu0 0.0
    %2375 = vmatprep.subr.mxu0 0.0
    %2376 = vmatpush2.msra.mxu0 0.0
    %2377 = vmatprep.subr.mxu0 0.0
    %2378 = vmatpush2.msra.mxu0 0.0
    %2379 = vmatprep.subr.mxu0 0.0
    %2380 = vmatpush2.msra.mxu0 0.0
    %2381 = vmatprep.subr.mxu0 0.0
    %2382 = vmatpush2.msra.mxu0 0.0
    %2383 = vmatprep.subr.mxu0 0.0
    %2384 = vmatpush2.msra.mxu0 0.0
    %2385 = vmatprep.subr.mxu0 0.0
    %2386 = vmatpush2.msra.mxu0 0.0
    %2387 = vmatprep.subr.mxu0 0.0
    %2388 = vmatpush2.msra.mxu0 0.0
    %2389 = vmatprep.mubr.f32.mxu0 0.0
    %2390 = vmatmul.mubr.f32.gmra.mxu0 %v1926
    %v2391 = vpop.f32.mrf.mxu0
    %v2392 = vadd.f32 0.0, %v2391
    %v2393 = vpop.f32.mrf.mxu0
    %2394 = vmatprep.mubr.f32.mxu0 0.0
    %2395 = vmatmul.mubr.f32.gmra.mxu0 %v1927
    %v2396 = vpop.f32.mrf.mxu0
    %v2397 = vadd.f32 0.0, %v2396
    %v2398 = vpop.f32.mrf.mxu0
    %2399 = vmatprep.mubr.f32.mxu0 0.0
    %2400 = vmatmul.mubr.f32.gmra.mxu0 %v1928
    %v2401 = vpop.f32.mrf.mxu0
    %v2402 = vadd.f32 0.0, %v2401
    %v2403 = vpop.f32.mrf.mxu0
    %2404 = vmatprep.mubr.f32.mxu0 0.0
    %2405 = vmatmul.mubr.f32.gmra.mxu0 %v1929
    %v2406 = vpop.f32.mrf.mxu0
    %v2407 = vadd.f32 0.0, %v2406
    %v2408 = vpop.f32.mrf.mxu0
    %2409 = vmatprep.mubr.f32.mxu0 0.0
    %2410 = vmatmul.mubr.f32.gmra.mxu0 %v1930
    %v2411 = vpop.f32.mrf.mxu0
    %v2412 = vadd.f32 0.0, %v2411
    %v2413 = vpop.f32.mrf.mxu0
    %2414 = vmatprep.mubr.f32.mxu0 0.0
    %2415 = vmatmul.mubr.f32.gmra.mxu0 %v1931
    %v2416 = vpop.f32.mrf.mxu0
    %v2417 = vadd.f32 0.0, %v2416
    %v2418 = vpop.f32.mrf.mxu0
    %2419 = vmatprep.mubr.f32.mxu0 0.0
    %2420 = vmatmul.mubr.f32.gmra.mxu0 %v1932
    %v2421 = vpop.f32.mrf.mxu0
    %v2422 = vadd.f32 0.0, %v2421
    %v2423 = vpop.f32.mrf.mxu0
    %2424 = vmatprep.mubr.f32.mxu0 0.0
    %2425 = vmatmul.mubr.f32.gmra.mxu0 %v1933
    %v2426 = vpop.f32.mrf.mxu0
    %v2427 = vadd.f32 0.0, %v2426
    %v2428 = vpop.f32.mrf.mxu0
    %2429 = vdwg.mxu0
    %v2430 = vadd.f32 %v2300, %v2392
    %v2431 = vadd.f32 %v2301, %v2397
    %v2432 = vadd.f32 %v2302, %v2402
    %v2433 = vadd.f32 %v2303, %v2407
    %v2434 = vadd.f32 %v2304, %v2412
    %v2435 = vadd.f32 %v2305, %v2417
    %v2436 = vadd.f32 %v2306, %v2422
    %v2437 = vadd.f32 %v2307, %v2427
    %s2438 = scalar_lea.vmem [#allocation2], 512
    %v2439 = vld [vmem:[%s2438] sm:$0xff]
    %v2440 = vld [vmem:[%s2438 + $0x8] sm:$0xff]
    %v2441 = vld [vmem:[%s2438 + $0x10] sm:$0xff]
    %v2442 = vld [vmem:[%s2438 + $0x18] sm:$0xff]
    %v2443 = vld [vmem:[%s2438 + $0x20] sm:$0xff]
    %v2444 = vld [vmem:[%s2438 + $0x28] sm:$0xff]
    %v2445 = vld [vmem:[%s2438 + $0x30] sm:$0xff]
    %v2446 = vld [vmem:[%s2438 + $0x38] sm:$0xff]
    %v2447 = vld [vmem:[%s2438 + $0x40] sm:$0xff]
    %v2448 = vld [vmem:[%s2438 + $0x48] sm:$0xff]
    %v2449 = vld [vmem:[%s2438 + $0x50] sm:$0xff]
    %v2450 = vld [vmem:[%s2438 + $0x58] sm:$0xff]
    %v2451 = vld [vmem:[%s2438 + $0x60] sm:$0xff]
    %v2452 = vld [vmem:[%s2438 + $0x68] sm:$0xff]
    %v2453 = vld [vmem:[%s2438 + $0x70] sm:$0xff]
    %v2454 = vld [vmem:[%s2438 + $0x78] sm:$0xff]
    %2455 = vmatprep.subr.mxu0 0.0
    %2456 = vmatpush1.msra.mxu0 %v2454
    %2457 = vmatprep.subr.mxu0 0.0
    %2458 = vmatpush1.msra.mxu0 %v2453
    %2459 = vmatprep.subr.mxu0 0.0
    %2460 = vmatpush1.msra.mxu0 %v2452
    %2461 = vmatprep.subr.mxu0 0.0
    %2462 = vmatpush1.msra.mxu0 %v2451
    %2463 = vmatprep.subr.mxu0 0.0
    %2464 = vmatpush1.msra.mxu0 %v2450
    %2465 = vmatprep.subr.mxu0 0.0
    %2466 = vmatpush1.msra.mxu0 %v2449
    %2467 = vmatprep.subr.mxu0 0.0
    %2468 = vmatpush1.msra.mxu0 %v2448
    %2469 = vmatprep.subr.mxu0 0.0
    %2470 = vmatpush1.msra.mxu0 %v2447
    %2471 = vmatprep.subr.mxu0 0.0
    %2472 = vmatpush1.msra.mxu0 %v2446
    %2473 = vmatprep.subr.mxu0 0.0
    %2474 = vmatpush1.msra.mxu0 %v2445
    %2475 = vmatprep.subr.mxu0 0.0
    %2476 = vmatpush1.msra.mxu0 %v2444
    %2477 = vmatprep.subr.mxu0 0.0
    %2478 = vmatpush1.msra.mxu0 %v2443
    %2479 = vmatprep.subr.mxu0 0.0
    %2480 = vmatpush1.msra.mxu0 %v2442
    %2481 = vmatprep.subr.mxu0 0.0
    %2482 = vmatpush1.msra.mxu0 %v2441
    %2483 = vmatprep.subr.mxu0 0.0
    %2484 = vmatpush1.msra.mxu0 %v2440
    %2485 = vmatprep.subr.mxu0 0.0
    %2486 = vmatpush1.msra.mxu0 %v2439
    %2487 = vmatprep.subr.mxu0 0.0
    %2488 = vmatpush2.msra.mxu0 0.0
    %2489 = vmatprep.subr.mxu0 0.0
    %2490 = vmatpush2.msra.mxu0 0.0
    %2491 = vmatprep.subr.mxu0 0.0
    %2492 = vmatpush2.msra.mxu0 0.0
    %2493 = vmatprep.subr.mxu0 0.0
    %2494 = vmatpush2.msra.mxu0 0.0
    %2495 = vmatprep.subr.mxu0 0.0
    %2496 = vmatpush2.msra.mxu0 0.0
    %2497 = vmatprep.subr.mxu0 0.0
    %2498 = vmatpush2.msra.mxu0 0.0
    %2499 = vmatprep.subr.mxu0 0.0
    %2500 = vmatpush2.msra.mxu0 0.0
    %2501 = vmatprep.subr.mxu0 0.0
    %2502 = vmatpush2.msra.mxu0 0.0
    %2503 = vmatprep.subr.mxu0 0.0
    %2504 = vmatpush2.msra.mxu0 0.0
    %2505 = vmatprep.subr.mxu0 0.0
    %2506 = vmatpush2.msra.mxu0 0.0
    %2507 = vmatprep.subr.mxu0 0.0
    %2508 = vmatpush2.msra.mxu0 0.0
    %2509 = vmatprep.subr.mxu0 0.0
    %2510 = vmatpush2.msra.mxu0 0.0
    %2511 = vmatprep.subr.mxu0 0.0
    %2512 = vmatpush2.msra.mxu0 0.0
    %2513 = vmatprep.subr.mxu0 0.0
    %2514 = vmatpush2.msra.mxu0 0.0
    %2515 = vmatprep.subr.mxu0 0.0
    %2516 = vmatpush2.msra.mxu0 0.0
    %2517 = vmatprep.subr.mxu0 0.0
    %2518 = vmatpush2.msra.mxu0 0.0
    %2519 = vmatprep.mubr.f32.mxu0 0.0
    %2520 = vmatmul.mubr.f32.gmra.mxu0 %v1927
    %v2521 = vpop.f32.mrf.mxu0
    %v2522 = vadd.f32 0.0, %v2521
    %v2523 = vpop.f32.mrf.mxu0
    %2524 = vmatprep.mubr.f32.mxu0 0.0
    %2525 = vmatmul.mubr.f32.gmra.mxu0 %v1928
    %v2526 = vpop.f32.mrf.mxu0
    %v2527 = vadd.f32 0.0, %v2526
    %v2528 = vpop.f32.mrf.mxu0
    %2529 = vmatprep.mubr.f32.mxu0 0.0
    %2530 = vmatmul.mubr.f32.gmra.mxu0 %v1929
    %v2531 = vpop.f32.mrf.mxu0
    %v2532 = vadd.f32 0.0, %v2531
    %v2533 = vpop.f32.mrf.mxu0
    %2534 = vmatprep.mubr.f32.mxu0 0.0
    %2535 = vmatmul.mubr.f32.gmra.mxu0 %v1930
    %v2536 = vpop.f32.mrf.mxu0
    %v2537 = vadd.f32 0.0, %v2536
    %v2538 = vpop.f32.mrf.mxu0
    %2539 = vmatprep.mubr.f32.mxu0 0.0
    %2540 = vmatmul.mubr.f32.gmra.mxu0 %v1931
    %v2541 = vpop.f32.mrf.mxu0
    %v2542 = vadd.f32 0.0, %v2541
    %v2543 = vpop.f32.mrf.mxu0
    %2544 = vmatprep.mubr.f32.mxu0 0.0
    %2545 = vmatmul.mubr.f32.gmra.mxu0 %v1932
    %v2546 = vpop.f32.mrf.mxu0
    %v2547 = vadd.f32 0.0, %v2546
    %v2548 = vpop.f32.mrf.mxu0
    %2549 = vmatprep.mubr.f32.mxu0 0.0
    %2550 = vmatmul.mubr.f32.gmra.mxu0 %v1933
    %v2551 = vpop.f32.mrf.mxu0
    %v2552 = vadd.f32 0.0, %v2551
    %v2553 = vpop.f32.mrf.mxu0
    %2554 = vmatprep.mubr.f32.mxu0 0.0
    %2555 = vmatmul.mubr.f32.gmra.mxu0 %v1934
    %v2556 = vpop.f32.mrf.mxu0
    %v2557 = vadd.f32 0.0, %v2556
    %v2558 = vpop.f32.mrf.mxu0
    %2559 = vdwg.mxu0
    %v2560 = vadd.f32 %v2430, %v2522
    %v2561 = vadd.f32 %v2431, %v2527
    %v2562 = vadd.f32 %v2432, %v2532
    %v2563 = vadd.f32 %v2433, %v2537
    %v2564 = vadd.f32 %v2434, %v2542
    %v2565 = vadd.f32 %v2435, %v2547
    %v2566 = vadd.f32 %v2436, %v2552
    %v2567 = vadd.f32 %v2437, %v2557
    %v2568 = vld [vmem:[%s4] sm:$0x1]
    %v2570 = vlaneseq
    %v2571 = vshrl.u32 %v2570, 7
    %v2572 = vsub.s32 0, %v2571
    %v2573 = vrot.slane %v2568, %v2572
    %v2575 = vadd.f32 %v2560, %v2573
    %v2576 = vadd.f32 %v2561, %v2573
    %v2577 = vadd.f32 %v2562, %v2573
    %v2578 = vadd.f32 %v2563, %v2573
    %v2579 = vadd.f32 %v2564, %v2573
    %v2580 = vadd.f32 %v2565, %v2573
    %v2581 = vadd.f32 %v2566, %v2573
    %v2582 = vadd.f32 %v2567, %v2573
    %v2583 = vmax.f32 %v2575, 0.0
    %v2584 = vmax.f32 %v2576, 0.0
    %v2585 = vmax.f32 %v2577, 0.0
    %v2586 = vmax.f32 %v2578, 0.0
    %v2587 = vmax.f32 %v2579, 0.0
    %v2588 = vmax.f32 %v2580, 0.0
    %v2589 = vmax.f32 %v2581, 0.0
    %v2590 = vmax.f32 %v2582, 0.0
    %2599 = vrot.lane.b32.xlu0 %v2583, 64
    %v2600 = vpop.permute.xlu0 %2599
    %2601 = vrot.lane.b32.xlu0 %v2584, 64
    %v2602 = vpop.permute.xlu0 %2601
    %2603 = vrot.lane.b32.xlu0 %v2585, 64
    %v2604 = vpop.permute.xlu0 %2603
    %2605 = vrot.lane.b32.xlu0 %v2586, 64
    %v2606 = vpop.permute.xlu0 %2605
    %2607 = vrot.lane.b32.xlu0 %v2587, 64
    %v2608 = vpop.permute.xlu0 %2607
    %2609 = vrot.lane.b32.xlu0 %v2588, 64
    %v2610 = vpop.permute.xlu0 %2609
    %2611 = vrot.lane.b32.xlu0 %v2589, 64
    %v2612 = vpop.permute.xlu0 %2611
    %2613 = vrot.lane.b32.xlu0 %v2590, 64
    %v2614 = vpop.permute.xlu0 %2613
    %v2623 = vmax.f32 %v2583, %v2600
    %v2624 = vmax.f32 %v2584, %v2602
    %v2625 = vmax.f32 %v2585, %v2604
    %v2626 = vmax.f32 %v2586, %v2606
    %v2627 = vmax.f32 %v2587, %v2608
    %v2628 = vmax.f32 %v2588, %v2610
    %v2629 = vmax.f32 %v2589, %v2612
    %v2630 = vmax.f32 %v2590, %v2614
    %v2631 = vmax.f32 %v2623, %v2624
    %v2632 = vmax.f32 %v2625, %v2626
    %v2633 = vmax.f32 %v2627, %v2628
    %v2634 = vmax.f32 %v2629, %v2630
    %v2635 = vld [vmem:[#allocation4] sm:$0xff]
    %v2636 = vld [vmem:[#allocation4 + $0x8] sm:$0xff]
    %v2637 = vld [vmem:[#allocation4 + $0x10] sm:$0xff]
    %v2638 = vld [vmem:[#allocation4 + $0x18] sm:$0xff]
    %v2639 = vld [vmem:[#allocation4 + $0x20] sm:$0xff]
    %v2640 = vld [vmem:[#allocation4 + $0x28] sm:$0xff]
    %v2641 = vld [vmem:[#allocation4 + $0x30] sm:$0xff]
    %v2642 = vld [vmem:[#allocation4 + $0x38] sm:$0xff]
    %s2643 = scalar_lea.vmem [#allocation4], 64
    %v2644 = vld [vmem:[%s2643] sm:$0xff]
    %v2645 = vld [vmem:[%s2643 + $0x8] sm:$0xff]
    %v2646 = vld [vmem:[%s2643 + $0x10] sm:$0xff]
    %v2647 = vld [vmem:[%s2643 + $0x18] sm:$0xff]
    %v2648 = vld [vmem:[%s2643 + $0x20] sm:$0xff]
    %v2649 = vld [vmem:[%s2643 + $0x28] sm:$0xff]
    %v2650 = vld [vmem:[%s2643 + $0x30] sm:$0xff]
    %v2651 = vld [vmem:[%s2643 + $0x38] sm:$0xff]
    %vm2652 = vcmask 523264
    %v2654 = vsel %vm2652, %v2632, 0
    %2656 = vmatprep.subr.mxu0 0.0
    %2657 = vmatpush1.msra.mxu0 0.0
    %2658 = vmatprep.subr.mxu0 0.0
    %2659 = vmatpush1.msra.mxu0 0.0
    %2660 = vmatprep.subr.mxu0 0.0
    %2661 = vmatpush1.msra.mxu0 0.0
    %2662 = vmatprep.subr.mxu0 0.0
    %2663 = vmatpush1.msra.mxu0 0.0
    %2664 = vmatprep.subr.mxu0 0.0
    %2665 = vmatpush1.msra.mxu0 0.0
    %2666 = vmatprep.subr.mxu0 0.0
    %2667 = vmatpush1.msra.mxu0 0.0
    %2668 = vmatprep.subr.mxu0 0.0
    %2669 = vmatpush1.msra.mxu0 0.0
    %2670 = vmatprep.subr.mxu0 0.0
    %2671 = vmatpush1.msra.mxu0 0.0
    %2672 = vmatprep.subr.mxu0 0.0
    %2673 = vmatpush1.msra.mxu0 %v2651
    %2674 = vmatprep.subr.mxu0 0.0
    %2675 = vmatpush1.msra.mxu0 %v2650
    %2676 = vmatprep.subr.mxu0 0.0
    %2677 = vmatpush1.msra.mxu0 %v2649
    %2678 = vmatprep.subr.mxu0 0.0
    %2679 = vmatpush1.msra.mxu0 %v2648
    %2680 = vmatprep.subr.mxu0 0.0
    %2681 = vmatpush1.msra.mxu0 %v2647
    %2682 = vmatprep.subr.mxu0 0.0
    %2683 = vmatpush1.msra.mxu0 %v2646
    %2684 = vmatprep.subr.mxu0 0.0
    %2685 = vmatpush1.msra.mxu0 %v2645
    %2686 = vmatprep.subr.mxu0 0.0
    %2687 = vmatpush1.msra.mxu0 %v2644
    %2688 = vmatprep.subr.mxu0 0.0
    %2689 = vmatpush2.msra.mxu0 0.0
    %2690 = vmatprep.subr.mxu0 0.0
    %2691 = vmatpush2.msra.mxu0 0.0
    %2692 = vmatprep.subr.mxu0 0.0
    %2693 = vmatpush2.msra.mxu0 0.0
    %2694 = vmatprep.subr.mxu0 0.0
    %2695 = vmatpush2.msra.mxu0 0.0
    %2696 = vmatprep.subr.mxu0 0.0
    %2697 = vmatpush2.msra.mxu0 0.0
    %2698 = vmatprep.subr.mxu0 0.0
    %2699 = vmatpush2.msra.mxu0 0.0
    %2700 = vmatprep.subr.mxu0 0.0
    %2701 = vmatpush2.msra.mxu0 0.0
    %2702 = vmatprep.subr.mxu0 0.0
    %2703 = vmatpush2.msra.mxu0 0.0
    %2704 = vmatprep.subr.mxu0 0.0
    %2705 = vmatpush2.msra.mxu0 0.0
    %2706 = vmatprep.subr.mxu0 0.0
    %2707 = vmatpush2.msra.mxu0 0.0
    %2708 = vmatprep.subr.mxu0 0.0
    %2709 = vmatpush2.msra.mxu0 0.0
    %2710 = vmatprep.subr.mxu0 0.0
    %2711 = vmatpush2.msra.mxu0 0.0
    %2712 = vmatprep.subr.mxu0 0.0
    %2713 = vmatpush2.msra.mxu0 0.0
    %2714 = vmatprep.subr.mxu0 0.0
    %2715 = vmatpush2.msra.mxu0 0.0
    %2716 = vmatprep.subr.mxu0 0.0
    %2717 = vmatpush2.msra.mxu0 0.0
    %2718 = vmatprep.subr.mxu0 0.0
    %2719 = vmatpush2.msra.mxu0 0.0
    %2720 = vmatprep.mubr.f32.mxu0 0.0
    %2721 = vmatmul.mubr.f32.gmra.mxu0 %v2654
    %v2722 = vpop.f32.mrf.mxu0
    %v2723 = vadd.f32 0.0, %v2722
    %v2724 = vpop.f32.mrf.mxu0
    %2725 = vdwg.mxu0
    %v2727 = vsel %vm2652, %v2631, 0
    %2729 = vmatprep.subr.mxu0 0.0
    %2730 = vmatpush1.msra.mxu0 0.0
    %2731 = vmatprep.subr.mxu0 0.0
    %2732 = vmatpush1.msra.mxu0 0.0
    %2733 = vmatprep.subr.mxu0 0.0
    %2734 = vmatpush1.msra.mxu0 0.0
    %2735 = vmatprep.subr.mxu0 0.0
    %2736 = vmatpush1.msra.mxu0 0.0
    %2737 = vmatprep.subr.mxu0 0.0
    %2738 = vmatpush1.msra.mxu0 0.0
    %2739 = vmatprep.subr.mxu0 0.0
    %2740 = vmatpush1.msra.mxu0 0.0
    %2741 = vmatprep.subr.mxu0 0.0
    %2742 = vmatpush1.msra.mxu0 0.0
    %2743 = vmatprep.subr.mxu0 0.0
    %2744 = vmatpush1.msra.mxu0 0.0
    %2745 = vmatprep.subr.mxu0 0.0
    %2746 = vmatpush1.msra.mxu0 %v2642
    %2747 = vmatprep.subr.mxu0 0.0
    %2748 = vmatpush1.msra.mxu0 %v2641
    %2749 = vmatprep.subr.mxu0 0.0
    %2750 = vmatpush1.msra.mxu0 %v2640
    %2751 = vmatprep.subr.mxu0 0.0
    %2752 = vmatpush1.msra.mxu0 %v2639
    %2753 = vmatprep.subr.mxu0 0.0
    %2754 = vmatpush1.msra.mxu0 %v2638
    %2755 = vmatprep.subr.mxu0 0.0
    %2756 = vmatpush1.msra.mxu0 %v2637
    %2757 = vmatprep.subr.mxu0 0.0
    %2758 = vmatpush1.msra.mxu0 %v2636
    %2759 = vmatprep.subr.mxu0 0.0
    %2760 = vmatpush1.msra.mxu0 %v2635
    %2761 = vmatprep.subr.mxu0 0.0
    %2762 = vmatpush2.msra.mxu0 0.0
    %2763 = vmatprep.subr.mxu0 0.0
    %2764 = vmatpush2.msra.mxu0 0.0
    %2765 = vmatprep.subr.mxu0 0.0
    %2766 = vmatpush2.msra.mxu0 0.0
    %2767 = vmatprep.subr.mxu0 0.0
    %2768 = vmatpush2.msra.mxu0 0.0
    %2769 = vmatprep.subr.mxu0 0.0
    %2770 = vmatpush2.msra.mxu0 0.0
    %2771 = vmatprep.subr.mxu0 0.0
    %2772 = vmatpush2.msra.mxu0 0.0
    %2773 = vmatprep.subr.mxu0 0.0
    %2774 = vmatpush2.msra.mxu0 0.0
    %2775 = vmatprep.subr.mxu0 0.0
    %2776 = vmatpush2.msra.mxu0 0.0
    %2777 = vmatprep.subr.mxu0 0.0
    %2778 = vmatpush2.msra.mxu0 0.0
    %2779 = vmatprep.subr.mxu0 0.0
    %2780 = vmatpush2.msra.mxu0 0.0
    %2781 = vmatprep.subr.mxu0 0.0
    %2782 = vmatpush2.msra.mxu0 0.0
    %2783 = vmatprep.subr.mxu0 0.0
    %2784 = vmatpush2.msra.mxu0 0.0
    %2785 = vmatprep.subr.mxu0 0.0
    %2786 = vmatpush2.msra.mxu0 0.0
    %2787 = vmatprep.subr.mxu0 0.0
    %2788 = vmatpush2.msra.mxu0 0.0
    %2789 = vmatprep.subr.mxu0 0.0
    %2790 = vmatpush2.msra.mxu0 0.0
    %2791 = vmatprep.subr.mxu0 0.0
    %2792 = vmatpush2.msra.mxu0 0.0
    %2793 = vmatprep.mubr.f32.mxu0 0.0
    %2794 = vmatmul.mubr.f32.gmra.mxu0 %v2727
    %v2795 = vpop.f32.mrf.mxu0
    %v2796 = vadd.f32 %v2723, %v2795
    %v2797 = vpop.f32.mrf.mxu0
    %2798 = vdwg.mxu0
    %s2799 = scalar_lea.vmem [#allocation4], 128
    %v2800 = vld [vmem:[%s2799] sm:$0xff]
    %v2801 = vld [vmem:[%s2799 + $0x8] sm:$0xff]
    %v2802 = vld [vmem:[%s2799 + $0x10] sm:$0xff]
    %v2803 = vld [vmem:[%s2799 + $0x18] sm:$0xff]
    %v2804 = vld [vmem:[%s2799 + $0x20] sm:$0xff]
    %v2805 = vld [vmem:[%s2799 + $0x28] sm:$0xff]
    %v2806 = vld [vmem:[%s2799 + $0x30] sm:$0xff]
    %v2807 = vld [vmem:[%s2799 + $0x38] sm:$0xff]
    %v2809 = vsel %vm2652, %v2633, 0
    %2811 = vmatprep.subr.mxu0 0.0
    %2812 = vmatpush1.msra.mxu0 0.0
    %2813 = vmatprep.subr.mxu0 0.0
    %2814 = vmatpush1.msra.mxu0 0.0
    %2815 = vmatprep.subr.mxu0 0.0
    %2816 = vmatpush1.msra.mxu0 0.0
    %2817 = vmatprep.subr.mxu0 0.0
    %2818 = vmatpush1.msra.mxu0 0.0
    %2819 = vmatprep.subr.mxu0 0.0
    %2820 = vmatpush1.msra.mxu0 0.0
    %2821 = vmatprep.subr.mxu0 0.0
    %2822 = vmatpush1.msra.mxu0 0.0
    %2823 = vmatprep.subr.mxu0 0.0
    %2824 = vmatpush1.msra.mxu0 0.0
    %2825 = vmatprep.subr.mxu0 0.0
    %2826 = vmatpush1.msra.mxu0 0.0
    %2827 = vmatprep.subr.mxu0 0.0
    %2828 = vmatpush1.msra.mxu0 %v2807
    %2829 = vmatprep.subr.mxu0 0.0
    %2830 = vmatpush1.msra.mxu0 %v2806
    %2831 = vmatprep.subr.mxu0 0.0
    %2832 = vmatpush1.msra.mxu0 %v2805
    %2833 = vmatprep.subr.mxu0 0.0
    %2834 = vmatpush1.msra.mxu0 %v2804
    %2835 = vmatprep.subr.mxu0 0.0
    %2836 = vmatpush1.msra.mxu0 %v2803
    %2837 = vmatprep.subr.mxu0 0.0
    %2838 = vmatpush1.msra.mxu0 %v2802
    %2839 = vmatprep.subr.mxu0 0.0
    %2840 = vmatpush1.msra.mxu0 %v2801
    %2841 = vmatprep.subr.mxu0 0.0
    %2842 = vmatpush1.msra.mxu0 %v2800
    %2843 = vmatprep.subr.mxu0 0.0
    %2844 = vmatpush2.msra.mxu0 0.0
    %2845 = vmatprep.subr.mxu0 0.0
    %2846 = vmatpush2.msra.mxu0 0.0
    %2847 = vmatprep.subr.mxu0 0.0
    %2848 = vmatpush2.msra.mxu0 0.0
    %2849 = vmatprep.subr.mxu0 0.0
    %2850 = vmatpush2.msra.mxu0 0.0
    %2851 = vmatprep.subr.mxu0 0.0
    %2852 = vmatpush2.msra.mxu0 0.0
    %2853 = vmatprep.subr.mxu0 0.0
    %2854 = vmatpush2.msra.mxu0 0.0
    %2855 = vmatprep.subr.mxu0 0.0
    %2856 = vmatpush2.msra.mxu0 0.0
    %2857 = vmatprep.subr.mxu0 0.0
    %2858 = vmatpush2.msra.mxu0 0.0
    %2859 = vmatprep.subr.mxu0 0.0
    %2860 = vmatpush2.msra.mxu0 0.0
    %2861 = vmatprep.subr.mxu0 0.0
    %2862 = vmatpush2.msra.mxu0 0.0
    %2863 = vmatprep.subr.mxu0 0.0
    %2864 = vmatpush2.msra.mxu0 0.0
    %2865 = vmatprep.subr.mxu0 0.0
    %2866 = vmatpush2.msra.mxu0 0.0
    %2867 = vmatprep.subr.mxu0 0.0
    %2868 = vmatpush2.msra.mxu0 0.0
    %2869 = vmatprep.subr.mxu0 0.0
    %2870 = vmatpush2.msra.mxu0 0.0
    %2871 = vmatprep.subr.mxu0 0.0
    %2872 = vmatpush2.msra.mxu0 0.0
    %2873 = vmatprep.subr.mxu0 0.0
    %2874 = vmatpush2.msra.mxu0 0.0
    %2875 = vmatprep.mubr.f32.mxu0 0.0
    %2876 = vmatmul.mubr.f32.gmra.mxu0 %v2809
    %v2877 = vpop.f32.mrf.mxu0
    %v2878 = vadd.f32 0.0, %v2877
    %v2879 = vpop.f32.mrf.mxu0
    %2880 = vdwg.mxu0
    %v2881 = vadd.f32 %v2796, %v2878
    %s2882 = scalar_lea.vmem [#allocation4], 192
    %v2883 = vld [vmem:[%s2882] sm:$0xff]
    %v2884 = vld [vmem:[%s2882 + $0x8] sm:$0xff]
    %v2885 = vld [vmem:[%s2882 + $0x10] sm:$0xff]
    %v2886 = vld [vmem:[%s2882 + $0x18] sm:$0xff]
    %v2887 = vld [vmem:[%s2882 + $0x20] sm:$0xff]
    %v2888 = vld [vmem:[%s2882 + $0x28] sm:$0xff]
    %v2889 = vld [vmem:[%s2882 + $0x30] sm:$0xff]
    %v2890 = vld [vmem:[%s2882 + $0x38] sm:$0xff]
    %v2892 = vsel %vm2652, %v2634, 0
    %2894 = vmatprep.subr.mxu0 0.0
    %2895 = vmatpush1.msra.mxu0 0.0
    %2896 = vmatprep.subr.mxu0 0.0
    %2897 = vmatpush1.msra.mxu0 0.0
    %2898 = vmatprep.subr.mxu0 0.0
    %2899 = vmatpush1.msra.mxu0 0.0
    %2900 = vmatprep.subr.mxu0 0.0
    %2901 = vmatpush1.msra.mxu0 0.0
    %2902 = vmatprep.subr.mxu0 0.0
    %2903 = vmatpush1.msra.mxu0 0.0
    %2904 = vmatprep.subr.mxu0 0.0
    %2905 = vmatpush1.msra.mxu0 0.0
    %2906 = vmatprep.subr.mxu0 0.0
    %2907 = vmatpush1.msra.mxu0 0.0
    %2908 = vmatprep.subr.mxu0 0.0
    %2909 = vmatpush1.msra.mxu0 0.0
    %2910 = vmatprep.subr.mxu0 0.0
    %2911 = vmatpush1.msra.mxu0 %v2890
    %2912 = vmatprep.subr.mxu0 0.0
    %2913 = vmatpush1.msra.mxu0 %v2889
    %2914 = vmatprep.subr.mxu0 0.0
    %2915 = vmatpush1.msra.mxu0 %v2888
    %2916 = vmatprep.subr.mxu0 0.0
    %2917 = vmatpush1.msra.mxu0 %v2887
    %2918 = vmatprep.subr.mxu0 0.0
    %2919 = vmatpush1.msra.mxu0 %v2886
    %2920 = vmatprep.subr.mxu0 0.0
    %2921 = vmatpush1.msra.mxu0 %v2885
    %2922 = vmatprep.subr.mxu0 0.0
    %2923 = vmatpush1.msra.mxu0 %v2884
    %2924 = vmatprep.subr.mxu0 0.0
    %2925 = vmatpush1.msra.mxu0 %v2883
    %2926 = vmatprep.subr.mxu0 0.0
    %2927 = vmatpush2.msra.mxu0 0.0
    %2928 = vmatprep.subr.mxu0 0.0
    %2929 = vmatpush2.msra.mxu0 0.0
    %2930 = vmatprep.subr.mxu0 0.0
    %2931 = vmatpush2.msra.mxu0 0.0
    %2932 = vmatprep.subr.mxu0 0.0
    %2933 = vmatpush2.msra.mxu0 0.0
    %2934 = vmatprep.subr.mxu0 0.0
    %2935 = vmatpush2.msra.mxu0 0.0
    %2936 = vmatprep.subr.mxu0 0.0
    %2937 = vmatpush2.msra.mxu0 0.0
    %2938 = vmatprep.subr.mxu0 0.0
    %2939 = vmatpush2.msra.mxu0 0.0
    %2940 = vmatprep.subr.mxu0 0.0
    %2941 = vmatpush2.msra.mxu0 0.0
    %2942 = vmatprep.subr.mxu0 0.0
    %2943 = vmatpush2.msra.mxu0 0.0
    %2944 = vmatprep.subr.mxu0 0.0
    %2945 = vmatpush2.msra.mxu0 0.0
    %2946 = vmatprep.subr.mxu0 0.0
    %2947 = vmatpush2.msra.mxu0 0.0
    %2948 = vmatprep.subr.mxu0 0.0
    %2949 = vmatpush2.msra.mxu0 0.0
    %2950 = vmatprep.subr.mxu0 0.0
    %2951 = vmatpush2.msra.mxu0 0.0
    %2952 = vmatprep.subr.mxu0 0.0
    %2953 = vmatpush2.msra.mxu0 0.0
    %2954 = vmatprep.subr.mxu0 0.0
    %2955 = vmatpush2.msra.mxu0 0.0
    %2956 = vmatprep.subr.mxu0 0.0
    %2957 = vmatpush2.msra.mxu0 0.0
    %2958 = vmatprep.mubr.f32.mxu0 0.0
    %2959 = vmatmul.mubr.f32.gmra.mxu0 %v2892
    %v2960 = vpop.f32.mrf.mxu0
    %v2961 = vadd.f32 0.0, %v2960
    %v2962 = vpop.f32.mrf.mxu0
    %2963 = vdwg.mxu0
    %v2964 = vadd.f32 %v2881, %v2961
    %v2965 = vld [vmem:[%s6] sm:$0x1]
    %v2967 = vlaneseq
    %v2968 = vshrl.u32 %v2967, 7
    %v2969 = vsub.s32 0, %v2968
    %v2970 = vrot.slane %v2965, %v2969
    %v2972 = vadd.f32 %v2964, %v2970
    %v2973 = vmax.f32 %v2972, 0.0
    %v2974 = vld [vmem:[#allocation6] sm:$0xff]
    %v2975 = vld [vmem:[#allocation6 + $0x8] sm:$0xff]
    %v2976 = vld [vmem:[#allocation6 + $0x10] sm:$0xff]
    %v2977 = vld [vmem:[#allocation6 + $0x18] sm:$0xff]
    %v2978 = vld [vmem:[#allocation6 + $0x20] sm:$0xff]
    %v2979 = vld [vmem:[#allocation6 + $0x28] sm:$0xff]
    %v2980 = vld [vmem:[#allocation6 + $0x30] sm:$0xff]
    %v2981 = vld [vmem:[#allocation6 + $0x38] sm:$0xff]
    %v2982 = vld [vmem:[#allocation6 + $0x40] sm:$0xff]
    %v2983 = vld [vmem:[#allocation6 + $0x48] sm:$0xff]
    %v2984 = vld [vmem:[#allocation6 + $0x50] sm:$0xff]
    %v2985 = vld [vmem:[#allocation6 + $0x58] sm:$0xff]
    %v2986 = vld [vmem:[#allocation6 + $0x60] sm:$0xff]
    %v2987 = vld [vmem:[#allocation6 + $0x68] sm:$0xff]
    %v2988 = vld [vmem:[#allocation6 + $0x70] sm:$0xff]
    %v2989 = vld [vmem:[#allocation6 + $0x78] sm:$0xff]
    %v2990 = vld [vmem:[%s8] sm:$0x1]
    %v2992 = vlaneseq
    %v2993 = vshrl.u32 %v2992, 7
    %v2994 = vsub.s32 0, %v2993
    %v2995 = vrot.slane %v2990, %v2994
    %2997 = vmatprep.subr.mxu0 0.0
    %2998 = vmatpush1.msra.mxu0 %v2989
    %2999 = vmatprep.subr.mxu0 0.0
    %3000 = vmatpush1.msra.mxu0 %v2988
    %3001 = vmatprep.subr.mxu0 0.0
    %3002 = vmatpush1.msra.mxu0 %v2987
    %3003 = vmatprep.subr.mxu0 0.0
    %3004 = vmatpush1.msra.mxu0 %v2986
    %3005 = vmatprep.subr.mxu0 0.0
    %3006 = vmatpush1.msra.mxu0 %v2985
    %3007 = vmatprep.subr.mxu0 0.0
    %3008 = vmatpush1.msra.mxu0 %v2984
    %3009 = vmatprep.subr.mxu0 0.0
    %3010 = vmatpush1.msra.mxu0 %v2983
    %3011 = vmatprep.subr.mxu0 0.0
    %3012 = vmatpush1.msra.mxu0 %v2982
    %3013 = vmatprep.subr.mxu0 0.0
    %3014 = vmatpush1.msra.mxu0 %v2981
    %3015 = vmatprep.subr.mxu0 0.0
    %3016 = vmatpush1.msra.mxu0 %v2980
    %3017 = vmatprep.subr.mxu0 0.0
    %3018 = vmatpush1.msra.mxu0 %v2979
    %3019 = vmatprep.subr.mxu0 0.0
    %3020 = vmatpush1.msra.mxu0 %v2978
    %3021 = vmatprep.subr.mxu0 0.0
    %3022 = vmatpush1.msra.mxu0 %v2977
    %3023 = vmatprep.subr.mxu0 0.0
    %3024 = vmatpush1.msra.mxu0 %v2976
    %3025 = vmatprep.subr.mxu0 0.0
    %3026 = vmatpush1.msra.mxu0 %v2975
    %3027 = vmatprep.subr.mxu0 0.0
    %3028 = vmatpush1.msra.mxu0 %v2974
    %3029 = vmatprep.subr.mxu0 0.0
    %3030 = vmatpush2.msra.mxu0 0.0
    %3031 = vmatprep.subr.mxu0 0.0
    %3032 = vmatpush2.msra.mxu0 0.0
    %3033 = vmatprep.subr.mxu0 0.0
    %3034 = vmatpush2.msra.mxu0 0.0
    %3035 = vmatprep.subr.mxu0 0.0
    %3036 = vmatpush2.msra.mxu0 0.0
    %3037 = vmatprep.subr.mxu0 0.0
    %3038 = vmatpush2.msra.mxu0 0.0
    %3039 = vmatprep.subr.mxu0 0.0
    %3040 = vmatpush2.msra.mxu0 0.0
    %3041 = vmatprep.subr.mxu0 0.0
    %3042 = vmatpush2.msra.mxu0 0.0
    %3043 = vmatprep.subr.mxu0 0.0
    %3044 = vmatpush2.msra.mxu0 0.0
    %3045 = vmatprep.subr.mxu0 0.0
    %3046 = vmatpush2.msra.mxu0 0.0
    %3047 = vmatprep.subr.mxu0 0.0
    %3048 = vmatpush2.msra.mxu0 0.0
    %3049 = vmatprep.subr.mxu0 0.0
    %3050 = vmatpush2.msra.mxu0 0.0
    %3051 = vmatprep.subr.mxu0 0.0
    %3052 = vmatpush2.msra.mxu0 0.0
    %3053 = vmatprep.subr.mxu0 0.0
    %3054 = vmatpush2.msra.mxu0 0.0
    %3055 = vmatprep.subr.mxu0 0.0
    %3056 = vmatpush2.msra.mxu0 0.0
    %3057 = vmatprep.subr.mxu0 0.0
    %3058 = vmatpush2.msra.mxu0 0.0
    %3059 = vmatprep.subr.mxu0 0.0
    %3060 = vmatpush2.msra.mxu0 0.0
    %3061 = vmatprep.mubr.f32.mxu0 0.0
    %3062 = vmatmul.mubr.f32.gmra.mxu0 %v2973
    %v3063 = vpop.f32.mrf.mxu0
    %v3064 = vadd.f32 %v2995, %v3063
    %v3065 = vpop.f32.mrf.mxu0
    %3066 = vdwg.mxu0
    %3067 = vst [vmem:[%s9] sm:$0xff] %v3064
    // Predicated region
    $region50: #{four_class_forward.1} parent=1 // pred_check
      _
    $region51: #{four_class_forward.1} parent=1 // pred_check_branch
      %3069 = sbr.rel (0) target = $region53
    $region52: #{four_class_forward.1} parent=1 // pred_region
      _
    $region53: #{four_class_forward.1} parent=1 // pred_fallthru
      _
    // Predicated region
    $region54: #{four_class_forward.1} parent=1 // pred_check
      _
    $region55: #{four_class_forward.1} parent=1 // pred_check_branch
      %3071 = sbr.rel (0) target = $region57
    $region56: #{four_class_forward.1} parent=1 // pred_region
      _
    $region57: #{four_class_forward.1} parent=1 // pred_fallthru
      _
    %3072 = vsyncpa [#allocation3], 1
    %3073 = vsyncpa [#allocation5], 1

</llo_original>
